<compile_context>
chip_gen: v7x
topology: tpu7x:2x2x1
jax: 0.10.0
libtpu: 0.0.40
codegen_flags: <defaults>
</compile_context>

<pallas_src>
import functools
import math

import jax
import jax.numpy as jnp
from jax import lax
from jax.experimental import pallas as pl
from jax.experimental.pallas import tpu as pltpu

_HIGHEST = jax.lax.Precision.HIGHEST   # reference path only


# ---------------------------------------------------------------------------
# Pallas kernel: whole model (all GRU layers + linear head)
# ---------------------------------------------------------------------------
def _fused_gru_kernel(num_layers, x_ref, *refs):
    """Ref layout after x_ref (T, Bb, I):
      per layer l : w_ih (in_l, 3*Hp), w_hh (Hp, 3*Hp), b_i (1, 3*Hp), b_hn (1, Hp)
      lin_w (1, Hp), lin_b (1, 1)
      outputs     : out_seq (T, Bb, Hp), h_n (Bb, Hp), lin (Bb, 1)
      scratch     : gi (Tc*Bb, 3*Hp), seq (T*Bb, Hp)
    """
    n_w = 4 * num_layers
    layer_refs = [refs[4 * l:4 * l + 4] for l in range(num_layers)]
    lin_w_ref, lin_b_ref = refs[n_w], refs[n_w + 1]
    out_ref, hn_ref, lin_ref = refs[n_w + 2:n_w + 5]
    gi_ref, seq_ref = refs[n_w + 5], refs[n_w + 6]

    T, Bb, I = x_ref.shape
    Hp = out_ref.shape[2]               # lane-padded hidden width (multiple of 128)
    Tc = gi_ref.shape[0] // Bb          # timesteps resident in the gi scratch

    h = None
    for l in range(num_layers):
        w_ih_ref, w_hh_ref, bi_ref, bhn_ref = layer_refs[l]
        is_last = l == num_layers - 1

        w_hh = w_hh_ref[...]                                # (Hp, 3*Hp), layer-resident
        b_hn = jnp.broadcast_to(bhn_ref[...], (Bb, Hp))     # hoisted broadcast
        h = jnp.zeros((Bb, Hp), jnp.float32)

        for c0 in range(0, T, Tc):                          # static time-chunk loop
            tc = min(Tc, T - c0)                            # static chunk length

            # (1) Input projection for tc timesteps in ONE GEMM (off serial path).
            #     b_ih and the r/z parts of b_hh are pre-folded into bi.
            if l == 0:
                x_chunk = x_ref[c0:c0 + tc, :, :].reshape(tc * Bb, I)
            else:
                x_chunk = seq_ref[c0 * Bb:(c0 + tc) * Bb, :]
            gi_ref[0:tc * Bb, :] = (
                jnp.dot(x_chunk, w_ih_ref[...],
                        preferred_element_type=jnp.float32) + bi_ref[...])

            # (2) The only truly sequential work: h @ W_hh + gate nonlinearities.
            def step(t, h, c0=c0, is_last=is_last):
                row = pl.multiple_of(t * Bb, Bb)
                gi = gi_ref[pl.ds(row, Bb), :]                          # (Bb, 3*Hp)
                gh = jnp.dot(h, w_hh, preferred_element_type=jnp.float32)
                r = jax.nn.sigmoid(gi[:, 0:Hp] + gh[:, 0:Hp])
                z = jax.nn.sigmoid(gi[:, Hp:2 * Hp] + gh[:, Hp:2 * Hp])
                n = jnp.tanh(gi[:, 2 * Hp:3 * Hp] + r * (gh[:, 2 * Hp:3 * Hp] + b_hn))
                h_new = n + z * (h - n)                     # == (1-z)*n + z*h
                if is_last:
                    # Lane-dense (Hp = multiple of 128) unmasked store per step.
                    out_ref[c0 + t] = h_new.astype(out_ref.dtype)
                else:
                    grow = pl.multiple_of(c0 * Bb + t * Bb, Bb)
                    seq_ref[pl.ds(grow, Bb), :] = h_new
                return h_new

            h = lax.fori_loop(0, tc, step, h, unroll=min(tc, 8))

        if l == 0:                      # module returns h_n of layer 0
            hn_ref[...] = h.astype(hn_ref.dtype)

    # (3) Linear head (out_features=1) on the last timestep of the last layer:
    #     VPU broadcast-multiply + lane reduction (padded lin_w columns are zero).
    lin_ref[...] = (jnp.sum(h * lin_w_ref[...], axis=-1, keepdims=True)
                    + lin_b_ref[...]).astype(lin_ref.dtype)


# ---------------------------------------------------------------------------
# Wrapper
# ---------------------------------------------------------------------------
@functools.partial(jax.jit, static_argnames=("hidden_size",))
def gru_model_forward(inputs, packed, *, hidden_size):
    """inputs: (B, T, input_size) batch-first, like the PyTorch module."""
    B, T, I = inputs.shape
    H = hidden_size
    num_layers = len(packed["layers"])
    Hp = packed["layers"][0]["w_hh"].shape[0]

    # Pad the batch to full sublane groups; shard across 2 TensorCores (v7x
    # megacore) whenever the padded batch allows two multiple-of-8 shards.
    if B <= 8:
        Bpad, n_shards = 8, 1
    else:
        Bpad, n_shards = ((B + 15) // 16) * 16, 2
    Bb = Bpad // n_shards

    x_tm = jnp.transpose(inputs, (1, 0, 2))                  # (T, B, I) time-major
    if Bpad != B:
        x_tm = jnp.pad(x_tm, ((0, 0), (0, Bpad - B), (0, 0)))

    Tc = min(T, 128)          # time-chunk resident in the gi scratch (v7x VMEM bound)

    operands = [x_tm]
    in_specs = [pl.BlockSpec((T, Bb, I), lambda b: (0, b, 0))]
    for lyr in packed["layers"]:
        for name in ("w_ih", "w_hh", "b_i", "b_hn"):
            arr = lyr[name]
            operands.append(arr)
            in_specs.append(pl.BlockSpec(arr.shape, lambda b: (0, 0)))
    for name in ("lin_w", "lin_b"):
        arr = packed[name]
        operands.append(arr)
        in_specs.append(pl.BlockSpec(arr.shape, lambda b: (0, 0)))

    out_shape = (
        jax.ShapeDtypeStruct((T, Bpad, Hp), jnp.float32),   # last-layer outputs (padded)
        jax.ShapeDtypeStruct((Bpad, Hp), jnp.float32),      # h_n = layer-0 final hidden
        jax.ShapeDtypeStruct((Bpad, 1), jnp.float32),       # linear head
    )
    out_specs = (
        pl.BlockSpec((T, Bb, Hp), lambda b: (0, b, 0)),
        pl.BlockSpec((Bb, Hp), lambda b: (b, 0)),
        pl.BlockSpec((Bb, 1), lambda b: (b, 0)),
    )

    seq_rows = T * Bb if num_layers > 1 else 8
    scratch_shapes = [
        pltpu.VMEM((Tc * Bb, 3 * Hp), jnp.float32),          # gi for one time chunk
        pltpu.VMEM((seq_rows, Hp), jnp.float32),             # inter-layer sequence
    ]

    # Explicit VMEM budget: 2x (double-buffer) every in/out block + scratch + headroom,
    # clamped to the physical capacity of the current TPU generation.
    blocks = ([(T, Bb, I)] + [tuple(op.shape) for op in operands[1:]]
              + [(T, Bb, Hp), (Bb, Hp), (Bb, 1)])
    need = 2 * sum(4 * math.prod(s) for s in blocks)
    need += 4 * (Tc * Bb * 3 * Hp) + 4 * (seq_rows * Hp)
    try:
        vmem_cap = int(pltpu.get_tpu_info().vmem_capacity_bytes)
    except Exception:
        vmem_cap = 64 * 1024 * 1024
    vmem_limit = max(1 << 20, min(vmem_cap, need + (32 << 20)))

    out_tm, h_n, x_lin = pl.pallas_call(
        functools.partial(_fused_gru_kernel, num_layers),
        out_shape=out_shape,
        grid_spec=pltpu.PrefetchScalarGridSpec(
            num_scalar_prefetch=0,
            grid=(n_shards,),
            in_specs=in_specs,
            out_specs=out_specs,
            scratch_shapes=scratch_shapes),
        compiler_params=pltpu.CompilerParams(
            dimension_semantics=("parallel",),               # independent batch shards
            vmem_limit_bytes=vmem_limit),
    )(*operands)

    outputs = jnp.transpose(out_tm, (1, 0, 2))[:B, :, :H]    # batch-first, un-padded
    return x_lin[:B], outputs, h_n[:B, :H]


# ---------------------------------------------------------------------------
# Parameters: PyTorch-layout init + packing into the padded kernel layout
# ---------------------------------------------------------------------------
def init_params(key, input_size, hidden_size, num_layers):
    """PyTorch-layout GRU + Linear parameters, uniform(-k, k) init."""
    k = 1.0 / math.sqrt(hidden_size)
    layers = []
    for layer in range(num_layers):
        in_sz = input_size if layer == 0 else hidden_size
        key, k1, k2, k3, k4 = jax.random.split(key, 5)
        layers.append(dict(
            w_ih=jax.random.uniform(k1, (3 * hidden_size, in_sz), jnp.float32, -k, k),
            w_hh=jax.random.uniform(k2, (3 * hidden_size, hidden_size), jnp.float32, -k, k),
            b_ih=jax.random.uniform(k3, (3 * hidden_size,), jnp.float32, -k, k),
            b_hh=jax.random.uniform(k4, (3 * hidden_size,), jnp.float32, -k, k),
        ))
    key, k1, k2 = jax.random.split(key, 3)
    lin_w = jax.random.uniform(k1, (1, hidden_size), jnp.float32, -k, k)
    lin_b = jax.random.uniform(k2, (1,), jnp.float32, -k, k)
    return {"layers": layers, "lin_w": lin_w, "lin_b": lin_b}


def _place_gates(m, H, Hp):
    """Re-lay the stacked (..., 3H) gate axis as (..., 3*Hp): each gate block is
    zero-padded to Hp so it starts on a 128-lane-aligned offset (g * Hp)."""
    pad = [(0, 0)] * (m.ndim - 1) + [(0, Hp - H)]
    return jnp.concatenate(
        [jnp.pad(m[..., g * H:(g + 1) * H], pad) for g in range(3)], axis=-1)


def pack_params(raw, hidden_size):
    """PyTorch layout -> transposed, lane-padded, bias-folded kernel layout."""
    H = hidden_size
    Hp = ((H + 127) // 128) * 128            # lane-aligned hidden width
    layers = []
    for idx, lyr in enumerate(raw["layers"]):
        w_ih_t = jnp.asarray(lyr["w_ih"]).T              # (in, 3H)
        w_hh_t = jnp.asarray(lyr["w_hh"]).T              # (H, 3H)
        if idx > 0:                                      # deeper layers read padded h
            w_ih_t = jnp.pad(w_ih_t, ((0, Hp - H), (0, 0)))
        w_hh_t = jnp.pad(w_hh_t, ((0, Hp - H), (0, 0)))
        b_ih, b_hh = lyr["b_ih"], lyr["b_hh"]
        # Fold b_ih plus the r/z parts of b_hh into the precomputed input projection;
        # b_hn must stay inside r * (.) and is kept separately.
        b_comb = b_ih.at[:2 * H].add(b_hh[:2 * H])
        layers.append(dict(
            w_ih=_place_gates(w_ih_t, H, Hp),                          # (in|Hp, 3*Hp)
            w_hh=_place_gates(w_hh_t, H, Hp),                          # (Hp, 3*Hp)
            b_i=_place_gates(b_comb.reshape(1, -1), H, Hp),            # (1, 3*Hp)
            b_hn=jnp.pad(b_hh[2 * H:].reshape(1, -1),
                         ((0, 0), (0, Hp - H))),                       # (1, Hp)
        ))
    return {
        "layers": layers,
        "lin_w": jnp.pad(raw["lin_w"], ((0, 0), (0, Hp - H))),         # (1, Hp)
        "lin_b": raw["lin_b"].reshape(1, 1),                           # (1, 1)
    }


# ---------------------------------------------------------------------------
# Pure-JAX reference (PyTorch GRU semantics) for numerical validation
# ---------------------------------------------------------------------------
def reference_forward(inputs, raw):
    B = inputs.shape[0]
    layer_in = inputs                                  # (B, T, I)
    final_h = []
    for lyr in raw["layers"]:
        w_ih, w_hh, b_ih, b_hh = lyr["w_ih"], lyr["w_hh"], lyr["b_ih"], lyr["b_hh"]
        H = w_hh.shape[1]

        def cell(h, x_t):
            gi = jnp.dot(x_t, w_ih.T, precision=_HIGHEST) + b_ih
            gh = jnp.dot(h, w_hh.T, precision=_HIGHEST) + b_hh
            r = jax.nn.sigmoid(gi[:, :H] + gh[:, :H])
            z = jax.nn.sigmoid(gi[:, H:2 * H] + gh[:, H:2 * H])
            n = jnp.tanh(gi[:, 2 * H:] + r * gh[:, 2 * H:])
            h_new = (1.0 - z) * n + z * h
            return h_new, h_new

        h_T, outs = lax.scan(cell, jnp.zeros((B, H), jnp.float32),
                             jnp.transpose(layer_in, (1, 0, 2)))
        layer_in = jnp.transpose(outs, (1, 0, 2))
        final_h.append(h_T)
    outputs = layer_in
    h_n = final_h[0]
    x_lin = jnp.dot(outputs[:, -1, :], raw["lin_w"].T, precision=_HIGHEST) + raw["lin_b"]
    return x_lin, outputs, h_n


# ---------------------------------------------------------------------------
if __name__ == "__main__":
    input_size, hidden_size, num_layers = 4, 32, 2
    dropout = 0.0  # eval mode / p=0 -> identity between layers
    # TODO(synk): training-mode inter-layer dropout masks are not implemented
    # (module semantics here follow eval mode, where dropout is the identity).
    batch, seq = 2, 8

    key = jax.random.PRNGKey(0)
    key, pkey, xkey = jax.random.split(key, 3)
    raw = init_params(pkey, input_size, hidden_size, num_layers)
    packed = pack_params(raw, hidden_size)
    inputs = jax.random.normal(xkey, (batch, seq, input_size), jnp.float32)

    x_lin, outputs, h_n = gru_model_forward(inputs, packed, hidden_size=hidden_size)
    jax.block_until_ready((x_lin, outputs, h_n))

    assert x_lin.shape == (batch, 1)
    assert outputs.shape == (batch, seq, hidden_size)
    assert h_n.shape == (batch, hidden_size)

    # Numerical check vs. a HIGHEST-precision pure-JAX reference. The kernel now
    # uses default (single-pass bf16) MXU precision per the performance review,
    # and bf16 rounding compounds through the recurrence -> looser tolerance.
    x_lin_ref, outputs_ref, h_n_ref = reference_forward(inputs, raw)
    tol = dict(atol=3e-2, rtol=3e-2)
    assert jnp.allclose(x_lin, x_lin_ref, **tol), "linear head mismatch"
    assert jnp.allclose(outputs, outputs_ref, **tol), "outputs mismatch"
    assert jnp.allclose(h_n, h_n_ref, **tol), "h_n mismatch"

    print("KERNEL_OK")
</pallas_src>

<mosaic_0001>
module attributes {stable_mosaic.version = 11 : i64} {
  func.func @_fused_gru_kernel(%arg0: i32, %arg1: memref<8x8x4xf32, #tpu.memory_space<vmem>>, %arg2: memref<4x384xf32, #tpu.memory_space<vmem>>, %arg3: memref<128x384xf32, #tpu.memory_space<vmem>>, %arg4: memref<1x384xf32, #tpu.memory_space<vmem>>, %arg5: memref<1x128xf32, #tpu.memory_space<vmem>>, %arg6: memref<128x384xf32, #tpu.memory_space<vmem>>, %arg7: memref<128x384xf32, #tpu.memory_space<vmem>>, %arg8: memref<1x384xf32, #tpu.memory_space<vmem>>, %arg9: memref<1x128xf32, #tpu.memory_space<vmem>>, %arg10: memref<1x128xf32, #tpu.memory_space<vmem>>, %arg11: memref<1x1xf32, #tpu.memory_space<vmem>>, %arg12: memref<8x8x128xf32, #tpu.memory_space<vmem>>, %arg13: memref<8x128xf32, #tpu.memory_space<vmem>>, %arg14: memref<8x1xf32, #tpu.memory_space<vmem>>, %arg15: memref<64x384xf32, #tpu.memory_space<vmem>>, %arg16: memref<64x128xf32, #tpu.memory_space<vmem>>) attributes {dimension_semantics = [#tpu.dimension_semantics<parallel>], iteration_bounds = array<i64: 1>, scalar_prefetch = 0 : i64, scratch_operands = 2 : i64, tpu.core_type = #tpu.core_type<tc>, window_params = [{transform_indices = @transform_0, window_bounds = array<i64: 8, 8, 4>}, {pipeline_mode = #tpu.pipeline_mode<synchronous>, transform_indices = @transform_1, window_bounds = array<i64: 4, 384>}, {pipeline_mode = #tpu.pipeline_mode<synchronous>, transform_indices = @transform_2, window_bounds = array<i64: 128, 384>}, {pipeline_mode = #tpu.pipeline_mode<synchronous>, transform_indices = @transform_3, window_bounds = array<i64: 1, 384>}, {pipeline_mode = #tpu.pipeline_mode<synchronous>, transform_indices = @transform_4, window_bounds = array<i64: 1, 128>}, {pipeline_mode = #tpu.pipeline_mode<synchronous>, transform_indices = @transform_5, window_bounds = array<i64: 128, 384>}, {pipeline_mode = #tpu.pipeline_mode<synchronous>, transform_indices = @transform_6, window_bounds = array<i64: 128, 384>}, {pipeline_mode = #tpu.pipeline_mode<synchronous>, transform_indices = @transform_7, window_bounds = array<i64: 1, 384>}, {pipeline_mode = #tpu.pipeline_mode<synchronous>, transform_indices = @transform_8, window_bounds = array<i64: 1, 128>}, {pipeline_mode = #tpu.pipeline_mode<synchronous>, transform_indices = @transform_9, window_bounds = array<i64: 1, 128>}, {pipeline_mode = #tpu.pipeline_mode<synchronous>, transform_indices = @transform_10, window_bounds = array<i64: 1, 1>}, {transform_indices = @transform_11, window_bounds = array<i64: 8, 8, 128>}, {transform_indices = @transform_12, window_bounds = array<i64: 8, 128>}, {transform_indices = @transform_13, window_bounds = array<i64: 8, 1>}]} {
    %c0 = arith.constant 0 : index
    %c0_0 = arith.constant 0 : index
    %0 = vector.load %arg3[%c0, %c0_0] : memref<128x384xf32, #tpu.memory_space<vmem>>, vector<128x384xf32>
    %c0_1 = arith.constant 0 : index
    %c0_2 = arith.constant 0 : index
    %1 = vector.load %arg5[%c0_1, %c0_2] : memref<1x128xf32, #tpu.memory_space<vmem>>, vector<1x128xf32>
    %2 = vector.shape_cast %1 : vector<1x128xf32> to vector<1x128xf32>
    %3 = vector.broadcast %2 : vector<1x128xf32> to vector<8x128xf32>
    %cst = arith.constant 0.000000e+00 : f32
    %4 = vector.broadcast %cst : f32 to vector<8x128xf32>
    %c0_3 = arith.constant 0 : index
    %c0_4 = arith.constant 0 : index
    %c0_5 = arith.constant 0 : index
    %5 = vector.load %arg1[%c0_3, %c0_4, %c0_5] : memref<8x8x4xf32, #tpu.memory_space<vmem>>, vector<8x8x4xf32>
    %6 = vector.shape_cast %5 : vector<8x8x4xf32> to vector<64x4xf32>
    %c0_6 = arith.constant 0 : index
    %c0_7 = arith.constant 0 : index
    %7 = vector.load %arg2[%c0_6, %c0_7] : memref<4x384xf32, #tpu.memory_space<vmem>>, vector<4x384xf32>
    %cst_8 = arith.constant dense<0.000000e+00> : vector<64x384xf32>
    %8 = tpu.matmul %6, %7, %cst_8 {dimension_numbers = #tpu.dot_dimension_numbers<[1], [0], [0], [1], [0, 0, 1, 1], [], []>} : vector<64x4xf32>, vector<4x384xf32>, vector<64x384xf32> -> vector<64x384xf32>
    %c0_9 = arith.constant 0 : index
    %c0_10 = arith.constant 0 : index
    %9 = vector.load %arg4[%c0_9, %c0_10] : memref<1x384xf32, #tpu.memory_space<vmem>>, vector<1x384xf32>
    %10 = vector.broadcast %9 : vector<1x384xf32> to vector<64x384xf32>
    %11 = arith.addf %8, %10 : vector<64x384xf32>
    %c0_11 = arith.constant 0 : index
    %c0_12 = arith.constant 0 : index
    %12 = vector.load %arg15[%c0_11, %c0_12] : memref<64x384xf32, #tpu.memory_space<vmem>>, vector<64x384xf32>
    tpu.vector_store %arg15[%c0_11, %c0_12], %11 {strides = array<i32>} : memref<64x384xf32, #tpu.memory_space<vmem>>, vector<64x384xf32>,
    %c0_i32 = arith.constant 0 : i32
    %c8_i32 = arith.constant 8 : i32
    %13 = arith.muli %c0_i32, %c8_i32 : i32
    %14 = tpu.assume_multiple %13, 8 : i32
    %15 = arith.index_cast %14 : i32 to index
    %c0_13 = arith.constant 0 : index
    %16 = vector.load %arg15[%15, %c0_13] : memref<64x384xf32, #tpu.memory_space<vmem>>, vector<8x384xf32>
    %cst_14 = arith.constant dense<0.000000e+00> : vector<8x384xf32>
    %17 = tpu.matmul %4, %0, %cst_14 {dimension_numbers = #tpu.dot_dimension_numbers<[1], [0], [0], [1], [0, 0, 1, 1], [], []>} : vector<8x128xf32>, vector<128x384xf32>, vector<8x384xf32> -> vector<8x384xf32>
    %18 = vector.extract_strided_slice %16 {offsets = [0, 0], sizes = [8, 128], strides = [1, 1]} : vector<8x384xf32> to vector<8x128xf32>
    %19 = vector.extract_strided_slice %17 {offsets = [0, 0], sizes = [8, 128], strides = [1, 1]} : vector<8x384xf32> to vector<8x128xf32>
    %20 = arith.addf %18, %19 : vector<8x128xf32>
    %21 = arith.negf %20 : vector<8x128xf32>
    %22 = math.exp %21 : vector<8x128xf32>
    %cst_15 = arith.constant 1.000000e+00 : f32
    %23 = vector.broadcast %cst_15 : f32 to vector<8x128xf32>
    %24 = arith.addf %23, %22 : vector<8x128xf32>
    %25 = arith.divf %23, %24 : vector<8x128xf32>
    %26 = vector.extract_strided_slice %16 {offsets = [0, 128], sizes = [8, 128], strides = [1, 1]} : vector<8x384xf32> to vector<8x128xf32>
    %27 = vector.extract_strided_slice %17 {offsets = [0, 128], sizes = [8, 128], strides = [1, 1]} : vector<8x384xf32> to vector<8x128xf32>
    %28 = arith.addf %26, %27 : vector<8x128xf32>
    %29 = arith.negf %28 : vector<8x128xf32>
    %30 = math.exp %29 : vector<8x128xf32>
    %cst_16 = arith.constant 1.000000e+00 : f32
    %31 = vector.broadcast %cst_16 : f32 to vector<8x128xf32>
    %32 = arith.addf %31, %30 : vector<8x128xf32>
    %33 = arith.divf %31, %32 : vector<8x128xf32>
    %34 = vector.extract_strided_slice %16 {offsets = [0, 256], sizes = [8, 128], strides = [1, 1]} : vector<8x384xf32> to vector<8x128xf32>
    %35 = vector.extract_strided_slice %17 {offsets = [0, 256], sizes = [8, 128], strides = [1, 1]} : vector<8x384xf32> to vector<8x128xf32>
    %36 = arith.addf %35, %3 : vector<8x128xf32>
    %37 = arith.mulf %25, %36 : vector<8x128xf32>
    %38 = arith.addf %34, %37 : vector<8x128xf32>
    %39 = math.tanh %38 : vector<8x128xf32>
    %40 = arith.subf %4, %39 : vector<8x128xf32>
    %41 = arith.mulf %33, %40 : vector<8x128xf32>
    %42 = arith.addf %39, %41 : vector<8x128xf32>
    %c8_i32_17 = arith.constant 8 : i32
    %43 = arith.muli %c0_i32, %c8_i32_17 : i32
    %c0_i32_18 = arith.constant 0 : i32
    %44 = arith.addi %c0_i32_18, %43 : i32
    %45 = tpu.assume_multiple %44, 8 : i32
    %46 = arith.index_cast %45 : i32 to index
    %c0_19 = arith.constant 0 : index
    %47 = vector.load %arg16[%46, %c0_19] : memref<64x128xf32, #tpu.memory_space<vmem>>, vector<8x128xf32>
    tpu.vector_store %arg16[%46, %c0_19], %42 {strides = array<i32>} : memref<64x128xf32, #tpu.memory_space<vmem>>, vector<8x128xf32>,
    %c1_i32 = arith.constant 1 : i32
    %c8_i32_20 = arith.constant 8 : i32
    %48 = arith.muli %c1_i32, %c8_i32_20 : i32
    %49 = tpu.assume_multiple %48, 8 : i32
    %50 = arith.index_cast %49 : i32 to index
    %c0_21 = arith.constant 0 : index
    %51 = vector.load %arg15[%50, %c0_21] : memref<64x384xf32, #tpu.memory_space<vmem>>, vector<8x384xf32>
    %cst_22 = arith.constant dense<0.000000e+00> : vector<8x384xf32>
    %52 = tpu.matmul %42, %0, %cst_22 {dimension_numbers = #tpu.dot_dimension_numbers<[1], [0], [0], [1], [0, 0, 1, 1], [], []>} : vector<8x128xf32>, vector<128x384xf32>, vector<8x384xf32> -> vector<8x384xf32>
    %53 = vector.extract_strided_slice %51 {offsets = [0, 0], sizes = [8, 128], strides = [1, 1]} : vector<8x384xf32> to vector<8x128xf32>
    %54 = vector.extract_strided_slice %52 {offsets = [0, 0], sizes = [8, 128], strides = [1, 1]} : vector<8x384xf32> to vector<8x128xf32>
    %55 = arith.addf %53, %54 : vector<8x128xf32>
    %56 = arith.negf %55 : vector<8x128xf32>
    %57 = math.exp %56 : vector<8x128xf32>
    %cst_23 = arith.constant 1.000000e+00 : f32
    %58 = vector.broadcast %cst_23 : f32 to vector<8x128xf32>
    %59 = arith.addf %58, %57 : vector<8x128xf32>
    %60 = arith.divf %58, %59 : vector<8x128xf32>
    %61 = vector.extract_strided_slice %51 {offsets = [0, 128], sizes = [8, 128], strides = [1, 1]} : vector<8x384xf32> to vector<8x128xf32>
    %62 = vector.extract_strided_slice %52 {offsets = [0, 128], sizes = [8, 128], strides = [1, 1]} : vector<8x384xf32> to vector<8x128xf32>
    %63 = arith.addf %61, %62 : vector<8x128xf32>
    %64 = arith.negf %63 : vector<8x128xf32>
    %65 = math.exp %64 : vector<8x128xf32>
    %cst_24 = arith.constant 1.000000e+00 : f32
    %66 = vector.broadcast %cst_24 : f32 to vector<8x128xf32>
    %67 = arith.addf %66, %65 : vector<8x128xf32>
    %68 = arith.divf %66, %67 : vector<8x128xf32>
    %69 = vector.extract_strided_slice %51 {offsets = [0, 256], sizes = [8, 128], strides = [1, 1]} : vector<8x384xf32> to vector<8x128xf32>
    %70 = vector.extract_strided_slice %52 {offsets = [0, 256], sizes = [8, 128], strides = [1, 1]} : vector<8x384xf32> to vector<8x128xf32>
    %71 = arith.addf %70, %3 : vector<8x128xf32>
    %72 = arith.mulf %60, %71 : vector<8x128xf32>
    %73 = arith.addf %69, %72 : vector<8x128xf32>
    %74 = math.tanh %73 : vector<8x128xf32>
    %75 = arith.subf %42, %74 : vector<8x128xf32>
    %76 = arith.mulf %68, %75 : vector<8x128xf32>
    %77 = arith.addf %74, %76 : vector<8x128xf32>
    %c8_i32_25 = arith.constant 8 : i32
    %78 = arith.muli %c1_i32, %c8_i32_25 : i32
    %c0_i32_26 = arith.constant 0 : i32
    %79 = arith.addi %c0_i32_26, %78 : i32
    %80 = tpu.assume_multiple %79, 8 : i32
    %81 = arith.index_cast %80 : i32 to index
    %c0_27 = arith.constant 0 : index
    %82 = vector.load %arg16[%81, %c0_27] : memref<64x128xf32, #tpu.memory_space<vmem>>, vector<8x128xf32>
    tpu.vector_store %arg16[%81, %c0_27], %77 {strides = array<i32>} : memref<64x128xf32, #tpu.memory_space<vmem>>, vector<8x128xf32>,
    %c2_i32 = arith.constant 2 : i32
    %c8_i32_28 = arith.constant 8 : i32
    %83 = arith.muli %c2_i32, %c8_i32_28 : i32
    %84 = tpu.assume_multiple %83, 8 : i32
    %85 = arith.index_cast %84 : i32 to index
    %c0_29 = arith.constant 0 : index
    %86 = vector.load %arg15[%85, %c0_29] : memref<64x384xf32, #tpu.memory_space<vmem>>, vector<8x384xf32>
    %cst_30 = arith.constant dense<0.000000e+00> : vector<8x384xf32>
    %87 = tpu.matmul %77, %0, %cst_30 {dimension_numbers = #tpu.dot_dimension_numbers<[1], [0], [0], [1], [0, 0, 1, 1], [], []>} : vector<8x128xf32>, vector<128x384xf32>, vector<8x384xf32> -> vector<8x384xf32>
    %88 = vector.extract_strided_slice %86 {offsets = [0, 0], sizes = [8, 128], strides = [1, 1]} : vector<8x384xf32> to vector<8x128xf32>
    %89 = vector.extract_strided_slice %87 {offsets = [0, 0], sizes = [8, 128], strides = [1, 1]} : vector<8x384xf32> to vector<8x128xf32>
    %90 = arith.addf %88, %89 : vector<8x128xf32>
    %91 = arith.negf %90 : vector<8x128xf32>
    %92 = math.exp %91 : vector<8x128xf32>
    %cst_31 = arith.constant 1.000000e+00 : f32
    %93 = vector.broadcast %cst_31 : f32 to vector<8x128xf32>
    %94 = arith.addf %93, %92 : vector<8x128xf32>
    %95 = arith.divf %93, %94 : vector<8x128xf32>
    %96 = vector.extract_strided_slice %86 {offsets = [0, 128], sizes = [8, 128], strides = [1, 1]} : vector<8x384xf32> to vector<8x128xf32>
    %97 = vector.extract_strided_slice %87 {offsets = [0, 128], sizes = [8, 128], strides = [1, 1]} : vector<8x384xf32> to vector<8x128xf32>
    %98 = arith.addf %96, %97 : vector<8x128xf32>
    %99 = arith.negf %98 : vector<8x128xf32>
    %100 = math.exp %99 : vector<8x128xf32>
    %cst_32 = arith.constant 1.000000e+00 : f32
    %101 = vector.broadcast %cst_32 : f32 to vector<8x128xf32>
    %102 = arith.addf %101, %100 : vector<8x128xf32>
    %103 = arith.divf %101, %102 : vector<8x128xf32>
    %104 = vector.extract_strided_slice %86 {offsets = [0, 256], sizes = [8, 128], strides = [1, 1]} : vector<8x384xf32> to vector<8x128xf32>
    %105 = vector.extract_strided_slice %87 {offsets = [0, 256], sizes = [8, 128], strides = [1, 1]} : vector<8x384xf32> to vector<8x128xf32>
    %106 = arith.addf %105, %3 : vector<8x128xf32>
    %107 = arith.mulf %95, %106 : vector<8x128xf32>
    %108 = arith.addf %104, %107 : vector<8x128xf32>
    %109 = math.tanh %108 : vector<8x128xf32>
    %110 = arith.subf %77, %109 : vector<8x128xf32>
    %111 = arith.mulf %103, %110 : vector<8x128xf32>
    %112 = arith.addf %109, %111 : vector<8x128xf32>
    %c8_i32_33 = arith.constant 8 : i32
    %113 = arith.muli %c2_i32, %c8_i32_33 : i32
    %c0_i32_34 = arith.constant 0 : i32
    %114 = arith.addi %c0_i32_34, %113 : i32
    %115 = tpu.assume_multiple %114, 8 : i32
    %116 = arith.index_cast %115 : i32 to index
    %c0_35 = arith.constant 0 : index
    %117 = vector.load %arg16[%116, %c0_35] : memref<64x128xf32, #tpu.memory_space<vmem>>, vector<8x128xf32>
    tpu.vector_store %arg16[%116, %c0_35], %112 {strides = array<i32>} : memref<64x128xf32, #tpu.memory_space<vmem>>, vector<8x128xf32>,
    %c3_i32 = arith.constant 3 : i32
    %c8_i32_36 = arith.constant 8 : i32
    %118 = arith.muli %c3_i32, %c8_i32_36 : i32
    %119 = tpu.assume_multiple %118, 8 : i32
    %120 = arith.index_cast %119 : i32 to index
    %c0_37 = arith.constant 0 : index
    %121 = vector.load %arg15[%120, %c0_37] : memref<64x384xf32, #tpu.memory_space<vmem>>, vector<8x384xf32>
    %cst_38 = arith.constant dense<0.000000e+00> : vector<8x384xf32>
    %122 = tpu.matmul %112, %0, %cst_38 {dimension_numbers = #tpu.dot_dimension_numbers<[1], [0], [0], [1], [0, 0, 1, 1], [], []>} : vector<8x128xf32>, vector<128x384xf32>, vector<8x384xf32> -> vector<8x384xf32>
    %123 = vector.extract_strided_slice %121 {offsets = [0, 0], sizes = [8, 128], strides = [1, 1]} : vector<8x384xf32> to vector<8x128xf32>
    %124 = vector.extract_strided_slice %122 {offsets = [0, 0], sizes = [8, 128], strides = [1, 1]} : vector<8x384xf32> to vector<8x128xf32>
    %125 = arith.addf %123, %124 : vector<8x128xf32>
    %126 = arith.negf %125 : vector<8x128xf32>
    %127 = math.exp %126 : vector<8x128xf32>
    %cst_39 = arith.constant 1.000000e+00 : f32
    %128 = vector.broadcast %cst_39 : f32 to vector<8x128xf32>
    %129 = arith.addf %128, %127 : vector<8x128xf32>
    %130 = arith.divf %128, %129 : vector<8x128xf32>
    %131 = vector.extract_strided_slice %121 {offsets = [0, 128], sizes = [8, 128], strides = [1, 1]} : vector<8x384xf32> to vector<8x128xf32>
    %132 = vector.extract_strided_slice %122 {offsets = [0, 128], sizes = [8, 128], strides = [1, 1]} : vector<8x384xf32> to vector<8x128xf32>
    %133 = arith.addf %131, %132 : vector<8x128xf32>
    %134 = arith.negf %133 : vector<8x128xf32>
    %135 = math.exp %134 : vector<8x128xf32>
    %cst_40 = arith.constant 1.000000e+00 : f32
    %136 = vector.broadcast %cst_40 : f32 to vector<8x128xf32>
    %137 = arith.addf %136, %135 : vector<8x128xf32>
    %138 = arith.divf %136, %137 : vector<8x128xf32>
    %139 = vector.extract_strided_slice %121 {offsets = [0, 256], sizes = [8, 128], strides = [1, 1]} : vector<8x384xf32> to vector<8x128xf32>
    %140 = vector.extract_strided_slice %122 {offsets = [0, 256], sizes = [8, 128], strides = [1, 1]} : vector<8x384xf32> to vector<8x128xf32>
    %141 = arith.addf %140, %3 : vector<8x128xf32>
    %142 = arith.mulf %130, %141 : vector<8x128xf32>
    %143 = arith.addf %139, %142 : vector<8x128xf32>
    %144 = math.tanh %143 : vector<8x128xf32>
    %145 = arith.subf %112, %144 : vector<8x128xf32>
    %146 = arith.mulf %138, %145 : vector<8x128xf32>
    %147 = arith.addf %144, %146 : vector<8x128xf32>
    %c8_i32_41 = arith.constant 8 : i32
    %148 = arith.muli %c3_i32, %c8_i32_41 : i32
    %c0_i32_42 = arith.constant 0 : i32
    %149 = arith.addi %c0_i32_42, %148 : i32
    %150 = tpu.assume_multiple %149, 8 : i32
    %151 = arith.index_cast %150 : i32 to index
    %c0_43 = arith.constant 0 : index
    %152 = vector.load %arg16[%151, %c0_43] : memref<64x128xf32, #tpu.memory_space<vmem>>, vector<8x128xf32>
    tpu.vector_store %arg16[%151, %c0_43], %147 {strides = array<i32>} : memref<64x128xf32, #tpu.memory_space<vmem>>, vector<8x128xf32>,
    %c4_i32 = arith.constant 4 : i32
    %c8_i32_44 = arith.constant 8 : i32
    %153 = arith.muli %c4_i32, %c8_i32_44 : i32
    %154 = tpu.assume_multiple %153, 8 : i32
    %155 = arith.index_cast %154 : i32 to index
    %c0_45 = arith.constant 0 : index
    %156 = vector.load %arg15[%155, %c0_45] : memref<64x384xf32, #tpu.memory_space<vmem>>, vector<8x384xf32>
    %cst_46 = arith.constant dense<0.000000e+00> : vector<8x384xf32>
    %157 = tpu.matmul %147, %0, %cst_46 {dimension_numbers = #tpu.dot_dimension_numbers<[1], [0], [0], [1], [0, 0, 1, 1], [], []>} : vector<8x128xf32>, vector<128x384xf32>, vector<8x384xf32> -> vector<8x384xf32>
    %158 = vector.extract_strided_slice %156 {offsets = [0, 0], sizes = [8, 128], strides = [1, 1]} : vector<8x384xf32> to vector<8x128xf32>
    %159 = vector.extract_strided_slice %157 {offsets = [0, 0], sizes = [8, 128], strides = [1, 1]} : vector<8x384xf32> to vector<8x128xf32>
    %160 = arith.addf %158, %159 : vector<8x128xf32>
    %161 = arith.negf %160 : vector<8x128xf32>
    %162 = math.exp %161 : vector<8x128xf32>
    %cst_47 = arith.constant 1.000000e+00 : f32
    %163 = vector.broadcast %cst_47 : f32 to vector<8x128xf32>
    %164 = arith.addf %163, %162 : vector<8x128xf32>
    %165 = arith.divf %163, %164 : vector<8x128xf32>
    %166 = vector.extract_strided_slice %156 {offsets = [0, 128], sizes = [8, 128], strides = [1, 1]} : vector<8x384xf32> to vector<8x128xf32>
    %167 = vector.extract_strided_slice %157 {offsets = [0, 128], sizes = [8, 128], strides = [1, 1]} : vector<8x384xf32> to vector<8x128xf32>
    %168 = arith.addf %166, %167 : vector<8x128xf32>
    %169 = arith.negf %168 : vector<8x128xf32>
    %170 = math.exp %169 : vector<8x128xf32>
    %cst_48 = arith.constant 1.000000e+00 : f32
    %171 = vector.broadcast %cst_48 : f32 to vector<8x128xf32>
    %172 = arith.addf %171, %170 : vector<8x128xf32>
    %173 = arith.divf %171, %172 : vector<8x128xf32>
    %174 = vector.extract_strided_slice %156 {offsets = [0, 256], sizes = [8, 128], strides = [1, 1]} : vector<8x384xf32> to vector<8x128xf32>
    %175 = vector.extract_strided_slice %157 {offsets = [0, 256], sizes = [8, 128], strides = [1, 1]} : vector<8x384xf32> to vector<8x128xf32>
    %176 = arith.addf %175, %3 : vector<8x128xf32>
    %177 = arith.mulf %165, %176 : vector<8x128xf32>
    %178 = arith.addf %174, %177 : vector<8x128xf32>
    %179 = math.tanh %178 : vector<8x128xf32>
    %180 = arith.subf %147, %179 : vector<8x128xf32>
    %181 = arith.mulf %173, %180 : vector<8x128xf32>
    %182 = arith.addf %179, %181 : vector<8x128xf32>
    %c8_i32_49 = arith.constant 8 : i32
    %183 = arith.muli %c4_i32, %c8_i32_49 : i32
    %c0_i32_50 = arith.constant 0 : i32
    %184 = arith.addi %c0_i32_50, %183 : i32
    %185 = tpu.assume_multiple %184, 8 : i32
    %186 = arith.index_cast %185 : i32 to index
    %c0_51 = arith.constant 0 : index
    %187 = vector.load %arg16[%186, %c0_51] : memref<64x128xf32, #tpu.memory_space<vmem>>, vector<8x128xf32>
    tpu.vector_store %arg16[%186, %c0_51], %182 {strides = array<i32>} : memref<64x128xf32, #tpu.memory_space<vmem>>, vector<8x128xf32>,
    %c5_i32 = arith.constant 5 : i32
    %c8_i32_52 = arith.constant 8 : i32
    %188 = arith.muli %c5_i32, %c8_i32_52 : i32
    %189 = tpu.assume_multiple %188, 8 : i32
    %190 = arith.index_cast %189 : i32 to index
    %c0_53 = arith.constant 0 : index
    %191 = vector.load %arg15[%190, %c0_53] : memref<64x384xf32, #tpu.memory_space<vmem>>, vector<8x384xf32>
    %cst_54 = arith.constant dense<0.000000e+00> : vector<8x384xf32>
    %192 = tpu.matmul %182, %0, %cst_54 {dimension_numbers = #tpu.dot_dimension_numbers<[1], [0], [0], [1], [0, 0, 1, 1], [], []>} : vector<8x128xf32>, vector<128x384xf32>, vector<8x384xf32> -> vector<8x384xf32>
    %193 = vector.extract_strided_slice %191 {offsets = [0, 0], sizes = [8, 128], strides = [1, 1]} : vector<8x384xf32> to vector<8x128xf32>
    %194 = vector.extract_strided_slice %192 {offsets = [0, 0], sizes = [8, 128], strides = [1, 1]} : vector<8x384xf32> to vector<8x128xf32>
    %195 = arith.addf %193, %194 : vector<8x128xf32>
    %196 = arith.negf %195 : vector<8x128xf32>
    %197 = math.exp %196 : vector<8x128xf32>
    %cst_55 = arith.constant 1.000000e+00 : f32
    %198 = vector.broadcast %cst_55 : f32 to vector<8x128xf32>
    %199 = arith.addf %198, %197 : vector<8x128xf32>
    %200 = arith.divf %198, %199 : vector<8x128xf32>
    %201 = vector.extract_strided_slice %191 {offsets = [0, 128], sizes = [8, 128], strides = [1, 1]} : vector<8x384xf32> to vector<8x128xf32>
    %202 = vector.extract_strided_slice %192 {offsets = [0, 128], sizes = [8, 128], strides = [1, 1]} : vector<8x384xf32> to vector<8x128xf32>
    %203 = arith.addf %201, %202 : vector<8x128xf32>
    %204 = arith.negf %203 : vector<8x128xf32>
    %205 = math.exp %204 : vector<8x128xf32>
    %cst_56 = arith.constant 1.000000e+00 : f32
    %206 = vector.broadcast %cst_56 : f32 to vector<8x128xf32>
    %207 = arith.addf %206, %205 : vector<8x128xf32>
    %208 = arith.divf %206, %207 : vector<8x128xf32>
    %209 = vector.extract_strided_slice %191 {offsets = [0, 256], sizes = [8, 128], strides = [1, 1]} : vector<8x384xf32> to vector<8x128xf32>
    %210 = vector.extract_strided_slice %192 {offsets = [0, 256], sizes = [8, 128], strides = [1, 1]} : vector<8x384xf32> to vector<8x128xf32>
    %211 = arith.addf %210, %3 : vector<8x128xf32>
    %212 = arith.mulf %200, %211 : vector<8x128xf32>
    %213 = arith.addf %209, %212 : vector<8x128xf32>
    %214 = math.tanh %213 : vector<8x128xf32>
    %215 = arith.subf %182, %214 : vector<8x128xf32>
    %216 = arith.mulf %208, %215 : vector<8x128xf32>
    %217 = arith.addf %214, %216 : vector<8x128xf32>
    %c8_i32_57 = arith.constant 8 : i32
    %218 = arith.muli %c5_i32, %c8_i32_57 : i32
    %c0_i32_58 = arith.constant 0 : i32
    %219 = arith.addi %c0_i32_58, %218 : i32
    %220 = tpu.assume_multiple %219, 8 : i32
    %221 = arith.index_cast %220 : i32 to index
    %c0_59 = arith.constant 0 : index
    %222 = vector.load %arg16[%221, %c0_59] : memref<64x128xf32, #tpu.memory_space<vmem>>, vector<8x128xf32>
    tpu.vector_store %arg16[%221, %c0_59], %217 {strides = array<i32>} : memref<64x128xf32, #tpu.memory_space<vmem>>, vector<8x128xf32>,
    %c6_i32 = arith.constant 6 : i32
    %c8_i32_60 = arith.constant 8 : i32
    %223 = arith.muli %c6_i32, %c8_i32_60 : i32
    %224 = tpu.assume_multiple %223, 8 : i32
    %225 = arith.index_cast %224 : i32 to index
    %c0_61 = arith.constant 0 : index
    %226 = vector.load %arg15[%225, %c0_61] : memref<64x384xf32, #tpu.memory_space<vmem>>, vector<8x384xf32>
    %cst_62 = arith.constant dense<0.000000e+00> : vector<8x384xf32>
    %227 = tpu.matmul %217, %0, %cst_62 {dimension_numbers = #tpu.dot_dimension_numbers<[1], [0], [0], [1], [0, 0, 1, 1], [], []>} : vector<8x128xf32>, vector<128x384xf32>, vector<8x384xf32> -> vector<8x384xf32>
    %228 = vector.extract_strided_slice %226 {offsets = [0, 0], sizes = [8, 128], strides = [1, 1]} : vector<8x384xf32> to vector<8x128xf32>
    %229 = vector.extract_strided_slice %227 {offsets = [0, 0], sizes = [8, 128], strides = [1, 1]} : vector<8x384xf32> to vector<8x128xf32>
    %230 = arith.addf %228, %229 : vector<8x128xf32>
    %231 = arith.negf %230 : vector<8x128xf32>
    %232 = math.exp %231 : vector<8x128xf32>
    %cst_63 = arith.constant 1.000000e+00 : f32
    %233 = vector.broadcast %cst_63 : f32 to vector<8x128xf32>
    %234 = arith.addf %233, %232 : vector<8x128xf32>
    %235 = arith.divf %233, %234 : vector<8x128xf32>
    %236 = vector.extract_strided_slice %226 {offsets = [0, 128], sizes = [8, 128], strides = [1, 1]} : vector<8x384xf32> to vector<8x128xf32>
    %237 = vector.extract_strided_slice %227 {offsets = [0, 128], sizes = [8, 128], strides = [1, 1]} : vector<8x384xf32> to vector<8x128xf32>
    %238 = arith.addf %236, %237 : vector<8x128xf32>
    %239 = arith.negf %238 : vector<8x128xf32>
    %240 = math.exp %239 : vector<8x128xf32>
    %cst_64 = arith.constant 1.000000e+00 : f32
    %241 = vector.broadcast %cst_64 : f32 to vector<8x128xf32>
    %242 = arith.addf %241, %240 : vector<8x128xf32>
    %243 = arith.divf %241, %242 : vector<8x128xf32>
    %244 = vector.extract_strided_slice %226 {offsets = [0, 256], sizes = [8, 128], strides = [1, 1]} : vector<8x384xf32> to vector<8x128xf32>
    %245 = vector.extract_strided_slice %227 {offsets = [0, 256], sizes = [8, 128], strides = [1, 1]} : vector<8x384xf32> to vector<8x128xf32>
    %246 = arith.addf %245, %3 : vector<8x128xf32>
    %247 = arith.mulf %235, %246 : vector<8x128xf32>
    %248 = arith.addf %244, %247 : vector<8x128xf32>
    %249 = math.tanh %248 : vector<8x128xf32>
    %250 = arith.subf %217, %249 : vector<8x128xf32>
    %251 = arith.mulf %243, %250 : vector<8x128xf32>
    %252 = arith.addf %249, %251 : vector<8x128xf32>
    %c8_i32_65 = arith.constant 8 : i32
    %253 = arith.muli %c6_i32, %c8_i32_65 : i32
    %c0_i32_66 = arith.constant 0 : i32
    %254 = arith.addi %c0_i32_66, %253 : i32
    %255 = tpu.assume_multiple %254, 8 : i32
    %256 = arith.index_cast %255 : i32 to index
    %c0_67 = arith.constant 0 : index
    %257 = vector.load %arg16[%256, %c0_67] : memref<64x128xf32, #tpu.memory_space<vmem>>, vector<8x128xf32>
    tpu.vector_store %arg16[%256, %c0_67], %252 {strides = array<i32>} : memref<64x128xf32, #tpu.memory_space<vmem>>, vector<8x128xf32>,
    %c7_i32 = arith.constant 7 : i32
    %c8_i32_68 = arith.constant 8 : i32
    %258 = arith.muli %c7_i32, %c8_i32_68 : i32
    %259 = tpu.assume_multiple %258, 8 : i32
    %260 = arith.index_cast %259 : i32 to index
    %c0_69 = arith.constant 0 : index
    %261 = vector.load %arg15[%260, %c0_69] : memref<64x384xf32, #tpu.memory_space<vmem>>, vector<8x384xf32>
    %cst_70 = arith.constant dense<0.000000e+00> : vector<8x384xf32>
    %262 = tpu.matmul %252, %0, %cst_70 {dimension_numbers = #tpu.dot_dimension_numbers<[1], [0], [0], [1], [0, 0, 1, 1], [], []>} : vector<8x128xf32>, vector<128x384xf32>, vector<8x384xf32> -> vector<8x384xf32>
    %263 = vector.extract_strided_slice %261 {offsets = [0, 0], sizes = [8, 128], strides = [1, 1]} : vector<8x384xf32> to vector<8x128xf32>
    %264 = vector.extract_strided_slice %262 {offsets = [0, 0], sizes = [8, 128], strides = [1, 1]} : vector<8x384xf32> to vector<8x128xf32>
    %265 = arith.addf %263, %264 : vector<8x128xf32>
    %266 = arith.negf %265 : vector<8x128xf32>
    %267 = math.exp %266 : vector<8x128xf32>
    %cst_71 = arith.constant 1.000000e+00 : f32
    %268 = vector.broadcast %cst_71 : f32 to vector<8x128xf32>
    %269 = arith.addf %268, %267 : vector<8x128xf32>
    %270 = arith.divf %268, %269 : vector<8x128xf32>
    %271 = vector.extract_strided_slice %261 {offsets = [0, 128], sizes = [8, 128], strides = [1, 1]} : vector<8x384xf32> to vector<8x128xf32>
    %272 = vector.extract_strided_slice %262 {offsets = [0, 128], sizes = [8, 128], strides = [1, 1]} : vector<8x384xf32> to vector<8x128xf32>
    %273 = arith.addf %271, %272 : vector<8x128xf32>
    %274 = arith.negf %273 : vector<8x128xf32>
    %275 = math.exp %274 : vector<8x128xf32>
    %cst_72 = arith.constant 1.000000e+00 : f32
    %276 = vector.broadcast %cst_72 : f32 to vector<8x128xf32>
    %277 = arith.addf %276, %275 : vector<8x128xf32>
    %278 = arith.divf %276, %277 : vector<8x128xf32>
    %279 = vector.extract_strided_slice %261 {offsets = [0, 256], sizes = [8, 128], strides = [1, 1]} : vector<8x384xf32> to vector<8x128xf32>
    %280 = vector.extract_strided_slice %262 {offsets = [0, 256], sizes = [8, 128], strides = [1, 1]} : vector<8x384xf32> to vector<8x128xf32>
    %281 = arith.addf %280, %3 : vector<8x128xf32>
    %282 = arith.mulf %270, %281 : vector<8x128xf32>
    %283 = arith.addf %279, %282 : vector<8x128xf32>
    %284 = math.tanh %283 : vector<8x128xf32>
    %285 = arith.subf %252, %284 : vector<8x128xf32>
    %286 = arith.mulf %278, %285 : vector<8x128xf32>
    %287 = arith.addf %284, %286 : vector<8x128xf32>
    %c8_i32_73 = arith.constant 8 : i32
    %288 = arith.muli %c7_i32, %c8_i32_73 : i32
    %c0_i32_74 = arith.constant 0 : i32
    %289 = arith.addi %c0_i32_74, %288 : i32
    %290 = tpu.assume_multiple %289, 8 : i32
    %291 = arith.index_cast %290 : i32 to index
    %c0_75 = arith.constant 0 : index
    %292 = vector.load %arg16[%291, %c0_75] : memref<64x128xf32, #tpu.memory_space<vmem>>, vector<8x128xf32>
    tpu.vector_store %arg16[%291, %c0_75], %287 {strides = array<i32>} : memref<64x128xf32, #tpu.memory_space<vmem>>, vector<8x128xf32>,
    %c8_i32_76 = arith.constant 8 : i32
    %c0_77 = arith.constant 0 : index
    %c0_78 = arith.constant 0 : index
    %293 = vector.load %arg13[%c0_77, %c0_78] : memref<8x128xf32, #tpu.memory_space<vmem>>, vector<8x128xf32>
    tpu.vector_store %arg13[%c0_77, %c0_78], %287 {strides = array<i32>} : memref<8x128xf32, #tpu.memory_space<vmem>>, vector<8x128xf32>,
    %c0_79 = arith.constant 0 : index
    %c0_80 = arith.constant 0 : index
    %294 = vector.load %arg7[%c0_79, %c0_80] : memref<128x384xf32, #tpu.memory_space<vmem>>, vector<128x384xf32>
    %c0_81 = arith.constant 0 : index
    %c0_82 = arith.constant 0 : index
    %295 = vector.load %arg9[%c0_81, %c0_82] : memref<1x128xf32, #tpu.memory_space<vmem>>, vector<1x128xf32>
    %296 = vector.shape_cast %295 : vector<1x128xf32> to vector<1x128xf32>
    %297 = vector.broadcast %296 : vector<1x128xf32> to vector<8x128xf32>
    %cst_83 = arith.constant 0.000000e+00 : f32
    %298 = vector.broadcast %cst_83 : f32 to vector<8x128xf32>
    %c0_84 = arith.constant 0 : index
    %c0_85 = arith.constant 0 : index
    %299 = vector.load %arg16[%c0_84, %c0_85] : memref<64x128xf32, #tpu.memory_space<vmem>>, vector<64x128xf32>
    %c0_86 = arith.constant 0 : index
    %c0_87 = arith.constant 0 : index
    %300 = vector.load %arg6[%c0_86, %c0_87] : memref<128x384xf32, #tpu.memory_space<vmem>>, vector<128x384xf32>
    %cst_88 = arith.constant dense<0.000000e+00> : vector<64x384xf32>
    %301 = tpu.matmul %299, %300, %cst_88 {dimension_numbers = #tpu.dot_dimension_numbers<[1], [0], [0], [1], [0, 0, 1, 1], [], []>} : vector<64x128xf32>, vector<128x384xf32>, vector<64x384xf32> -> vector<64x384xf32>
    %c0_89 = arith.constant 0 : index
    %c0_90 = arith.constant 0 : index
    %302 = vector.load %arg8[%c0_89, %c0_90] : memref<1x384xf32, #tpu.memory_space<vmem>>, vector<1x384xf32>
    %303 = vector.broadcast %302 : vector<1x384xf32> to vector<64x384xf32>
    %304 = arith.addf %301, %303 : vector<64x384xf32>
    %c0_91 = arith.constant 0 : index
    %c0_92 = arith.constant 0 : index
    %305 = vector.load %arg15[%c0_91, %c0_92] : memref<64x384xf32, #tpu.memory_space<vmem>>, vector<64x384xf32>
    tpu.vector_store %arg15[%c0_91, %c0_92], %304 {strides = array<i32>} : memref<64x384xf32, #tpu.memory_space<vmem>>, vector<64x384xf32>,
    %c0_i32_93 = arith.constant 0 : i32
    %c8_i32_94 = arith.constant 8 : i32
    %306 = arith.muli %c0_i32_93, %c8_i32_94 : i32
    %307 = tpu.assume_multiple %306, 8 : i32
    %308 = arith.index_cast %307 : i32 to index
    %c0_95 = arith.constant 0 : index
    %309 = vector.load %arg15[%308, %c0_95] : memref<64x384xf32, #tpu.memory_space<vmem>>, vector<8x384xf32>
    %cst_96 = arith.constant dense<0.000000e+00> : vector<8x384xf32>
    %310 = tpu.matmul %298, %294, %cst_96 {dimension_numbers = #tpu.dot_dimension_numbers<[1], [0], [0], [1], [0, 0, 1, 1], [], []>} : vector<8x128xf32>, vector<128x384xf32>, vector<8x384xf32> -> vector<8x384xf32>
    %311 = vector.extract_strided_slice %309 {offsets = [0, 0], sizes = [8, 128], strides = [1, 1]} : vector<8x384xf32> to vector<8x128xf32>
    %312 = vector.extract_strided_slice %310 {offsets = [0, 0], sizes = [8, 128], strides = [1, 1]} : vector<8x384xf32> to vector<8x128xf32>
    %313 = arith.addf %311, %312 : vector<8x128xf32>
    %314 = arith.negf %313 : vector<8x128xf32>
    %315 = math.exp %314 : vector<8x128xf32>
    %cst_97 = arith.constant 1.000000e+00 : f32
    %316 = vector.broadcast %cst_97 : f32 to vector<8x128xf32>
    %317 = arith.addf %316, %315 : vector<8x128xf32>
    %318 = arith.divf %316, %317 : vector<8x128xf32>
    %319 = vector.extract_strided_slice %309 {offsets = [0, 128], sizes = [8, 128], strides = [1, 1]} : vector<8x384xf32> to vector<8x128xf32>
    %320 = vector.extract_strided_slice %310 {offsets = [0, 128], sizes = [8, 128], strides = [1, 1]} : vector<8x384xf32> to vector<8x128xf32>
    %321 = arith.addf %319, %320 : vector<8x128xf32>
    %322 = arith.negf %321 : vector<8x128xf32>
    %323 = math.exp %322 : vector<8x128xf32>
    %cst_98 = arith.constant 1.000000e+00 : f32
    %324 = vector.broadcast %cst_98 : f32 to vector<8x128xf32>
    %325 = arith.addf %324, %323 : vector<8x128xf32>
    %326 = arith.divf %324, %325 : vector<8x128xf32>
    %327 = vector.extract_strided_slice %309 {offsets = [0, 256], sizes = [8, 128], strides = [1, 1]} : vector<8x384xf32> to vector<8x128xf32>
    %328 = vector.extract_strided_slice %310 {offsets = [0, 256], sizes = [8, 128], strides = [1, 1]} : vector<8x384xf32> to vector<8x128xf32>
    %329 = arith.addf %328, %297 : vector<8x128xf32>
    %330 = arith.mulf %318, %329 : vector<8x128xf32>
    %331 = arith.addf %327, %330 : vector<8x128xf32>
    %332 = math.tanh %331 : vector<8x128xf32>
    %333 = arith.subf %298, %332 : vector<8x128xf32>
    %334 = arith.mulf %326, %333 : vector<8x128xf32>
    %335 = arith.addf %332, %334 : vector<8x128xf32>
    %c0_i32_99 = arith.constant 0 : i32
    %336 = arith.addi %c0_i32_99, %c0_i32_93 : i32
    %337 = arith.index_cast %336 : i32 to index
    %c0_100 = arith.constant 0 : index
    %c0_101 = arith.constant 0 : index
    %338 = vector.load %arg12[%337, %c0_100, %c0_101] : memref<8x8x128xf32, #tpu.memory_space<vmem>>, vector<1x8x128xf32>
    %339 = vector.shape_cast %338 : vector<1x8x128xf32> to vector<8x128xf32>
    %340 = vector.shape_cast %335 : vector<8x128xf32> to vector<1x8x128xf32>
    tpu.vector_store %arg12[%337, %c0_100, %c0_101], %340 {strides = array<i32>} : memref<8x8x128xf32, #tpu.memory_space<vmem>>, vector<1x8x128xf32>,
    %c1_i32_102 = arith.constant 1 : i32
    %c8_i32_103 = arith.constant 8 : i32
    %341 = arith.muli %c1_i32_102, %c8_i32_103 : i32
    %342 = tpu.assume_multiple %341, 8 : i32
    %343 = arith.index_cast %342 : i32 to index
    %c0_104 = arith.constant 0 : index
    %344 = vector.load %arg15[%343, %c0_104] : memref<64x384xf32, #tpu.memory_space<vmem>>, vector<8x384xf32>
    %cst_105 = arith.constant dense<0.000000e+00> : vector<8x384xf32>
    %345 = tpu.matmul %335, %294, %cst_105 {dimension_numbers = #tpu.dot_dimension_numbers<[1], [0], [0], [1], [0, 0, 1, 1], [], []>} : vector<8x128xf32>, vector<128x384xf32>, vector<8x384xf32> -> vector<8x384xf32>
    %346 = vector.extract_strided_slice %344 {offsets = [0, 0], sizes = [8, 128], strides = [1, 1]} : vector<8x384xf32> to vector<8x128xf32>
    %347 = vector.extract_strided_slice %345 {offsets = [0, 0], sizes = [8, 128], strides = [1, 1]} : vector<8x384xf32> to vector<8x128xf32>
    %348 = arith.addf %346, %347 : vector<8x128xf32>
    %349 = arith.negf %348 : vector<8x128xf32>
    %350 = math.exp %349 : vector<8x128xf32>
    %cst_106 = arith.constant 1.000000e+00 : f32
    %351 = vector.broadcast %cst_106 : f32 to vector<8x128xf32>
    %352 = arith.addf %351, %350 : vector<8x128xf32>
    %353 = arith.divf %351, %352 : vector<8x128xf32>
    %354 = vector.extract_strided_slice %344 {offsets = [0, 128], sizes = [8, 128], strides = [1, 1]} : vector<8x384xf32> to vector<8x128xf32>
    %355 = vector.extract_strided_slice %345 {offsets = [0, 128], sizes = [8, 128], strides = [1, 1]} : vector<8x384xf32> to vector<8x128xf32>
    %356 = arith.addf %354, %355 : vector<8x128xf32>
    %357 = arith.negf %356 : vector<8x128xf32>
    %358 = math.exp %357 : vector<8x128xf32>
    %cst_107 = arith.constant 1.000000e+00 : f32
    %359 = vector.broadcast %cst_107 : f32 to vector<8x128xf32>
    %360 = arith.addf %359, %358 : vector<8x128xf32>
    %361 = arith.divf %359, %360 : vector<8x128xf32>
    %362 = vector.extract_strided_slice %344 {offsets = [0, 256], sizes = [8, 128], strides = [1, 1]} : vector<8x384xf32> to vector<8x128xf32>
    %363 = vector.extract_strided_slice %345 {offsets = [0, 256], sizes = [8, 128], strides = [1, 1]} : vector<8x384xf32> to vector<8x128xf32>
    %364 = arith.addf %363, %297 : vector<8x128xf32>
    %365 = arith.mulf %353, %364 : vector<8x128xf32>
    %366 = arith.addf %362, %365 : vector<8x128xf32>
    %367 = math.tanh %366 : vector<8x128xf32>
    %368 = arith.subf %335, %367 : vector<8x128xf32>
    %369 = arith.mulf %361, %368 : vector<8x128xf32>
    %370 = arith.addf %367, %369 : vector<8x128xf32>
    %c0_i32_108 = arith.constant 0 : i32
    %371 = arith.addi %c0_i32_108, %c1_i32_102 : i32
    %372 = arith.index_cast %371 : i32 to index
    %c0_109 = arith.constant 0 : index
    %c0_110 = arith.constant 0 : index
    %373 = vector.load %arg12[%372, %c0_109, %c0_110] : memref<8x8x128xf32, #tpu.memory_space<vmem>>, vector<1x8x128xf32>
    %374 = vector.shape_cast %373 : vector<1x8x128xf32> to vector<8x128xf32>
    %375 = vector.shape_cast %370 : vector<8x128xf32> to vector<1x8x128xf32>
    tpu.vector_store %arg12[%372, %c0_109, %c0_110], %375 {strides = array<i32>} : memref<8x8x128xf32, #tpu.memory_space<vmem>>, vector<1x8x128xf32>,
    %c2_i32_111 = arith.constant 2 : i32
    %c8_i32_112 = arith.constant 8 : i32
    %376 = arith.muli %c2_i32_111, %c8_i32_112 : i32
    %377 = tpu.assume_multiple %376, 8 : i32
    %378 = arith.index_cast %377 : i32 to index
    %c0_113 = arith.constant 0 : index
    %379 = vector.load %arg15[%378, %c0_113] : memref<64x384xf32, #tpu.memory_space<vmem>>, vector<8x384xf32>
    %cst_114 = arith.constant dense<0.000000e+00> : vector<8x384xf32>
    %380 = tpu.matmul %370, %294, %cst_114 {dimension_numbers = #tpu.dot_dimension_numbers<[1], [0], [0], [1], [0, 0, 1, 1], [], []>} : vector<8x128xf32>, vector<128x384xf32>, vector<8x384xf32> -> vector<8x384xf32>
    %381 = vector.extract_strided_slice %379 {offsets = [0, 0], sizes = [8, 128], strides = [1, 1]} : vector<8x384xf32> to vector<8x128xf32>
    %382 = vector.extract_strided_slice %380 {offsets = [0, 0], sizes = [8, 128], strides = [1, 1]} : vector<8x384xf32> to vector<8x128xf32>
    %383 = arith.addf %381, %382 : vector<8x128xf32>
    %384 = arith.negf %383 : vector<8x128xf32>
    %385 = math.exp %384 : vector<8x128xf32>
    %cst_115 = arith.constant 1.000000e+00 : f32
    %386 = vector.broadcast %cst_115 : f32 to vector<8x128xf32>
    %387 = arith.addf %386, %385 : vector<8x128xf32>
    %388 = arith.divf %386, %387 : vector<8x128xf32>
    %389 = vector.extract_strided_slice %379 {offsets = [0, 128], sizes = [8, 128], strides = [1, 1]} : vector<8x384xf32> to vector<8x128xf32>
    %390 = vector.extract_strided_slice %380 {offsets = [0, 128], sizes = [8, 128], strides = [1, 1]} : vector<8x384xf32> to vector<8x128xf32>
    %391 = arith.addf %389, %390 : vector<8x128xf32>
    %392 = arith.negf %391 : vector<8x128xf32>
    %393 = math.exp %392 : vector<8x128xf32>
    %cst_116 = arith.constant 1.000000e+00 : f32
    %394 = vector.broadcast %cst_116 : f32 to vector<8x128xf32>
    %395 = arith.addf %394, %393 : vector<8x128xf32>
    %396 = arith.divf %394, %395 : vector<8x128xf32>
    %397 = vector.extract_strided_slice %379 {offsets = [0, 256], sizes = [8, 128], strides = [1, 1]} : vector<8x384xf32> to vector<8x128xf32>
    %398 = vector.extract_strided_slice %380 {offsets = [0, 256], sizes = [8, 128], strides = [1, 1]} : vector<8x384xf32> to vector<8x128xf32>
    %399 = arith.addf %398, %297 : vector<8x128xf32>
    %400 = arith.mulf %388, %399 : vector<8x128xf32>
    %401 = arith.addf %397, %400 : vector<8x128xf32>
    %402 = math.tanh %401 : vector<8x128xf32>
    %403 = arith.subf %370, %402 : vector<8x128xf32>
    %404 = arith.mulf %396, %403 : vector<8x128xf32>
    %405 = arith.addf %402, %404 : vector<8x128xf32>
    %c0_i32_117 = arith.constant 0 : i32
    %406 = arith.addi %c0_i32_117, %c2_i32_111 : i32
    %407 = arith.index_cast %406 : i32 to index
    %c0_118 = arith.constant 0 : index
    %c0_119 = arith.constant 0 : index
    %408 = vector.load %arg12[%407, %c0_118, %c0_119] : memref<8x8x128xf32, #tpu.memory_space<vmem>>, vector<1x8x128xf32>
    %409 = vector.shape_cast %408 : vector<1x8x128xf32> to vector<8x128xf32>
    %410 = vector.shape_cast %405 : vector<8x128xf32> to vector<1x8x128xf32>
    tpu.vector_store %arg12[%407, %c0_118, %c0_119], %410 {strides = array<i32>} : memref<8x8x128xf32, #tpu.memory_space<vmem>>, vector<1x8x128xf32>,
    %c3_i32_120 = arith.constant 3 : i32
    %c8_i32_121 = arith.constant 8 : i32
    %411 = arith.muli %c3_i32_120, %c8_i32_121 : i32
    %412 = tpu.assume_multiple %411, 8 : i32
    %413 = arith.index_cast %412 : i32 to index
    %c0_122 = arith.constant 0 : index
    %414 = vector.load %arg15[%413, %c0_122] : memref<64x384xf32, #tpu.memory_space<vmem>>, vector<8x384xf32>
    %cst_123 = arith.constant dense<0.000000e+00> : vector<8x384xf32>
    %415 = tpu.matmul %405, %294, %cst_123 {dimension_numbers = #tpu.dot_dimension_numbers<[1], [0], [0], [1], [0, 0, 1, 1], [], []>} : vector<8x128xf32>, vector<128x384xf32>, vector<8x384xf32> -> vector<8x384xf32>
    %416 = vector.extract_strided_slice %414 {offsets = [0, 0], sizes = [8, 128], strides = [1, 1]} : vector<8x384xf32> to vector<8x128xf32>
    %417 = vector.extract_strided_slice %415 {offsets = [0, 0], sizes = [8, 128], strides = [1, 1]} : vector<8x384xf32> to vector<8x128xf32>
    %418 = arith.addf %416, %417 : vector<8x128xf32>
    %419 = arith.negf %418 : vector<8x128xf32>
    %420 = math.exp %419 : vector<8x128xf32>
    %cst_124 = arith.constant 1.000000e+00 : f32
    %421 = vector.broadcast %cst_124 : f32 to vector<8x128xf32>
    %422 = arith.addf %421, %420 : vector<8x128xf32>
    %423 = arith.divf %421, %422 : vector<8x128xf32>
    %424 = vector.extract_strided_slice %414 {offsets = [0, 128], sizes = [8, 128], strides = [1, 1]} : vector<8x384xf32> to vector<8x128xf32>
    %425 = vector.extract_strided_slice %415 {offsets = [0, 128], sizes = [8, 128], strides = [1, 1]} : vector<8x384xf32> to vector<8x128xf32>
    %426 = arith.addf %424, %425 : vector<8x128xf32>
    %427 = arith.negf %426 : vector<8x128xf32>
    %428 = math.exp %427 : vector<8x128xf32>
    %cst_125 = arith.constant 1.000000e+00 : f32
    %429 = vector.broadcast %cst_125 : f32 to vector<8x128xf32>
    %430 = arith.addf %429, %428 : vector<8x128xf32>
    %431 = arith.divf %429, %430 : vector<8x128xf32>
    %432 = vector.extract_strided_slice %414 {offsets = [0, 256], sizes = [8, 128], strides = [1, 1]} : vector<8x384xf32> to vector<8x128xf32>
    %433 = vector.extract_strided_slice %415 {offsets = [0, 256], sizes = [8, 128], strides = [1, 1]} : vector<8x384xf32> to vector<8x128xf32>
    %434 = arith.addf %433, %297 : vector<8x128xf32>
    %435 = arith.mulf %423, %434 : vector<8x128xf32>
    %436 = arith.addf %432, %435 : vector<8x128xf32>
    %437 = math.tanh %436 : vector<8x128xf32>
    %438 = arith.subf %405, %437 : vector<8x128xf32>
    %439 = arith.mulf %431, %438 : vector<8x128xf32>
    %440 = arith.addf %437, %439 : vector<8x128xf32>
    %c0_i32_126 = arith.constant 0 : i32
    %441 = arith.addi %c0_i32_126, %c3_i32_120 : i32
    %442 = arith.index_cast %441 : i32 to index
    %c0_127 = arith.constant 0 : index
    %c0_128 = arith.constant 0 : index
    %443 = vector.load %arg12[%442, %c0_127, %c0_128] : memref<8x8x128xf32, #tpu.memory_space<vmem>>, vector<1x8x128xf32>
    %444 = vector.shape_cast %443 : vector<1x8x128xf32> to vector<8x128xf32>
    %445 = vector.shape_cast %440 : vector<8x128xf32> to vector<1x8x128xf32>
    tpu.vector_store %arg12[%442, %c0_127, %c0_128], %445 {strides = array<i32>} : memref<8x8x128xf32, #tpu.memory_space<vmem>>, vector<1x8x128xf32>,
    %c4_i32_129 = arith.constant 4 : i32
    %c8_i32_130 = arith.constant 8 : i32
    %446 = arith.muli %c4_i32_129, %c8_i32_130 : i32
    %447 = tpu.assume_multiple %446, 8 : i32
    %448 = arith.index_cast %447 : i32 to index
    %c0_131 = arith.constant 0 : index
    %449 = vector.load %arg15[%448, %c0_131] : memref<64x384xf32, #tpu.memory_space<vmem>>, vector<8x384xf32>
    %cst_132 = arith.constant dense<0.000000e+00> : vector<8x384xf32>
    %450 = tpu.matmul %440, %294, %cst_132 {dimension_numbers = #tpu.dot_dimension_numbers<[1], [0], [0], [1], [0, 0, 1, 1], [], []>} : vector<8x128xf32>, vector<128x384xf32>, vector<8x384xf32> -> vector<8x384xf32>
    %451 = vector.extract_strided_slice %449 {offsets = [0, 0], sizes = [8, 128], strides = [1, 1]} : vector<8x384xf32> to vector<8x128xf32>
    %452 = vector.extract_strided_slice %450 {offsets = [0, 0], sizes = [8, 128], strides = [1, 1]} : vector<8x384xf32> to vector<8x128xf32>
    %453 = arith.addf %451, %452 : vector<8x128xf32>
    %454 = arith.negf %453 : vector<8x128xf32>
    %455 = math.exp %454 : vector<8x128xf32>
    %cst_133 = arith.constant 1.000000e+00 : f32
    %456 = vector.broadcast %cst_133 : f32 to vector<8x128xf32>
    %457 = arith.addf %456, %455 : vector<8x128xf32>
    %458 = arith.divf %456, %457 : vector<8x128xf32>
    %459 = vector.extract_strided_slice %449 {offsets = [0, 128], sizes = [8, 128], strides = [1, 1]} : vector<8x384xf32> to vector<8x128xf32>
    %460 = vector.extract_strided_slice %450 {offsets = [0, 128], sizes = [8, 128], strides = [1, 1]} : vector<8x384xf32> to vector<8x128xf32>
    %461 = arith.addf %459, %460 : vector<8x128xf32>
    %462 = arith.negf %461 : vector<8x128xf32>
    %463 = math.exp %462 : vector<8x128xf32>
    %cst_134 = arith.constant 1.000000e+00 : f32
    %464 = vector.broadcast %cst_134 : f32 to vector<8x128xf32>
    %465 = arith.addf %464, %463 : vector<8x128xf32>
    %466 = arith.divf %464, %465 : vector<8x128xf32>
    %467 = vector.extract_strided_slice %449 {offsets = [0, 256], sizes = [8, 128], strides = [1, 1]} : vector<8x384xf32> to vector<8x128xf32>
    %468 = vector.extract_strided_slice %450 {offsets = [0, 256], sizes = [8, 128], strides = [1, 1]} : vector<8x384xf32> to vector<8x128xf32>
    %469 = arith.addf %468, %297 : vector<8x128xf32>
    %470 = arith.mulf %458, %469 : vector<8x128xf32>
    %471 = arith.addf %467, %470 : vector<8x128xf32>
    %472 = math.tanh %471 : vector<8x128xf32>
    %473 = arith.subf %440, %472 : vector<8x128xf32>
    %474 = arith.mulf %466, %473 : vector<8x128xf32>
    %475 = arith.addf %472, %474 : vector<8x128xf32>
    %c0_i32_135 = arith.constant 0 : i32
    %476 = arith.addi %c0_i32_135, %c4_i32_129 : i32
    %477 = arith.index_cast %476 : i32 to index
    %c0_136 = arith.constant 0 : index
    %c0_137 = arith.constant 0 : index
    %478 = vector.load %arg12[%477, %c0_136, %c0_137] : memref<8x8x128xf32, #tpu.memory_space<vmem>>, vector<1x8x128xf32>
    %479 = vector.shape_cast %478 : vector<1x8x128xf32> to vector<8x128xf32>
    %480 = vector.shape_cast %475 : vector<8x128xf32> to vector<1x8x128xf32>
    tpu.vector_store %arg12[%477, %c0_136, %c0_137], %480 {strides = array<i32>} : memref<8x8x128xf32, #tpu.memory_space<vmem>>, vector<1x8x128xf32>,
    %c5_i32_138 = arith.constant 5 : i32
    %c8_i32_139 = arith.constant 8 : i32
    %481 = arith.muli %c5_i32_138, %c8_i32_139 : i32
    %482 = tpu.assume_multiple %481, 8 : i32
    %483 = arith.index_cast %482 : i32 to index
    %c0_140 = arith.constant 0 : index
    %484 = vector.load %arg15[%483, %c0_140] : memref<64x384xf32, #tpu.memory_space<vmem>>, vector<8x384xf32>
    %cst_141 = arith.constant dense<0.000000e+00> : vector<8x384xf32>
    %485 = tpu.matmul %475, %294, %cst_141 {dimension_numbers = #tpu.dot_dimension_numbers<[1], [0], [0], [1], [0, 0, 1, 1], [], []>} : vector<8x128xf32>, vector<128x384xf32>, vector<8x384xf32> -> vector<8x384xf32>
    %486 = vector.extract_strided_slice %484 {offsets = [0, 0], sizes = [8, 128], strides = [1, 1]} : vector<8x384xf32> to vector<8x128xf32>
    %487 = vector.extract_strided_slice %485 {offsets = [0, 0], sizes = [8, 128], strides = [1, 1]} : vector<8x384xf32> to vector<8x128xf32>
    %488 = arith.addf %486, %487 : vector<8x128xf32>
    %489 = arith.negf %488 : vector<8x128xf32>
    %490 = math.exp %489 : vector<8x128xf32>
    %cst_142 = arith.constant 1.000000e+00 : f32
    %491 = vector.broadcast %cst_142 : f32 to vector<8x128xf32>
    %492 = arith.addf %491, %490 : vector<8x128xf32>
    %493 = arith.divf %491, %492 : vector<8x128xf32>
    %494 = vector.extract_strided_slice %484 {offsets = [0, 128], sizes = [8, 128], strides = [1, 1]} : vector<8x384xf32> to vector<8x128xf32>
    %495 = vector.extract_strided_slice %485 {offsets = [0, 128], sizes = [8, 128], strides = [1, 1]} : vector<8x384xf32> to vector<8x128xf32>
    %496 = arith.addf %494, %495 : vector<8x128xf32>
    %497 = arith.negf %496 : vector<8x128xf32>
    %498 = math.exp %497 : vector<8x128xf32>
    %cst_143 = arith.constant 1.000000e+00 : f32
    %499 = vector.broadcast %cst_143 : f32 to vector<8x128xf32>
    %500 = arith.addf %499, %498 : vector<8x128xf32>
    %501 = arith.divf %499, %500 : vector<8x128xf32>
    %502 = vector.extract_strided_slice %484 {offsets = [0, 256], sizes = [8, 128], strides = [1, 1]} : vector<8x384xf32> to vector<8x128xf32>
    %503 = vector.extract_strided_slice %485 {offsets = [0, 256], sizes = [8, 128], strides = [1, 1]} : vector<8x384xf32> to vector<8x128xf32>
    %504 = arith.addf %503, %297 : vector<8x128xf32>
    %505 = arith.mulf %493, %504 : vector<8x128xf32>
    %506 = arith.addf %502, %505 : vector<8x128xf32>
    %507 = math.tanh %506 : vector<8x128xf32>
    %508 = arith.subf %475, %507 : vector<8x128xf32>
    %509 = arith.mulf %501, %508 : vector<8x128xf32>
    %510 = arith.addf %507, %509 : vector<8x128xf32>
    %c0_i32_144 = arith.constant 0 : i32
    %511 = arith.addi %c0_i32_144, %c5_i32_138 : i32
    %512 = arith.index_cast %511 : i32 to index
    %c0_145 = arith.constant 0 : index
    %c0_146 = arith.constant 0 : index
    %513 = vector.load %arg12[%512, %c0_145, %c0_146] : memref<8x8x128xf32, #tpu.memory_space<vmem>>, vector<1x8x128xf32>
    %514 = vector.shape_cast %513 : vector<1x8x128xf32> to vector<8x128xf32>
    %515 = vector.shape_cast %510 : vector<8x128xf32> to vector<1x8x128xf32>
    tpu.vector_store %arg12[%512, %c0_145, %c0_146], %515 {strides = array<i32>} : memref<8x8x128xf32, #tpu.memory_space<vmem>>, vector<1x8x128xf32>,
    %c6_i32_147 = arith.constant 6 : i32
    %c8_i32_148 = arith.constant 8 : i32
    %516 = arith.muli %c6_i32_147, %c8_i32_148 : i32
    %517 = tpu.assume_multiple %516, 8 : i32
    %518 = arith.index_cast %517 : i32 to index
    %c0_149 = arith.constant 0 : index
    %519 = vector.load %arg15[%518, %c0_149] : memref<64x384xf32, #tpu.memory_space<vmem>>, vector<8x384xf32>
    %cst_150 = arith.constant dense<0.000000e+00> : vector<8x384xf32>
    %520 = tpu.matmul %510, %294, %cst_150 {dimension_numbers = #tpu.dot_dimension_numbers<[1], [0], [0], [1], [0, 0, 1, 1], [], []>} : vector<8x128xf32>, vector<128x384xf32>, vector<8x384xf32> -> vector<8x384xf32>
    %521 = vector.extract_strided_slice %519 {offsets = [0, 0], sizes = [8, 128], strides = [1, 1]} : vector<8x384xf32> to vector<8x128xf32>
    %522 = vector.extract_strided_slice %520 {offsets = [0, 0], sizes = [8, 128], strides = [1, 1]} : vector<8x384xf32> to vector<8x128xf32>
    %523 = arith.addf %521, %522 : vector<8x128xf32>
    %524 = arith.negf %523 : vector<8x128xf32>
    %525 = math.exp %524 : vector<8x128xf32>
    %cst_151 = arith.constant 1.000000e+00 : f32
    %526 = vector.broadcast %cst_151 : f32 to vector<8x128xf32>
    %527 = arith.addf %526, %525 : vector<8x128xf32>
    %528 = arith.divf %526, %527 : vector<8x128xf32>
    %529 = vector.extract_strided_slice %519 {offsets = [0, 128], sizes = [8, 128], strides = [1, 1]} : vector<8x384xf32> to vector<8x128xf32>
    %530 = vector.extract_strided_slice %520 {offsets = [0, 128], sizes = [8, 128], strides = [1, 1]} : vector<8x384xf32> to vector<8x128xf32>
    %531 = arith.addf %529, %530 : vector<8x128xf32>
    %532 = arith.negf %531 : vector<8x128xf32>
    %533 = math.exp %532 : vector<8x128xf32>
    %cst_152 = arith.constant 1.000000e+00 : f32
    %534 = vector.broadcast %cst_152 : f32 to vector<8x128xf32>
    %535 = arith.addf %534, %533 : vector<8x128xf32>
    %536 = arith.divf %534, %535 : vector<8x128xf32>
    %537 = vector.extract_strided_slice %519 {offsets = [0, 256], sizes = [8, 128], strides = [1, 1]} : vector<8x384xf32> to vector<8x128xf32>
    %538 = vector.extract_strided_slice %520 {offsets = [0, 256], sizes = [8, 128], strides = [1, 1]} : vector<8x384xf32> to vector<8x128xf32>
    %539 = arith.addf %538, %297 : vector<8x128xf32>
    %540 = arith.mulf %528, %539 : vector<8x128xf32>
    %541 = arith.addf %537, %540 : vector<8x128xf32>
    %542 = math.tanh %541 : vector<8x128xf32>
    %543 = arith.subf %510, %542 : vector<8x128xf32>
    %544 = arith.mulf %536, %543 : vector<8x128xf32>
    %545 = arith.addf %542, %544 : vector<8x128xf32>
    %c0_i32_153 = arith.constant 0 : i32
    %546 = arith.addi %c0_i32_153, %c6_i32_147 : i32
    %547 = arith.index_cast %546 : i32 to index
    %c0_154 = arith.constant 0 : index
    %c0_155 = arith.constant 0 : index
    %548 = vector.load %arg12[%547, %c0_154, %c0_155] : memref<8x8x128xf32, #tpu.memory_space<vmem>>, vector<1x8x128xf32>
    %549 = vector.shape_cast %548 : vector<1x8x128xf32> to vector<8x128xf32>
    %550 = vector.shape_cast %545 : vector<8x128xf32> to vector<1x8x128xf32>
    tpu.vector_store %arg12[%547, %c0_154, %c0_155], %550 {strides = array<i32>} : memref<8x8x128xf32, #tpu.memory_space<vmem>>, vector<1x8x128xf32>,
    %c7_i32_156 = arith.constant 7 : i32
    %c8_i32_157 = arith.constant 8 : i32
    %551 = arith.muli %c7_i32_156, %c8_i32_157 : i32
    %552 = tpu.assume_multiple %551, 8 : i32
    %553 = arith.index_cast %552 : i32 to index
    %c0_158 = arith.constant 0 : index
    %554 = vector.load %arg15[%553, %c0_158] : memref<64x384xf32, #tpu.memory_space<vmem>>, vector<8x384xf32>
    %cst_159 = arith.constant dense<0.000000e+00> : vector<8x384xf32>
    %555 = tpu.matmul %545, %294, %cst_159 {dimension_numbers = #tpu.dot_dimension_numbers<[1], [0], [0], [1], [0, 0, 1, 1], [], []>} : vector<8x128xf32>, vector<128x384xf32>, vector<8x384xf32> -> vector<8x384xf32>
    %556 = vector.extract_strided_slice %554 {offsets = [0, 0], sizes = [8, 128], strides = [1, 1]} : vector<8x384xf32> to vector<8x128xf32>
    %557 = vector.extract_strided_slice %555 {offsets = [0, 0], sizes = [8, 128], strides = [1, 1]} : vector<8x384xf32> to vector<8x128xf32>
    %558 = arith.addf %556, %557 : vector<8x128xf32>
    %559 = arith.negf %558 : vector<8x128xf32>
    %560 = math.exp %559 : vector<8x128xf32>
    %cst_160 = arith.constant 1.000000e+00 : f32
    %561 = vector.broadcast %cst_160 : f32 to vector<8x128xf32>
    %562 = arith.addf %561, %560 : vector<8x128xf32>
    %563 = arith.divf %561, %562 : vector<8x128xf32>
    %564 = vector.extract_strided_slice %554 {offsets = [0, 128], sizes = [8, 128], strides = [1, 1]} : vector<8x384xf32> to vector<8x128xf32>
    %565 = vector.extract_strided_slice %555 {offsets = [0, 128], sizes = [8, 128], strides = [1, 1]} : vector<8x384xf32> to vector<8x128xf32>
    %566 = arith.addf %564, %565 : vector<8x128xf32>
    %567 = arith.negf %566 : vector<8x128xf32>
    %568 = math.exp %567 : vector<8x128xf32>
    %cst_161 = arith.constant 1.000000e+00 : f32
    %569 = vector.broadcast %cst_161 : f32 to vector<8x128xf32>
    %570 = arith.addf %569, %568 : vector<8x128xf32>
    %571 = arith.divf %569, %570 : vector<8x128xf32>
    %572 = vector.extract_strided_slice %554 {offsets = [0, 256], sizes = [8, 128], strides = [1, 1]} : vector<8x384xf32> to vector<8x128xf32>
    %573 = vector.extract_strided_slice %555 {offsets = [0, 256], sizes = [8, 128], strides = [1, 1]} : vector<8x384xf32> to vector<8x128xf32>
    %574 = arith.addf %573, %297 : vector<8x128xf32>
    %575 = arith.mulf %563, %574 : vector<8x128xf32>
    %576 = arith.addf %572, %575 : vector<8x128xf32>
    %577 = math.tanh %576 : vector<8x128xf32>
    %578 = arith.subf %545, %577 : vector<8x128xf32>
    %579 = arith.mulf %571, %578 : vector<8x128xf32>
    %580 = arith.addf %577, %579 : vector<8x128xf32>
    %c0_i32_162 = arith.constant 0 : i32
    %581 = arith.addi %c0_i32_162, %c7_i32_156 : i32
    %582 = arith.index_cast %581 : i32 to index
    %c0_163 = arith.constant 0 : index
    %c0_164 = arith.constant 0 : index
    %583 = vector.load %arg12[%582, %c0_163, %c0_164] : memref<8x8x128xf32, #tpu.memory_space<vmem>>, vector<1x8x128xf32>
    %584 = vector.shape_cast %583 : vector<1x8x128xf32> to vector<8x128xf32>
    %585 = vector.shape_cast %580 : vector<8x128xf32> to vector<1x8x128xf32>
    tpu.vector_store %arg12[%582, %c0_163, %c0_164], %585 {strides = array<i32>} : memref<8x8x128xf32, #tpu.memory_space<vmem>>, vector<1x8x128xf32>,
    %c8_i32_165 = arith.constant 8 : i32
    %c0_166 = arith.constant 0 : index
    %c0_167 = arith.constant 0 : index
    %586 = vector.load %arg10[%c0_166, %c0_167] : memref<1x128xf32, #tpu.memory_space<vmem>>, vector<1x128xf32>
    %587 = vector.broadcast %586 : vector<1x128xf32> to vector<8x128xf32>
    %588 = arith.mulf %580, %587 : vector<8x128xf32>
    %cst_168 = arith.constant dense<0.000000e+00> : vector<8xf32>
    %589 = vector.multi_reduction <add>, %588, %cst_168 [1] : vector<8x128xf32> to vector<8xf32>
    %590 = vector.shape_cast %589 : vector<8xf32> to vector<8x1xf32>
    %c0_169 = arith.constant 0 : index
    %c0_170 = arith.constant 0 : index
    %591 = vector.load %arg11[%c0_169, %c0_170] : memref<1x1xf32, #tpu.memory_space<vmem>>, vector<1x1xf32>
    %592 = vector.broadcast %591 : vector<1x1xf32> to vector<8x1xf32>
    %593 = arith.addf %590, %592 : vector<8x1xf32>
    %c0_171 = arith.constant 0 : index
    %c0_172 = arith.constant 0 : index
    %594 = vector.load %arg14[%c0_171, %c0_172] : memref<8x1xf32, #tpu.memory_space<vmem>>, vector<8x1xf32>
    tpu.vector_store %arg14[%c0_171, %c0_172], %593 {strides = array<i32>} : memref<8x1xf32, #tpu.memory_space<vmem>>, vector<8x1xf32>,
    return
  }
  func.func @transform_0(%arg0: i32) -> (i32, i32, i32) {
    %c0_i32 = arith.constant 0 : i32
    %c0_i32_0 = arith.constant 0 : i32
    %c0_i32_1 = arith.constant 0 : i32
    return %c0_i32, %arg0, %c0_i32_0 : i32, i32, i32
  }
  func.func @transform_1(%arg0: i32) -> (i32, i32) {
    %c0_i32 = arith.constant 0 : i32
    %c0_i32_0 = arith.constant 0 : i32
    %c0_i32_1 = arith.constant 0 : i32
    return %c0_i32, %c0_i32_0 : i32, i32
  }
  func.func @transform_2(%arg0: i32) -> (i32, i32) {
    %c0_i32 = arith.constant 0 : i32
    %c0_i32_0 = arith.constant 0 : i32
    %c0_i32_1 = arith.constant 0 : i32
    return %c0_i32, %c0_i32_0 : i32, i32
  }
  func.func @transform_3(%arg0: i32) -> (i32, i32) {
    %c0_i32 = arith.constant 0 : i32
    %c0_i32_0 = arith.constant 0 : i32
    %c0_i32_1 = arith.constant 0 : i32
    return %c0_i32, %c0_i32_0 : i32, i32
  }
  func.func @transform_4(%arg0: i32) -> (i32, i32) {
    %c0_i32 = arith.constant 0 : i32
    %c0_i32_0 = arith.constant 0 : i32
    %c0_i32_1 = arith.constant 0 : i32
    return %c0_i32, %c0_i32_0 : i32, i32
  }
  func.func @transform_5(%arg0: i32) -> (i32, i32) {
    %c0_i32 = arith.constant 0 : i32
    %c0_i32_0 = arith.constant 0 : i32
    %c0_i32_1 = arith.constant 0 : i32
    return %c0_i32, %c0_i32_0 : i32, i32
  }
  func.func @transform_6(%arg0: i32) -> (i32, i32) {
    %c0_i32 = arith.constant 0 : i32
    %c0_i32_0 = arith.constant 0 : i32
    %c0_i32_1 = arith.constant 0 : i32
    return %c0_i32, %c0_i32_0 : i32, i32
  }
  func.func @transform_7(%arg0: i32) -> (i32, i32) {
    %c0_i32 = arith.constant 0 : i32
    %c0_i32_0 = arith.constant 0 : i32
    %c0_i32_1 = arith.constant 0 : i32
    return %c0_i32, %c0_i32_0 : i32, i32
  }
  func.func @transform_8(%arg0: i32) -> (i32, i32) {
    %c0_i32 = arith.constant 0 : i32
    %c0_i32_0 = arith.constant 0 : i32
    %c0_i32_1 = arith.constant 0 : i32
    return %c0_i32, %c0_i32_0 : i32, i32
  }
  func.func @transform_9(%arg0: i32) -> (i32, i32) {
    %c0_i32 = arith.constant 0 : i32
    %c0_i32_0 = arith.constant 0 : i32
    %c0_i32_1 = arith.constant 0 : i32
    return %c0_i32, %c0_i32_0 : i32, i32
  }
  func.func @transform_10(%arg0: i32) -> (i32, i32) {
    %c0_i32 = arith.constant 0 : i32
    %c0_i32_0 = arith.constant 0 : i32
    %c0_i32_1 = arith.constant 0 : i32
    return %c0_i32, %c0_i32_0 : i32, i32
  }
  func.func @transform_11(%arg0: i32) -> (i32, i32, i32) {
    %c0_i32 = arith.constant 0 : i32
    %c0_i32_0 = arith.constant 0 : i32
    %c0_i32_1 = arith.constant 0 : i32
    return %c0_i32, %arg0, %c0_i32_0 : i32, i32, i32
  }
  func.func @transform_12(%arg0: i32) -> (i32, i32) {
    %c0_i32 = arith.constant 0 : i32
    %c0_i32_0 = arith.constant 0 : i32
    return %arg0, %c0_i32 : i32, i32
  }
  func.func @transform_13(%arg0: i32) -> (i32, i32) {
    %c0_i32 = arith.constant 0 : i32
    %c0_i32_0 = arith.constant 0 : i32
    return %arg0, %c0_i32 : i32, i32
  }
}

</mosaic_0001>

<llo_original>
// kernel: gru_model_forward.1
$region0: #{gru_model_forward.1}
  #allocation0 [shape = 'u32[]', space=smem, size = 0x4, offset = 0x4, fixed_abs, tag = 'smem constant byte address 0x4 - core index']
  #allocation1 [shape = 'u32[144,128]{1,0:T(1,128)}', space=vmem, size = 0x12000, scoped, tag = 'internal scratch']
  #allocation2 [shape = 'f32[64,384]{1,0:T(8,128)}', space=vmem, size = 0x18000, scoped, tag = 'scratch operand']
  #allocation3 [shape = 'f32[64,128]{1,0:T(8,128)}', space=vmem, size = 0x8000, scoped, tag = 'scratch operand']
  #allocation4 [shape = 'f32[1,1]{1,0:T(1,128)S(1)}', space=vmem, size = 0x200, scoped, tag = 'scoped memory for gru_model_forward.1']
  %s0 = inlined_call_operand.vmem [shape: f32[8,8,4], index: 0, kind: input, shape index: {}]
  %s1 = inlined_call_operand.vmem [shape: f32[4,384], index: 1, kind: input, shape index: {}]
  %s2 = inlined_call_operand.hbm [shape: f32[128,384], index: 2, kind: input, shape index: {}]
  %s3 = inlined_call_operand.vmem [shape: f32[1,384], index: 3, kind: input, shape index: {}]
  %s4 = inlined_call_operand.vmem [shape: f32[1,128], index: 4, kind: input, shape index: {}]
  %s5 = inlined_call_operand.hbm [shape: f32[128,384], index: 5, kind: input, shape index: {}]
  %s6 = inlined_call_operand.hbm [shape: f32[128,384], index: 6, kind: input, shape index: {}]
  %s7 = inlined_call_operand.vmem [shape: f32[1,384], index: 7, kind: input, shape index: {}]
  %s8 = inlined_call_operand.vmem [shape: f32[1,128], index: 8, kind: input, shape index: {}]
  %s9 = inlined_call_operand.vmem [shape: f32[1,128], index: 9, kind: input, shape index: {}]
  %s10 = inlined_call_operand.<no memory space> [shape: f32[1,1], index: 10, kind: input, shape index: {}]
  %s11 = inlined_call_operand.vmem [shape: f32[8,8,128], index: 11, kind: output, shape index: {0}]
  %s12 = inlined_call_operand.vmem [shape: f32[8,128], index: 12, kind: output, shape index: {1}]
  %s13 = inlined_call_operand.vmem [shape: f32[8,1], index: 13, kind: output, shape index: {2}]
  %14 = xla_tuple %s11, %s12, %s13
  %s15 = sld [smem:[#allocation0]]
  $region82: #{gru_model_forward.1} parent=0
    _
  %s17 = ssub.s32 1, %s15
  %s18 = scalar_select 0, %s17, %s15
  %v19 = vstv %s10
  %20 = vst [vmem:[#allocation4] sm:$0x1] %v19
  $region1: #{gru_model_forward.1} parent=0
    #allocation5 [shape = 'u8[196608]{0}', space=vmem, size = 0x30000, scoped, tag = 'input window, operand 2, single buffered']
    #allocation6 [shape = 's32[1]{0}', space=sflag, size = 0x4, scoped, tag = 'scoped memory for gru_model_forward.1']
    #allocation7 [shape = 'u8[196608]{0}', space=vmem, size = 0x30000, scoped, tag = 'input window, operand 5, single buffered']
    #allocation8 [shape = 's32[1]{0}', space=sflag, size = 0x4, scoped, tag = 'scoped memory for gru_model_forward.1']
    #allocation9 [shape = 'u8[196608]{0}', space=vmem, size = 0x30000, scoped, tag = 'input window, operand 6, single buffered']
    %21 = vsyncpa [#allocation6], 0
    %22 = vsyncpa [#allocation8], 0
    // Predicated region
    $region2: #{gru_model_forward.1} parent=1 // pred_check
      _
    $region3: #{gru_model_forward.1} parent=1 // pred_check_branch
      %24 = sbr.rel (0) target = $region5
    $region4: #{gru_model_forward.1} parent=1 // pred_region
      _
    $region5: #{gru_model_forward.1} parent=1 // pred_fallthru
      _
    // Predicated region
    $region6: #{gru_model_forward.1} parent=1 // pred_check
      _
    $region7: #{gru_model_forward.1} parent=1 // pred_check_branch
      %26 = sbr.rel (0) target = $region9
    $region8: #{gru_model_forward.1} parent=1 // pred_region
      _
    $region9: #{gru_model_forward.1} parent=1 // pred_fallthru
      _
    // Predicated region
    $region10: #{gru_model_forward.1} parent=1 // pred_check
      _
    $region11: #{gru_model_forward.1} parent=1 // pred_check_branch
      %28 = sbr.rel (0) target = $region13
    $region12: #{gru_model_forward.1} parent=1 // pred_region
      %s30 = ssub.s32 6144, 6144
      %31 = vsyncadd [#allocation6], %s30
      %s32 = sshll.u32 [#allocation5], 4
      %s33 = int_to_ptr.vmem [resolvable:$true] %s32
      %38 = dma.hbm_to_vmem [thread:$0]  %s2, 6144, %s33, [#allocation6], 384, 384, 24
    $region13: #{gru_model_forward.1} parent=1 // pred_fallthru
      _
    // Predicated region
    $region14: #{gru_model_forward.1} parent=1 // pred_check
      _
    $region15: #{gru_model_forward.1} parent=1 // pred_check_branch
      %40 = sbr.rel (0) target = $region17
    $region16: #{gru_model_forward.1} parent=1 // pred_region
      _
    $region17: #{gru_model_forward.1} parent=1 // pred_fallthru
      _
    // Predicated region
    $region18: #{gru_model_forward.1} parent=1 // pred_check
      _
    $region19: #{gru_model_forward.1} parent=1 // pred_check_branch
      %42 = sbr.rel (0) target = $region21
    $region20: #{gru_model_forward.1} parent=1 // pred_region
      _
    $region21: #{gru_model_forward.1} parent=1 // pred_fallthru
      _
    // Predicated region
    $region22: #{gru_model_forward.1} parent=1 // pred_check
      _
    $region23: #{gru_model_forward.1} parent=1 // pred_check_branch
      %44 = sbr.rel (0) target = $region25
    $region24: #{gru_model_forward.1} parent=1 // pred_region
      %s46 = ssub.s32 6144, 6144
      %47 = vsyncadd [#allocation8], %s46
      %s48 = sshll.u32 [#allocation7], 4
      %s49 = int_to_ptr.vmem [resolvable:$true] %s48
      %54 = dma.hbm_to_vmem [thread:$0]  %s5, 6144, %s49, [#allocation8], 384, 384, 24
    $region25: #{gru_model_forward.1} parent=1 // pred_fallthru
      _
    // Predicated region
    $region26: #{gru_model_forward.1} parent=1 // pred_check
      _
    $region27: #{gru_model_forward.1} parent=1 // pred_check_branch
      %56 = sbr.rel (0) target = $region29
    $region28: #{gru_model_forward.1} parent=1 // pred_region
      %s58 = ssub.s32 6144, 6144
      %59 = vsyncadd [#allocation8], %s58
      %s60 = sshll.u32 [#allocation9], 4
      %s61 = int_to_ptr.vmem [resolvable:$true] %s60
      %66 = dma.hbm_to_vmem [thread:$0]  %s6, 6144, %s61, [#allocation8], 384, 384, 24
    $region29: #{gru_model_forward.1} parent=1 // pred_fallthru
      _
    // Predicated region
    $region30: #{gru_model_forward.1} parent=1 // pred_check
      _
    $region31: #{gru_model_forward.1} parent=1 // pred_check_branch
      %68 = sbr.rel (0) target = $region33
    $region32: #{gru_model_forward.1} parent=1 // pred_region
      _
    $region33: #{gru_model_forward.1} parent=1 // pred_fallthru
      _
    // Predicated region
    $region34: #{gru_model_forward.1} parent=1 // pred_check
      _
    $region35: #{gru_model_forward.1} parent=1 // pred_check_branch
      %70 = sbr.rel (0) target = $region37
    $region36: #{gru_model_forward.1} parent=1 // pred_region
      _
    $region37: #{gru_model_forward.1} parent=1 // pred_fallthru
      _
    // Predicated region
    $region38: #{gru_model_forward.1} parent=1 // pred_check
      _
    $region39: #{gru_model_forward.1} parent=1 // pred_check_branch
      %72 = sbr.rel (0) target = $region41
    $region40: #{gru_model_forward.1} parent=1 // pred_region
      _
    $region41: #{gru_model_forward.1} parent=1 // pred_fallthru
      _
    // Predicated region
    $region42: #{gru_model_forward.1} parent=1 // pred_check
      _
    $region43: #{gru_model_forward.1} parent=1 // pred_check_branch
      %74 = sbr.rel (0) target = $region45
    $region44: #{gru_model_forward.1} parent=1 // pred_region
      _
    $region45: #{gru_model_forward.1} parent=1 // pred_fallthru
      _
    // Predicated region
    $region46: #{gru_model_forward.1} parent=1 // pred_check
      _
    $region47: #{gru_model_forward.1} parent=1 // pred_check_branch
      %76 = sbr.rel (0) target = $region49
    $region48: #{gru_model_forward.1} parent=1 // pred_region
      %77 = dma.done [#allocation6], 6144
    $region49: #{gru_model_forward.1} parent=1 // pred_fallthru
      _
    // Predicated region
    $region50: #{gru_model_forward.1} parent=1 // pred_check
      _
    $region51: #{gru_model_forward.1} parent=1 // pred_check_branch
      %79 = sbr.rel (0) target = $region53
    $region52: #{gru_model_forward.1} parent=1 // pred_region
      %80 = dma.done [#allocation8], 6144
    $region53: #{gru_model_forward.1} parent=1 // pred_fallthru
      _
    // Predicated region
    $region54: #{gru_model_forward.1} parent=1 // pred_check
      _
    $region55: #{gru_model_forward.1} parent=1 // pred_check_branch
      %82 = sbr.rel (0) target = $region57
    $region56: #{gru_model_forward.1} parent=1 // pred_region
      %83 = dma.done [#allocation8], 6144
    $region57: #{gru_model_forward.1} parent=1 // pred_fallthru
      _
    %v84 = vld [vmem:[#allocation5] sm:$0xff]
    %v85 = vld [vmem:[#allocation5 + $0x8] sm:$0xff]
    %v86 = vld [vmem:[#allocation5 + $0x10] sm:$0xff]
    %v87 = vld [vmem:[#allocation5 + $0x18] sm:$0xff]
    %v88 = vld [vmem:[#allocation5 + $0x20] sm:$0xff]
    %v89 = vld [vmem:[#allocation5 + $0x28] sm:$0xff]
    %v90 = vld [vmem:[#allocation5 + $0x30] sm:$0xff]
    %v91 = vld [vmem:[#allocation5 + $0x38] sm:$0xff]
    %v92 = vld [vmem:[#allocation5 + $0x40] sm:$0xff]
    %v93 = vld [vmem:[#allocation5 + $0x48] sm:$0xff]
    %v94 = vld [vmem:[#allocation5 + $0x50] sm:$0xff]
    %v95 = vld [vmem:[#allocation5 + $0x58] sm:$0xff]
    %v96 = vld [vmem:[#allocation5 + $0x60] sm:$0xff]
    %v97 = vld [vmem:[#allocation5 + $0x68] sm:$0xff]
    %v98 = vld [vmem:[#allocation5 + $0x70] sm:$0xff]
    %v99 = vld [vmem:[#allocation5 + $0x78] sm:$0xff]
    %v100 = vld [vmem:[#allocation5 + $0x80] sm:$0xff]
    %v101 = vld [vmem:[#allocation5 + $0x88] sm:$0xff]
    %v102 = vld [vmem:[#allocation5 + $0x90] sm:$0xff]
    %v103 = vld [vmem:[#allocation5 + $0x98] sm:$0xff]
    %v104 = vld [vmem:[#allocation5 + $0xa0] sm:$0xff]
    %v105 = vld [vmem:[#allocation5 + $0xa8] sm:$0xff]
    %v106 = vld [vmem:[#allocation5 + $0xb0] sm:$0xff]
    %v107 = vld [vmem:[#allocation5 + $0xb8] sm:$0xff]
    %v108 = vld [vmem:[#allocation5 + $0xc0] sm:$0xff]
    %v109 = vld [vmem:[#allocation5 + $0xc8] sm:$0xff]
    %v110 = vld [vmem:[#allocation5 + $0xd0] sm:$0xff]
    %v111 = vld [vmem:[#allocation5 + $0xd8] sm:$0xff]
    %v112 = vld [vmem:[#allocation5 + $0xe0] sm:$0xff]
    %v113 = vld [vmem:[#allocation5 + $0xe8] sm:$0xff]
    %v114 = vld [vmem:[#allocation5 + $0xf0] sm:$0xff]
    %v115 = vld [vmem:[#allocation5 + $0xf8] sm:$0xff]
    %v116 = vld [vmem:[#allocation5 + $0x100] sm:$0xff]
    %v117 = vld [vmem:[#allocation5 + $0x108] sm:$0xff]
    %v118 = vld [vmem:[#allocation5 + $0x110] sm:$0xff]
    %v119 = vld [vmem:[#allocation5 + $0x118] sm:$0xff]
    %v120 = vld [vmem:[#allocation5 + $0x120] sm:$0xff]
    %v121 = vld [vmem:[#allocation5 + $0x128] sm:$0xff]
    %v122 = vld [vmem:[#allocation5 + $0x130] sm:$0xff]
    %v123 = vld [vmem:[#allocation5 + $0x138] sm:$0xff]
    %v124 = vld [vmem:[#allocation5 + $0x140] sm:$0xff]
    %v125 = vld [vmem:[#allocation5 + $0x148] sm:$0xff]
    %v126 = vld [vmem:[#allocation5 + $0x150] sm:$0xff]
    %v127 = vld [vmem:[#allocation5 + $0x158] sm:$0xff]
    %v128 = vld [vmem:[#allocation5 + $0x160] sm:$0xff]
    %v129 = vld [vmem:[#allocation5 + $0x168] sm:$0xff]
    %v130 = vld [vmem:[#allocation5 + $0x170] sm:$0xff]
    %v131 = vld [vmem:[#allocation5 + $0x178] sm:$0xff]
    %v132 = vld [vmem:[%s4] sm:$0x1]
    %v134 = vlaneseq
    %v135 = vshrl.u32 %v134, 7
    %v136 = vsub.s32 0, %v135
    %v137 = vrot.slane %v132, %v136
    %v139 = vld [vmem:[%s0] sm:$0xff]
    %v140 = vld [vmem:[%s0 + $0x8] sm:$0xff]
    %v141 = vld [vmem:[%s0 + $0x10] sm:$0xff]
    %v142 = vld [vmem:[%s0 + $0x18] sm:$0xff]
    %v143 = vld [vmem:[%s0 + $0x20] sm:$0xff]
    %v144 = vld [vmem:[%s0 + $0x28] sm:$0xff]
    %v145 = vld [vmem:[%s0 + $0x30] sm:$0xff]
    %v146 = vld [vmem:[%s0 + $0x38] sm:$0xff]
    %v147 = vld [vmem:[%s1] sm:$0xff]
    %v148 = vld [vmem:[%s1 + $0x8] sm:$0xf]
    %v149 = vld [vmem:[%s3] sm:$0x7]
    %v151 = vlaneseq
    %v152 = vshrl.u32 %v151, 7
    %v153 = vsub.s32 0, %v152
    %v154 = vrot.slane %v149, %v153
    %v155 = vlaneseq
    %v156 = vshrl.u32 %v155, 7
    %v157 = vsub.s32 1, %v156
    %v158 = vrot.slane %v149, %v157
    %v159 = vlaneseq
    %v160 = vshrl.u32 %v159, 7
    %v161 = vsub.s32 2, %v160
    %v162 = vrot.slane %v149, %v161
    %v168 = vcombine.high %v147, %v147
    %vm169 = vcmask 31744
    %v171 = vsel %vm169, %v139, 0
    %v174 = vsel %vm169, %v140, 0
    %v177 = vsel %vm169, %v141, 0
    %v180 = vsel %vm169, %v142, 0
    %v183 = vsel %vm169, %v143, 0
    %v186 = vsel %vm169, %v144, 0
    %v189 = vsel %vm169, %v145, 0
    %v192 = vsel %vm169, %v146, 0
    %vm194 = vcmask 1043456
    %v195 = vsel %vm194, %v147, 0
    %v197 = vsel %vm194, %v168, 0
    %v199 = vsel %vm194, %v148, 0
    %201 = vmatprep.subr.mxu0 %v197
    %202 = vmatpush1.msra.mxu0 %v195
    %203 = vmatprep.subr.mxu0 0.0
    %204 = vmatpush1.msra.mxu0 0.0
    %205 = vmatprep.subr.mxu0 0.0
    %206 = vmatpush1.msra.mxu0 0.0
    %207 = vmatprep.subr.mxu0 0.0
    %208 = vmatpush1.msra.mxu0 0.0
    %209 = vmatprep.subr.mxu0 0.0
    %210 = vmatpush1.msra.mxu0 0.0
    %211 = vmatprep.subr.mxu0 0.0
    %212 = vmatpush1.msra.mxu0 0.0
    %213 = vmatprep.subr.mxu0 0.0
    %214 = vmatpush1.msra.mxu0 0.0
    %215 = vmatprep.subr.mxu0 0.0
    %216 = vmatpush1.msra.mxu0 0.0
    %217 = vmatprep.subr.mxu0 0.0
    %218 = vmatpush1.msra.mxu0 0.0
    %219 = vmatprep.subr.mxu0 0.0
    %220 = vmatpush1.msra.mxu0 0.0
    %221 = vmatprep.subr.mxu0 0.0
    %222 = vmatpush1.msra.mxu0 0.0
    %223 = vmatprep.subr.mxu0 0.0
    %224 = vmatpush1.msra.mxu0 0.0
    %225 = vmatprep.subr.mxu0 0.0
    %226 = vmatpush1.msra.mxu0 0.0
    %227 = vmatprep.subr.mxu0 0.0
    %228 = vmatpush1.msra.mxu0 0.0
    %229 = vmatprep.subr.mxu0 0.0
    %230 = vmatpush1.msra.mxu0 0.0
    %231 = vmatprep.subr.mxu0 0.0
    %232 = vmatpush1.msra.mxu0 0.0
    %233 = vmatprep.subr.mxu0 0.0
    %234 = vmatpush1.msra.mxu0 0.0
    %235 = vmatprep.subr.mxu0 0.0
    %236 = vmatpush1.msra.mxu0 0.0
    %237 = vmatprep.subr.mxu0 0.0
    %238 = vmatpush1.msra.mxu0 0.0
    %239 = vmatprep.subr.mxu0 0.0
    %240 = vmatpush1.msra.mxu0 0.0
    %241 = vmatprep.subr.mxu0 0.0
    %242 = vmatpush1.msra.mxu0 0.0
    %243 = vmatprep.subr.mxu0 0.0
    %244 = vmatpush1.msra.mxu0 0.0
    %245 = vmatprep.subr.mxu0 0.0
    %246 = vmatpush1.msra.mxu0 0.0
    %247 = vmatprep.subr.mxu0 0.0
    %248 = vmatpush1.msra.mxu0 0.0
    %249 = vmatprep.subr.mxu0 0.0
    %250 = vmatpush1.msra.mxu0 0.0
    %251 = vmatprep.subr.mxu0 0.0
    %252 = vmatpush1.msra.mxu0 0.0
    %253 = vmatprep.subr.mxu0 0.0
    %254 = vmatpush1.msra.mxu0 0.0
    %255 = vmatprep.subr.mxu0 0.0
    %256 = vmatpush1.msra.mxu0 0.0
    %257 = vmatprep.subr.mxu0 0.0
    %258 = vmatpush1.msra.mxu0 0.0
    %259 = vmatprep.subr.mxu0 0.0
    %260 = vmatpush1.msra.mxu0 0.0
    %261 = vmatprep.subr.mxu0 0.0
    %262 = vmatpush1.msra.mxu0 0.0
    %263 = vmatprep.subr.mxu0 0.0
    %264 = vmatpush1.msra.mxu0 0.0
    %265 = vmatprep.mubr.f32.mxu0 0.0
    %266 = vmatmul.mubr.f32.gmra.mrb[0].mxu0 %v171
    %v267 = vpop.f32.mrb[0].mxu0
    %v268 = vadd.f32 %v154, %v267
    %v269 = vpop.f32.mrb[0].mxu0
    %v270 = vadd.f32 %v158, %v269
    %271 = vmatprep.mubr.f32.mxu0 0.0
    %272 = vmatmul.mubr.f32.gmra.mrb[0].mxu0 %v174
    %v273 = vpop.f32.mrb[0].mxu0
    %v274 = vadd.f32 %v154, %v273
    %v275 = vpop.f32.mrb[0].mxu0
    %v276 = vadd.f32 %v158, %v275
    %277 = vmatprep.mubr.f32.mxu0 0.0
    %278 = vmatmul.mubr.f32.gmra.mrb[0].mxu0 %v177
    %v279 = vpop.f32.mrb[0].mxu0
    %v280 = vadd.f32 %v154, %v279
    %v281 = vpop.f32.mrb[0].mxu0
    %v282 = vadd.f32 %v158, %v281
    %283 = vmatprep.mubr.f32.mxu0 0.0
    %284 = vmatmul.mubr.f32.gmra.mrb[0].mxu0 %v180
    %v285 = vpop.f32.mrb[0].mxu0
    %v286 = vadd.f32 %v154, %v285
    %v287 = vpop.f32.mrb[0].mxu0
    %v288 = vadd.f32 %v158, %v287
    %289 = vmatprep.mubr.f32.mxu0 0.0
    %290 = vmatmul.mubr.f32.gmra.mrb[0].mxu0 %v183
    %v291 = vpop.f32.mrb[0].mxu0
    %v292 = vadd.f32 %v154, %v291
    %v293 = vpop.f32.mrb[0].mxu0
    %v294 = vadd.f32 %v158, %v293
    %295 = vmatprep.mubr.f32.mxu0 0.0
    %296 = vmatmul.mubr.f32.gmra.mrb[0].mxu0 %v186
    %v297 = vpop.f32.mrb[0].mxu0
    %v298 = vadd.f32 %v154, %v297
    %v299 = vpop.f32.mrb[0].mxu0
    %v300 = vadd.f32 %v158, %v299
    %301 = vmatprep.mubr.f32.mxu0 0.0
    %302 = vmatmul.mubr.f32.gmra.mrb[0].mxu0 %v189
    %v303 = vpop.f32.mrb[0].mxu0
    %v304 = vadd.f32 %v154, %v303
    %v305 = vpop.f32.mrb[0].mxu0
    %v306 = vadd.f32 %v158, %v305
    %307 = vmatprep.mubr.f32.mxu0 0.0
    %308 = vmatmul.mubr.f32.gmra.mrb[0].mxu0 %v192
    %v309 = vpop.f32.mrb[0].mxu0
    %v310 = vadd.f32 %v154, %v309
    %v311 = vpop.f32.mrb[0].mxu0
    %v312 = vadd.f32 %v158, %v311
    %313 = vdwg.mxu0
    %314 = vmatprep.subr.mxu0 0.0
    %315 = vmatpush1.msra.mxu0 %v199
    %316 = vmatprep.subr.mxu0 0.0
    %317 = vmatpush1.msra.mxu0 0.0
    %318 = vmatprep.subr.mxu0 0.0
    %319 = vmatpush1.msra.mxu0 0.0
    %320 = vmatprep.subr.mxu0 0.0
    %321 = vmatpush1.msra.mxu0 0.0
    %322 = vmatprep.subr.mxu0 0.0
    %323 = vmatpush1.msra.mxu0 0.0
    %324 = vmatprep.subr.mxu0 0.0
    %325 = vmatpush1.msra.mxu0 0.0
    %326 = vmatprep.subr.mxu0 0.0
    %327 = vmatpush1.msra.mxu0 0.0
    %328 = vmatprep.subr.mxu0 0.0
    %329 = vmatpush1.msra.mxu0 0.0
    %330 = vmatprep.subr.mxu0 0.0
    %331 = vmatpush1.msra.mxu0 0.0
    %332 = vmatprep.subr.mxu0 0.0
    %333 = vmatpush1.msra.mxu0 0.0
    %334 = vmatprep.subr.mxu0 0.0
    %335 = vmatpush1.msra.mxu0 0.0
    %336 = vmatprep.subr.mxu0 0.0
    %337 = vmatpush1.msra.mxu0 0.0
    %338 = vmatprep.subr.mxu0 0.0
    %339 = vmatpush1.msra.mxu0 0.0
    %340 = vmatprep.subr.mxu0 0.0
    %341 = vmatpush1.msra.mxu0 0.0
    %342 = vmatprep.subr.mxu0 0.0
    %343 = vmatpush1.msra.mxu0 0.0
    %344 = vmatprep.subr.mxu0 0.0
    %345 = vmatpush1.msra.mxu0 0.0
    %346 = vmatprep.subr.mxu0 0.0
    %347 = vmatpush1.msra.mxu0 0.0
    %348 = vmatprep.subr.mxu0 0.0
    %349 = vmatpush1.msra.mxu0 0.0
    %350 = vmatprep.subr.mxu0 0.0
    %351 = vmatpush1.msra.mxu0 0.0
    %352 = vmatprep.subr.mxu0 0.0
    %353 = vmatpush1.msra.mxu0 0.0
    %354 = vmatprep.subr.mxu0 0.0
    %355 = vmatpush1.msra.mxu0 0.0
    %356 = vmatprep.subr.mxu0 0.0
    %357 = vmatpush1.msra.mxu0 0.0
    %358 = vmatprep.subr.mxu0 0.0
    %359 = vmatpush1.msra.mxu0 0.0
    %360 = vmatprep.subr.mxu0 0.0
    %361 = vmatpush1.msra.mxu0 0.0
    %362 = vmatprep.subr.mxu0 0.0
    %363 = vmatpush1.msra.mxu0 0.0
    %364 = vmatprep.subr.mxu0 0.0
    %365 = vmatpush1.msra.mxu0 0.0
    %366 = vmatprep.subr.mxu0 0.0
    %367 = vmatpush1.msra.mxu0 0.0
    %368 = vmatprep.subr.mxu0 0.0
    %369 = vmatpush1.msra.mxu0 0.0
    %370 = vmatprep.subr.mxu0 0.0
    %371 = vmatpush1.msra.mxu0 0.0
    %372 = vmatprep.subr.mxu0 0.0
    %373 = vmatpush1.msra.mxu0 0.0
    %374 = vmatprep.subr.mxu0 0.0
    %375 = vmatpush1.msra.mxu0 0.0
    %376 = vmatprep.subr.mxu0 0.0
    %377 = vmatpush1.msra.mxu0 0.0
    %378 = vmatprep.mubr.f32.mxu0 0.0
    %379 = vmatmul.mubr.f32.gmra.mrb[0].mxu0 %v171
    %v380 = vpop.f32.mrb[0].mxu0
    %v381 = vadd.f32 %v162, %v380
    %v382 = vpop.f32.mrb[0].mxu0
    %383 = vmatprep.mubr.f32.mxu0 0.0
    %384 = vmatmul.mubr.f32.gmra.mrb[0].mxu0 %v174
    %v385 = vpop.f32.mrb[0].mxu0
    %v386 = vadd.f32 %v162, %v385
    %v387 = vpop.f32.mrb[0].mxu0
    %388 = vmatprep.mubr.f32.mxu0 0.0
    %389 = vmatmul.mubr.f32.gmra.mrb[0].mxu0 %v177
    %v390 = vpop.f32.mrb[0].mxu0
    %v391 = vadd.f32 %v162, %v390
    %v392 = vpop.f32.mrb[0].mxu0
    %393 = vmatprep.mubr.f32.mxu0 0.0
    %394 = vmatmul.mubr.f32.gmra.mrb[0].mxu0 %v180
    %v395 = vpop.f32.mrb[0].mxu0
    %v396 = vadd.f32 %v162, %v395
    %v397 = vpop.f32.mrb[0].mxu0
    %398 = vmatprep.mubr.f32.mxu0 0.0
    %399 = vmatmul.mubr.f32.gmra.mrb[0].mxu0 %v183
    %v400 = vpop.f32.mrb[0].mxu0
    %v401 = vadd.f32 %v162, %v400
    %v402 = vpop.f32.mrb[0].mxu0
    %403 = vmatprep.mubr.f32.mxu0 0.0
    %404 = vmatmul.mubr.f32.gmra.mrb[0].mxu0 %v186
    %v405 = vpop.f32.mrb[0].mxu0
    %v406 = vadd.f32 %v162, %v405
    %v407 = vpop.f32.mrb[0].mxu0
    %408 = vmatprep.mubr.f32.mxu0 0.0
    %409 = vmatmul.mubr.f32.gmra.mrb[0].mxu0 %v189
    %v410 = vpop.f32.mrb[0].mxu0
    %v411 = vadd.f32 %v162, %v410
    %v412 = vpop.f32.mrb[0].mxu0
    %413 = vmatprep.mubr.f32.mxu0 0.0
    %414 = vmatmul.mubr.f32.gmra.mrb[0].mxu0 %v192
    %v415 = vpop.f32.mrb[0].mxu0
    %v416 = vadd.f32 %v162, %v415
    %v417 = vpop.f32.mrb[0].mxu0
    %418 = vdwg.mxu0
    %419 = vst [vmem:[#allocation2] sm:$0xff] %v268
    %420 = vst [vmem:[#allocation2 + $0x8] sm:$0xff] %v270
    %421 = vst [vmem:[#allocation2 + $0x10] sm:$0xff] %v381
    %422 = vst [vmem:[#allocation2 + $0x18] sm:$0xff] %v274
    %423 = vst [vmem:[#allocation2 + $0x20] sm:$0xff] %v276
    %424 = vst [vmem:[#allocation2 + $0x28] sm:$0xff] %v386
    %425 = vst [vmem:[#allocation2 + $0x30] sm:$0xff] %v280
    %426 = vst [vmem:[#allocation2 + $0x38] sm:$0xff] %v282
    %427 = vst [vmem:[#allocation2 + $0x40] sm:$0xff] %v391
    %428 = vst [vmem:[#allocation2 + $0x48] sm:$0xff] %v286
    %429 = vst [vmem:[#allocation2 + $0x50] sm:$0xff] %v288
    %430 = vst [vmem:[#allocation2 + $0x58] sm:$0xff] %v396
    %431 = vst [vmem:[#allocation2 + $0x60] sm:$0xff] %v292
    %432 = vst [vmem:[#allocation2 + $0x68] sm:$0xff] %v294
    %433 = vst [vmem:[#allocation2 + $0x70] sm:$0xff] %v401
    %434 = vst [vmem:[#allocation2 + $0x78] sm:$0xff] %v298
    %435 = vst [vmem:[#allocation2 + $0x80] sm:$0xff] %v300
    %436 = vst [vmem:[#allocation2 + $0x88] sm:$0xff] %v406
    %437 = vst [vmem:[#allocation2 + $0x90] sm:$0xff] %v304
    %438 = vst [vmem:[#allocation2 + $0x98] sm:$0xff] %v306
    %439 = vst [vmem:[#allocation2 + $0xa0] sm:$0xff] %v411
    %440 = vst [vmem:[#allocation2 + $0xa8] sm:$0xff] %v310
    %441 = vst [vmem:[#allocation2 + $0xb0] sm:$0xff] %v312
    %442 = vst [vmem:[#allocation2 + $0xb8] sm:$0xff] %v416
    %s443 = smul.u32 0, 3
    %s444 = smul.addr %s443, 8
    %s445 = scalar_lea.vmem [#allocation2], %s444
    %v446 = vld [vmem:[%s445] sm:$0xff]
    %v447 = vld [vmem:[%s445 + $0x8] sm:$0xff]
    %v448 = vld [vmem:[%s445 + $0x10] sm:$0xff]
    %449 = vmatprep.subr.mxu0 %v85
    %450 = vmatpush1.msra.mxu0 %v84
    %451 = vmatprep.subr.mxu0 %v88
    %452 = vmatpush1.msra.mxu0 %v87
    %453 = vmatprep.subr.mxu0 %v91
    %454 = vmatpush1.msra.mxu0 %v90
    %455 = vmatprep.subr.mxu0 %v94
    %456 = vmatpush1.msra.mxu0 %v93
    %457 = vmatprep.subr.mxu0 %v97
    %458 = vmatpush1.msra.mxu0 %v96
    %459 = vmatprep.subr.mxu0 %v100
    %460 = vmatpush1.msra.mxu0 %v99
    %461 = vmatprep.subr.mxu0 %v103
    %462 = vmatpush1.msra.mxu0 %v102
    %463 = vmatprep.subr.mxu0 %v106
    %464 = vmatpush1.msra.mxu0 %v105
    %465 = vmatprep.subr.mxu0 %v109
    %466 = vmatpush1.msra.mxu0 %v108
    %467 = vmatprep.subr.mxu0 %v112
    %468 = vmatpush1.msra.mxu0 %v111
    %469 = vmatprep.subr.mxu0 %v115
    %470 = vmatpush1.msra.mxu0 %v114
    %471 = vmatprep.subr.mxu0 %v118
    %472 = vmatpush1.msra.mxu0 %v117
    %473 = vmatprep.subr.mxu0 %v121
    %474 = vmatpush1.msra.mxu0 %v120
    %475 = vmatprep.subr.mxu0 %v124
    %476 = vmatpush1.msra.mxu0 %v123
    %477 = vmatprep.subr.mxu0 %v127
    %478 = vmatpush1.msra.mxu0 %v126
    %479 = vmatprep.subr.mxu0 %v130
    %480 = vmatpush1.msra.mxu0 %v129
    %481 = vmatprep.subr.mxu0 0.0
    %482 = vmatpush1.msra.mxu0 0.0
    %483 = vmatprep.subr.mxu0 0.0
    %484 = vmatpush1.msra.mxu0 0.0
    %485 = vmatprep.subr.mxu0 0.0
    %486 = vmatpush1.msra.mxu0 0.0
    %487 = vmatprep.subr.mxu0 0.0
    %488 = vmatpush1.msra.mxu0 0.0
    %489 = vmatprep.subr.mxu0 0.0
    %490 = vmatpush1.msra.mxu0 0.0
    %491 = vmatprep.subr.mxu0 0.0
    %492 = vmatpush1.msra.mxu0 0.0
    %493 = vmatprep.subr.mxu0 0.0
    %494 = vmatpush1.msra.mxu0 0.0
    %495 = vmatprep.subr.mxu0 0.0
    %496 = vmatpush1.msra.mxu0 0.0
    %497 = vmatprep.subr.mxu0 0.0
    %498 = vmatpush1.msra.mxu0 0.0
    %499 = vmatprep.subr.mxu0 0.0
    %500 = vmatpush1.msra.mxu0 0.0
    %501 = vmatprep.subr.mxu0 0.0
    %502 = vmatpush1.msra.mxu0 0.0
    %503 = vmatprep.subr.mxu0 0.0
    %504 = vmatpush1.msra.mxu0 0.0
    %505 = vmatprep.subr.mxu0 0.0
    %506 = vmatpush1.msra.mxu0 0.0
    %507 = vmatprep.subr.mxu0 0.0
    %508 = vmatpush1.msra.mxu0 0.0
    %509 = vmatprep.subr.mxu0 0.0
    %510 = vmatpush1.msra.mxu0 0.0
    %511 = vmatprep.subr.mxu0 0.0
    %512 = vmatpush1.msra.mxu0 0.0
    %513 = vmatprep.mubr.f32.mxu0 0.0
    %514 = vmatmul.mubr.f32.gmra.mrb[0].mxu0 0.0
    %v515 = vpop.f32.mrb[0].mxu0
    %v516 = vadd.f32 0.0, %v515
    %v517 = vpop.f32.mrb[0].mxu0
    %v518 = vadd.f32 0.0, %v517
    %519 = vdwg.mxu0
    %520 = vmatprep.subr.mxu0 0.0
    %521 = vmatpush1.msra.mxu0 %v86
    %522 = vmatprep.subr.mxu0 0.0
    %523 = vmatpush1.msra.mxu0 %v89
    %524 = vmatprep.subr.mxu0 0.0
    %525 = vmatpush1.msra.mxu0 %v92
    %526 = vmatprep.subr.mxu0 0.0
    %527 = vmatpush1.msra.mxu0 %v95
    %528 = vmatprep.subr.mxu0 0.0
    %529 = vmatpush1.msra.mxu0 %v98
    %530 = vmatprep.subr.mxu0 0.0
    %531 = vmatpush1.msra.mxu0 %v101
    %532 = vmatprep.subr.mxu0 0.0
    %533 = vmatpush1.msra.mxu0 %v104
    %534 = vmatprep.subr.mxu0 0.0
    %535 = vmatpush1.msra.mxu0 %v107
    %536 = vmatprep.subr.mxu0 0.0
    %537 = vmatpush1.msra.mxu0 %v110
    %538 = vmatprep.subr.mxu0 0.0
    %539 = vmatpush1.msra.mxu0 %v113
    %540 = vmatprep.subr.mxu0 0.0
    %541 = vmatpush1.msra.mxu0 %v116
    %542 = vmatprep.subr.mxu0 0.0
    %543 = vmatpush1.msra.mxu0 %v119
    %544 = vmatprep.subr.mxu0 0.0
    %545 = vmatpush1.msra.mxu0 %v122
    %546 = vmatprep.subr.mxu0 0.0
    %547 = vmatpush1.msra.mxu0 %v125
    %548 = vmatprep.subr.mxu0 0.0
    %549 = vmatpush1.msra.mxu0 %v128
    %550 = vmatprep.subr.mxu0 0.0
    %551 = vmatpush1.msra.mxu0 %v131
    %552 = vmatprep.subr.mxu0 0.0
    %553 = vmatpush1.msra.mxu0 0.0
    %554 = vmatprep.subr.mxu0 0.0
    %555 = vmatpush1.msra.mxu0 0.0
    %556 = vmatprep.subr.mxu0 0.0
    %557 = vmatpush1.msra.mxu0 0.0
    %558 = vmatprep.subr.mxu0 0.0
    %559 = vmatpush1.msra.mxu0 0.0
    %560 = vmatprep.subr.mxu0 0.0
    %561 = vmatpush1.msra.mxu0 0.0
    %562 = vmatprep.subr.mxu0 0.0
    %563 = vmatpush1.msra.mxu0 0.0
    %564 = vmatprep.subr.mxu0 0.0
    %565 = vmatpush1.msra.mxu0 0.0
    %566 = vmatprep.subr.mxu0 0.0
    %567 = vmatpush1.msra.mxu0 0.0
    %568 = vmatprep.subr.mxu0 0.0
    %569 = vmatpush1.msra.mxu0 0.0
    %570 = vmatprep.subr.mxu0 0.0
    %571 = vmatpush1.msra.mxu0 0.0
    %572 = vmatprep.subr.mxu0 0.0
    %573 = vmatpush1.msra.mxu0 0.0
    %574 = vmatprep.subr.mxu0 0.0
    %575 = vmatpush1.msra.mxu0 0.0
    %576 = vmatprep.subr.mxu0 0.0
    %577 = vmatpush1.msra.mxu0 0.0
    %578 = vmatprep.subr.mxu0 0.0
    %579 = vmatpush1.msra.mxu0 0.0
    %580 = vmatprep.subr.mxu0 0.0
    %581 = vmatpush1.msra.mxu0 0.0
    %582 = vmatprep.subr.mxu0 0.0
    %583 = vmatpush1.msra.mxu0 0.0
    %584 = vmatprep.mubr.f32.mxu0 0.0
    %585 = vmatmul.mubr.f32.gmra.mrb[0].mxu0 0.0
    %v586 = vpop.f32.mrb[0].mxu0
    %v587 = vadd.f32 0.0, %v586
    %v588 = vpop.f32.mrb[0].mxu0
    %589 = vdwg.mxu0
    %v590 = vadd.f32 %v446, %v516
    %v591 = vxor.u32 %v590, 2147483648
    %v592 = vmul.f32 %v591, 1.442695
    %v593 = vpow.pop %v592
    %v594 = vadd.f32 %v593, 1.0
    %v595 = vrcp.pop %v594
    %v596 = vmul.f32 1.0, %v595
    %v597 = vadd.f32 %v447, %v518
    %v598 = vxor.u32 %v597, 2147483648
    %v599 = vmul.f32 %v598, 1.442695
    %v600 = vpow.pop %v599
    %v601 = vadd.f32 %v600, 1.0
    %v602 = vrcp.pop %v601
    %v603 = vmul.f32 1.0, %v602
    %v604 = vadd.f32 %v587, %v137
    %v605 = vmul.f32 %v596, %v604
    %v606 = vadd.f32 %v448, %v605
    %v607 = vtanh.pop %v606
    %v608 = vsub.f32 0.0, %v607
    %v609 = vmul.f32 %v603, %v608
    %v610 = vadd.f32 %v607, %v609
    %611 = vst [vmem:[#allocation3] sm:$0xff] %v610
    %s612 = smul.u32 1, 3
    %s613 = smul.addr %s612, 8
    %s614 = scalar_lea.vmem [#allocation2], %s613
    %v615 = vld [vmem:[%s614] sm:$0xff]
    %v616 = vld [vmem:[%s614 + $0x8] sm:$0xff]
    %v617 = vld [vmem:[%s614 + $0x10] sm:$0xff]
    %618 = vmatprep.subr.mxu0 %v85
    %619 = vmatpush1.msra.mxu0 %v84
    %620 = vmatprep.subr.mxu0 %v88
    %621 = vmatpush1.msra.mxu0 %v87
    %622 = vmatprep.subr.mxu0 %v91
    %623 = vmatpush1.msra.mxu0 %v90
    %624 = vmatprep.subr.mxu0 %v94
    %625 = vmatpush1.msra.mxu0 %v93
    %626 = vmatprep.subr.mxu0 %v97
    %627 = vmatpush1.msra.mxu0 %v96
    %628 = vmatprep.subr.mxu0 %v100
    %629 = vmatpush1.msra.mxu0 %v99
    %630 = vmatprep.subr.mxu0 %v103
    %631 = vmatpush1.msra.mxu0 %v102
    %632 = vmatprep.subr.mxu0 %v106
    %633 = vmatpush1.msra.mxu0 %v105
    %634 = vmatprep.subr.mxu0 %v109
    %635 = vmatpush1.msra.mxu0 %v108
    %636 = vmatprep.subr.mxu0 %v112
    %637 = vmatpush1.msra.mxu0 %v111
    %638 = vmatprep.subr.mxu0 %v115
    %639 = vmatpush1.msra.mxu0 %v114
    %640 = vmatprep.subr.mxu0 %v118
    %641 = vmatpush1.msra.mxu0 %v117
    %642 = vmatprep.subr.mxu0 %v121
    %643 = vmatpush1.msra.mxu0 %v120
    %644 = vmatprep.subr.mxu0 %v124
    %645 = vmatpush1.msra.mxu0 %v123
    %646 = vmatprep.subr.mxu0 %v127
    %647 = vmatpush1.msra.mxu0 %v126
    %648 = vmatprep.subr.mxu0 %v130
    %649 = vmatpush1.msra.mxu0 %v129
    %650 = vmatprep.subr.mxu0 0.0
    %651 = vmatpush1.msra.mxu0 0.0
    %652 = vmatprep.subr.mxu0 0.0
    %653 = vmatpush1.msra.mxu0 0.0
    %654 = vmatprep.subr.mxu0 0.0
    %655 = vmatpush1.msra.mxu0 0.0
    %656 = vmatprep.subr.mxu0 0.0
    %657 = vmatpush1.msra.mxu0 0.0
    %658 = vmatprep.subr.mxu0 0.0
    %659 = vmatpush1.msra.mxu0 0.0
    %660 = vmatprep.subr.mxu0 0.0
    %661 = vmatpush1.msra.mxu0 0.0
    %662 = vmatprep.subr.mxu0 0.0
    %663 = vmatpush1.msra.mxu0 0.0
    %664 = vmatprep.subr.mxu0 0.0
    %665 = vmatpush1.msra.mxu0 0.0
    %666 = vmatprep.subr.mxu0 0.0
    %667 = vmatpush1.msra.mxu0 0.0
    %668 = vmatprep.subr.mxu0 0.0
    %669 = vmatpush1.msra.mxu0 0.0
    %670 = vmatprep.subr.mxu0 0.0
    %671 = vmatpush1.msra.mxu0 0.0
    %672 = vmatprep.subr.mxu0 0.0
    %673 = vmatpush1.msra.mxu0 0.0
    %674 = vmatprep.subr.mxu0 0.0
    %675 = vmatpush1.msra.mxu0 0.0
    %676 = vmatprep.subr.mxu0 0.0
    %677 = vmatpush1.msra.mxu0 0.0
    %678 = vmatprep.subr.mxu0 0.0
    %679 = vmatpush1.msra.mxu0 0.0
    %680 = vmatprep.subr.mxu0 0.0
    %681 = vmatpush1.msra.mxu0 0.0
    %682 = vmatprep.mubr.f32.mxu0 0.0
    %683 = vmatmul.mubr.f32.gmra.mrb[0].mxu0 %v610
    %v684 = vpop.f32.mrb[0].mxu0
    %v685 = vadd.f32 0.0, %v684
    %v686 = vpop.f32.mrb[0].mxu0
    %v687 = vadd.f32 0.0, %v686
    %688 = vdwg.mxu0
    %689 = vmatprep.subr.mxu0 0.0
    %690 = vmatpush1.msra.mxu0 %v86
    %691 = vmatprep.subr.mxu0 0.0
    %692 = vmatpush1.msra.mxu0 %v89
    %693 = vmatprep.subr.mxu0 0.0
    %694 = vmatpush1.msra.mxu0 %v92
    %695 = vmatprep.subr.mxu0 0.0
    %696 = vmatpush1.msra.mxu0 %v95
    %697 = vmatprep.subr.mxu0 0.0
    %698 = vmatpush1.msra.mxu0 %v98
    %699 = vmatprep.subr.mxu0 0.0
    %700 = vmatpush1.msra.mxu0 %v101
    %701 = vmatprep.subr.mxu0 0.0
    %702 = vmatpush1.msra.mxu0 %v104
    %703 = vmatprep.subr.mxu0 0.0
    %704 = vmatpush1.msra.mxu0 %v107
    %705 = vmatprep.subr.mxu0 0.0
    %706 = vmatpush1.msra.mxu0 %v110
    %707 = vmatprep.subr.mxu0 0.0
    %708 = vmatpush1.msra.mxu0 %v113
    %709 = vmatprep.subr.mxu0 0.0
    %710 = vmatpush1.msra.mxu0 %v116
    %711 = vmatprep.subr.mxu0 0.0
    %712 = vmatpush1.msra.mxu0 %v119
    %713 = vmatprep.subr.mxu0 0.0
    %714 = vmatpush1.msra.mxu0 %v122
    %715 = vmatprep.subr.mxu0 0.0
    %716 = vmatpush1.msra.mxu0 %v125
    %717 = vmatprep.subr.mxu0 0.0
    %718 = vmatpush1.msra.mxu0 %v128
    %719 = vmatprep.subr.mxu0 0.0
    %720 = vmatpush1.msra.mxu0 %v131
    %721 = vmatprep.subr.mxu0 0.0
    %722 = vmatpush1.msra.mxu0 0.0
    %723 = vmatprep.subr.mxu0 0.0
    %724 = vmatpush1.msra.mxu0 0.0
    %725 = vmatprep.subr.mxu0 0.0
    %726 = vmatpush1.msra.mxu0 0.0
    %727 = vmatprep.subr.mxu0 0.0
    %728 = vmatpush1.msra.mxu0 0.0
    %729 = vmatprep.subr.mxu0 0.0
    %730 = vmatpush1.msra.mxu0 0.0
    %731 = vmatprep.subr.mxu0 0.0
    %732 = vmatpush1.msra.mxu0 0.0
    %733 = vmatprep.subr.mxu0 0.0
    %734 = vmatpush1.msra.mxu0 0.0
    %735 = vmatprep.subr.mxu0 0.0
    %736 = vmatpush1.msra.mxu0 0.0
    %737 = vmatprep.subr.mxu0 0.0
    %738 = vmatpush1.msra.mxu0 0.0
    %739 = vmatprep.subr.mxu0 0.0
    %740 = vmatpush1.msra.mxu0 0.0
    %741 = vmatprep.subr.mxu0 0.0
    %742 = vmatpush1.msra.mxu0 0.0
    %743 = vmatprep.subr.mxu0 0.0
    %744 = vmatpush1.msra.mxu0 0.0
    %745 = vmatprep.subr.mxu0 0.0
    %746 = vmatpush1.msra.mxu0 0.0
    %747 = vmatprep.subr.mxu0 0.0
    %748 = vmatpush1.msra.mxu0 0.0
    %749 = vmatprep.subr.mxu0 0.0
    %750 = vmatpush1.msra.mxu0 0.0
    %751 = vmatprep.subr.mxu0 0.0
    %752 = vmatpush1.msra.mxu0 0.0
    %753 = vmatprep.mubr.f32.mxu0 0.0
    %754 = vmatmul.mubr.f32.gmra.mrb[0].mxu0 %v610
    %v755 = vpop.f32.mrb[0].mxu0
    %v756 = vadd.f32 0.0, %v755
    %v757 = vpop.f32.mrb[0].mxu0
    %758 = vdwg.mxu0
    %v759 = vadd.f32 %v615, %v685
    %v760 = vxor.u32 %v759, 2147483648
    %v761 = vmul.f32 %v760, 1.442695
    %v762 = vpow.pop %v761
    %v763 = vadd.f32 %v762, 1.0
    %v764 = vrcp.pop %v763
    %v765 = vmul.f32 1.0, %v764
    %v766 = vadd.f32 %v616, %v687
    %v767 = vxor.u32 %v766, 2147483648
    %v768 = vmul.f32 %v767, 1.442695
    %v769 = vpow.pop %v768
    %v770 = vadd.f32 %v769, 1.0
    %v771 = vrcp.pop %v770
    %v772 = vmul.f32 1.0, %v771
    %v773 = vadd.f32 %v756, %v137
    %v774 = vmul.f32 %v765, %v773
    %v775 = vadd.f32 %v617, %v774
    %v776 = vtanh.pop %v775
    %v777 = vsub.f32 %v610, %v776
    %v778 = vmul.f32 %v772, %v777
    %v779 = vadd.f32 %v776, %v778
    %s780 = scalar_lea.vmem [#allocation3], 8
    %781 = vst [vmem:[%s780] sm:$0xff] %v779
    %s782 = smul.u32 2, 3
    %s783 = smul.addr %s782, 8
    %s784 = scalar_lea.vmem [#allocation2], %s783
    %v785 = vld [vmem:[%s784] sm:$0xff]
    %v786 = vld [vmem:[%s784 + $0x8] sm:$0xff]
    %v787 = vld [vmem:[%s784 + $0x10] sm:$0xff]
    %788 = vmatprep.subr.mxu0 %v85
    %789 = vmatpush1.msra.mxu0 %v84
    %790 = vmatprep.subr.mxu0 %v88
    %791 = vmatpush1.msra.mxu0 %v87
    %792 = vmatprep.subr.mxu0 %v91
    %793 = vmatpush1.msra.mxu0 %v90
    %794 = vmatprep.subr.mxu0 %v94
    %795 = vmatpush1.msra.mxu0 %v93
    %796 = vmatprep.subr.mxu0 %v97
    %797 = vmatpush1.msra.mxu0 %v96
    %798 = vmatprep.subr.mxu0 %v100
    %799 = vmatpush1.msra.mxu0 %v99
    %800 = vmatprep.subr.mxu0 %v103
    %801 = vmatpush1.msra.mxu0 %v102
    %802 = vmatprep.subr.mxu0 %v106
    %803 = vmatpush1.msra.mxu0 %v105
    %804 = vmatprep.subr.mxu0 %v109
    %805 = vmatpush1.msra.mxu0 %v108
    %806 = vmatprep.subr.mxu0 %v112
    %807 = vmatpush1.msra.mxu0 %v111
    %808 = vmatprep.subr.mxu0 %v115
    %809 = vmatpush1.msra.mxu0 %v114
    %810 = vmatprep.subr.mxu0 %v118
    %811 = vmatpush1.msra.mxu0 %v117
    %812 = vmatprep.subr.mxu0 %v121
    %813 = vmatpush1.msra.mxu0 %v120
    %814 = vmatprep.subr.mxu0 %v124
    %815 = vmatpush1.msra.mxu0 %v123
    %816 = vmatprep.subr.mxu0 %v127
    %817 = vmatpush1.msra.mxu0 %v126
    %818 = vmatprep.subr.mxu0 %v130
    %819 = vmatpush1.msra.mxu0 %v129
    %820 = vmatprep.subr.mxu0 0.0
    %821 = vmatpush1.msra.mxu0 0.0
    %822 = vmatprep.subr.mxu0 0.0
    %823 = vmatpush1.msra.mxu0 0.0
    %824 = vmatprep.subr.mxu0 0.0
    %825 = vmatpush1.msra.mxu0 0.0
    %826 = vmatprep.subr.mxu0 0.0
    %827 = vmatpush1.msra.mxu0 0.0
    %828 = vmatprep.subr.mxu0 0.0
    %829 = vmatpush1.msra.mxu0 0.0
    %830 = vmatprep.subr.mxu0 0.0
    %831 = vmatpush1.msra.mxu0 0.0
    %832 = vmatprep.subr.mxu0 0.0
    %833 = vmatpush1.msra.mxu0 0.0
    %834 = vmatprep.subr.mxu0 0.0
    %835 = vmatpush1.msra.mxu0 0.0
    %836 = vmatprep.subr.mxu0 0.0
    %837 = vmatpush1.msra.mxu0 0.0
    %838 = vmatprep.subr.mxu0 0.0
    %839 = vmatpush1.msra.mxu0 0.0
    %840 = vmatprep.subr.mxu0 0.0
    %841 = vmatpush1.msra.mxu0 0.0
    %842 = vmatprep.subr.mxu0 0.0
    %843 = vmatpush1.msra.mxu0 0.0
    %844 = vmatprep.subr.mxu0 0.0
    %845 = vmatpush1.msra.mxu0 0.0
    %846 = vmatprep.subr.mxu0 0.0
    %847 = vmatpush1.msra.mxu0 0.0
    %848 = vmatprep.subr.mxu0 0.0
    %849 = vmatpush1.msra.mxu0 0.0
    %850 = vmatprep.subr.mxu0 0.0
    %851 = vmatpush1.msra.mxu0 0.0
    %852 = vmatprep.mubr.f32.mxu0 0.0
    %853 = vmatmul.mubr.f32.gmra.mrb[0].mxu0 %v779
    %v854 = vpop.f32.mrb[0].mxu0
    %v855 = vadd.f32 0.0, %v854
    %v856 = vpop.f32.mrb[0].mxu0
    %v857 = vadd.f32 0.0, %v856
    %858 = vdwg.mxu0
    %859 = vmatprep.subr.mxu0 0.0
    %860 = vmatpush1.msra.mxu0 %v86
    %861 = vmatprep.subr.mxu0 0.0
    %862 = vmatpush1.msra.mxu0 %v89
    %863 = vmatprep.subr.mxu0 0.0
    %864 = vmatpush1.msra.mxu0 %v92
    %865 = vmatprep.subr.mxu0 0.0
    %866 = vmatpush1.msra.mxu0 %v95
    %867 = vmatprep.subr.mxu0 0.0
    %868 = vmatpush1.msra.mxu0 %v98
    %869 = vmatprep.subr.mxu0 0.0
    %870 = vmatpush1.msra.mxu0 %v101
    %871 = vmatprep.subr.mxu0 0.0
    %872 = vmatpush1.msra.mxu0 %v104
    %873 = vmatprep.subr.mxu0 0.0
    %874 = vmatpush1.msra.mxu0 %v107
    %875 = vmatprep.subr.mxu0 0.0
    %876 = vmatpush1.msra.mxu0 %v110
    %877 = vmatprep.subr.mxu0 0.0
    %878 = vmatpush1.msra.mxu0 %v113
    %879 = vmatprep.subr.mxu0 0.0
    %880 = vmatpush1.msra.mxu0 %v116
    %881 = vmatprep.subr.mxu0 0.0
    %882 = vmatpush1.msra.mxu0 %v119
    %883 = vmatprep.subr.mxu0 0.0
    %884 = vmatpush1.msra.mxu0 %v122
    %885 = vmatprep.subr.mxu0 0.0
    %886 = vmatpush1.msra.mxu0 %v125
    %887 = vmatprep.subr.mxu0 0.0
    %888 = vmatpush1.msra.mxu0 %v128
    %889 = vmatprep.subr.mxu0 0.0
    %890 = vmatpush1.msra.mxu0 %v131
    %891 = vmatprep.subr.mxu0 0.0
    %892 = vmatpush1.msra.mxu0 0.0
    %893 = vmatprep.subr.mxu0 0.0
    %894 = vmatpush1.msra.mxu0 0.0
    %895 = vmatprep.subr.mxu0 0.0
    %896 = vmatpush1.msra.mxu0 0.0
    %897 = vmatprep.subr.mxu0 0.0
    %898 = vmatpush1.msra.mxu0 0.0
    %899 = vmatprep.subr.mxu0 0.0
    %900 = vmatpush1.msra.mxu0 0.0
    %901 = vmatprep.subr.mxu0 0.0
    %902 = vmatpush1.msra.mxu0 0.0
    %903 = vmatprep.subr.mxu0 0.0
    %904 = vmatpush1.msra.mxu0 0.0
    %905 = vmatprep.subr.mxu0 0.0
    %906 = vmatpush1.msra.mxu0 0.0
    %907 = vmatprep.subr.mxu0 0.0
    %908 = vmatpush1.msra.mxu0 0.0
    %909 = vmatprep.subr.mxu0 0.0
    %910 = vmatpush1.msra.mxu0 0.0
    %911 = vmatprep.subr.mxu0 0.0
    %912 = vmatpush1.msra.mxu0 0.0
    %913 = vmatprep.subr.mxu0 0.0
    %914 = vmatpush1.msra.mxu0 0.0
    %915 = vmatprep.subr.mxu0 0.0
    %916 = vmatpush1.msra.mxu0 0.0
    %917 = vmatprep.subr.mxu0 0.0
    %918 = vmatpush1.msra.mxu0 0.0
    %919 = vmatprep.subr.mxu0 0.0
    %920 = vmatpush1.msra.mxu0 0.0
    %921 = vmatprep.subr.mxu0 0.0
    %922 = vmatpush1.msra.mxu0 0.0
    %923 = vmatprep.mubr.f32.mxu0 0.0
    %924 = vmatmul.mubr.f32.gmra.mrb[0].mxu0 %v779
    %v925 = vpop.f32.mrb[0].mxu0
    %v926 = vadd.f32 0.0, %v925
    %v927 = vpop.f32.mrb[0].mxu0
    %928 = vdwg.mxu0
    %v929 = vadd.f32 %v785, %v855
    %v930 = vxor.u32 %v929, 2147483648
    %v931 = vmul.f32 %v930, 1.442695
    %v932 = vpow.pop %v931
    %v933 = vadd.f32 %v932, 1.0
    %v934 = vrcp.pop %v933
    %v935 = vmul.f32 1.0, %v934
    %v936 = vadd.f32 %v786, %v857
    %v937 = vxor.u32 %v936, 2147483648
    %v938 = vmul.f32 %v937, 1.442695
    %v939 = vpow.pop %v938
    %v940 = vadd.f32 %v939, 1.0
    %v941 = vrcp.pop %v940
    %v942 = vmul.f32 1.0, %v941
    %v943 = vadd.f32 %v926, %v137
    %v944 = vmul.f32 %v935, %v943
    %v945 = vadd.f32 %v787, %v944
    %v946 = vtanh.pop %v945
    %v947 = vsub.f32 %v779, %v946
    %v948 = vmul.f32 %v942, %v947
    %v949 = vadd.f32 %v946, %v948
    %s950 = scalar_lea.vmem [#allocation3], 16
    %951 = vst [vmem:[%s950] sm:$0xff] %v949
    %s952 = smul.u32 3, 3
    %s953 = smul.addr %s952, 8
    %s954 = scalar_lea.vmem [#allocation2], %s953
    %v955 = vld [vmem:[%s954] sm:$0xff]
    %v956 = vld [vmem:[%s954 + $0x8] sm:$0xff]
    %v957 = vld [vmem:[%s954 + $0x10] sm:$0xff]
    %958 = vmatprep.subr.mxu0 %v85
    %959 = vmatpush1.msra.mxu0 %v84
    %960 = vmatprep.subr.mxu0 %v88
    %961 = vmatpush1.msra.mxu0 %v87
    %962 = vmatprep.subr.mxu0 %v91
    %963 = vmatpush1.msra.mxu0 %v90
    %964 = vmatprep.subr.mxu0 %v94
    %965 = vmatpush1.msra.mxu0 %v93
    %966 = vmatprep.subr.mxu0 %v97
    %967 = vmatpush1.msra.mxu0 %v96
    %968 = vmatprep.subr.mxu0 %v100
    %969 = vmatpush1.msra.mxu0 %v99
    %970 = vmatprep.subr.mxu0 %v103
    %971 = vmatpush1.msra.mxu0 %v102
    %972 = vmatprep.subr.mxu0 %v106
    %973 = vmatpush1.msra.mxu0 %v105
    %974 = vmatprep.subr.mxu0 %v109
    %975 = vmatpush1.msra.mxu0 %v108
    %976 = vmatprep.subr.mxu0 %v112
    %977 = vmatpush1.msra.mxu0 %v111
    %978 = vmatprep.subr.mxu0 %v115
    %979 = vmatpush1.msra.mxu0 %v114
    %980 = vmatprep.subr.mxu0 %v118
    %981 = vmatpush1.msra.mxu0 %v117
    %982 = vmatprep.subr.mxu0 %v121
    %983 = vmatpush1.msra.mxu0 %v120
    %984 = vmatprep.subr.mxu0 %v124
    %985 = vmatpush1.msra.mxu0 %v123
    %986 = vmatprep.subr.mxu0 %v127
    %987 = vmatpush1.msra.mxu0 %v126
    %988 = vmatprep.subr.mxu0 %v130
    %989 = vmatpush1.msra.mxu0 %v129
    %990 = vmatprep.subr.mxu0 0.0
    %991 = vmatpush1.msra.mxu0 0.0
    %992 = vmatprep.subr.mxu0 0.0
    %993 = vmatpush1.msra.mxu0 0.0
    %994 = vmatprep.subr.mxu0 0.0
    %995 = vmatpush1.msra.mxu0 0.0
    %996 = vmatprep.subr.mxu0 0.0
    %997 = vmatpush1.msra.mxu0 0.0
    %998 = vmatprep.subr.mxu0 0.0
    %999 = vmatpush1.msra.mxu0 0.0
    %1000 = vmatprep.subr.mxu0 0.0
    %1001 = vmatpush1.msra.mxu0 0.0
    %1002 = vmatprep.subr.mxu0 0.0
    %1003 = vmatpush1.msra.mxu0 0.0
    %1004 = vmatprep.subr.mxu0 0.0
    %1005 = vmatpush1.msra.mxu0 0.0
    %1006 = vmatprep.subr.mxu0 0.0
    %1007 = vmatpush1.msra.mxu0 0.0
    %1008 = vmatprep.subr.mxu0 0.0
    %1009 = vmatpush1.msra.mxu0 0.0
    %1010 = vmatprep.subr.mxu0 0.0
    %1011 = vmatpush1.msra.mxu0 0.0
    %1012 = vmatprep.subr.mxu0 0.0
    %1013 = vmatpush1.msra.mxu0 0.0
    %1014 = vmatprep.subr.mxu0 0.0
    %1015 = vmatpush1.msra.mxu0 0.0
    %1016 = vmatprep.subr.mxu0 0.0
    %1017 = vmatpush1.msra.mxu0 0.0
    %1018 = vmatprep.subr.mxu0 0.0
    %1019 = vmatpush1.msra.mxu0 0.0
    %1020 = vmatprep.subr.mxu0 0.0
    %1021 = vmatpush1.msra.mxu0 0.0
    %1022 = vmatprep.mubr.f32.mxu0 0.0
    %1023 = vmatmul.mubr.f32.gmra.mrb[0].mxu0 %v949
    %v1024 = vpop.f32.mrb[0].mxu0
    %v1025 = vadd.f32 0.0, %v1024
    %v1026 = vpop.f32.mrb[0].mxu0
    %v1027 = vadd.f32 0.0, %v1026
    %1028 = vdwg.mxu0
    %1029 = vmatprep.subr.mxu0 0.0
    %1030 = vmatpush1.msra.mxu0 %v86
    %1031 = vmatprep.subr.mxu0 0.0
    %1032 = vmatpush1.msra.mxu0 %v89
    %1033 = vmatprep.subr.mxu0 0.0
    %1034 = vmatpush1.msra.mxu0 %v92
    %1035 = vmatprep.subr.mxu0 0.0
    %1036 = vmatpush1.msra.mxu0 %v95
    %1037 = vmatprep.subr.mxu0 0.0
    %1038 = vmatpush1.msra.mxu0 %v98
    %1039 = vmatprep.subr.mxu0 0.0
    %1040 = vmatpush1.msra.mxu0 %v101
    %1041 = vmatprep.subr.mxu0 0.0
    %1042 = vmatpush1.msra.mxu0 %v104
    %1043 = vmatprep.subr.mxu0 0.0
    %1044 = vmatpush1.msra.mxu0 %v107
    %1045 = vmatprep.subr.mxu0 0.0
    %1046 = vmatpush1.msra.mxu0 %v110
    %1047 = vmatprep.subr.mxu0 0.0
    %1048 = vmatpush1.msra.mxu0 %v113
    %1049 = vmatprep.subr.mxu0 0.0
    %1050 = vmatpush1.msra.mxu0 %v116
    %1051 = vmatprep.subr.mxu0 0.0
    %1052 = vmatpush1.msra.mxu0 %v119
    %1053 = vmatprep.subr.mxu0 0.0
    %1054 = vmatpush1.msra.mxu0 %v122
    %1055 = vmatprep.subr.mxu0 0.0
    %1056 = vmatpush1.msra.mxu0 %v125
    %1057 = vmatprep.subr.mxu0 0.0
    %1058 = vmatpush1.msra.mxu0 %v128
    %1059 = vmatprep.subr.mxu0 0.0
    %1060 = vmatpush1.msra.mxu0 %v131
    %1061 = vmatprep.subr.mxu0 0.0
    %1062 = vmatpush1.msra.mxu0 0.0
    %1063 = vmatprep.subr.mxu0 0.0
    %1064 = vmatpush1.msra.mxu0 0.0
    %1065 = vmatprep.subr.mxu0 0.0
    %1066 = vmatpush1.msra.mxu0 0.0
    %1067 = vmatprep.subr.mxu0 0.0
    %1068 = vmatpush1.msra.mxu0 0.0
    %1069 = vmatprep.subr.mxu0 0.0
    %1070 = vmatpush1.msra.mxu0 0.0
    %1071 = vmatprep.subr.mxu0 0.0
    %1072 = vmatpush1.msra.mxu0 0.0
    %1073 = vmatprep.subr.mxu0 0.0
    %1074 = vmatpush1.msra.mxu0 0.0
    %1075 = vmatprep.subr.mxu0 0.0
    %1076 = vmatpush1.msra.mxu0 0.0
    %1077 = vmatprep.subr.mxu0 0.0
    %1078 = vmatpush1.msra.mxu0 0.0
    %1079 = vmatprep.subr.mxu0 0.0
    %1080 = vmatpush1.msra.mxu0 0.0
    %1081 = vmatprep.subr.mxu0 0.0
    %1082 = vmatpush1.msra.mxu0 0.0
    %1083 = vmatprep.subr.mxu0 0.0
    %1084 = vmatpush1.msra.mxu0 0.0
    %1085 = vmatprep.subr.mxu0 0.0
    %1086 = vmatpush1.msra.mxu0 0.0
    %1087 = vmatprep.subr.mxu0 0.0
    %1088 = vmatpush1.msra.mxu0 0.0
    %1089 = vmatprep.subr.mxu0 0.0
    %1090 = vmatpush1.msra.mxu0 0.0
    %1091 = vmatprep.subr.mxu0 0.0
    %1092 = vmatpush1.msra.mxu0 0.0
    %1093 = vmatprep.mubr.f32.mxu0 0.0
    %1094 = vmatmul.mubr.f32.gmra.mrb[0].mxu0 %v949
    %v1095 = vpop.f32.mrb[0].mxu0
    %v1096 = vadd.f32 0.0, %v1095
    %v1097 = vpop.f32.mrb[0].mxu0
    %1098 = vdwg.mxu0
    %v1099 = vadd.f32 %v955, %v1025
    %v1100 = vxor.u32 %v1099, 2147483648
    %v1101 = vmul.f32 %v1100, 1.442695
    %v1102 = vpow.pop %v1101
    %v1103 = vadd.f32 %v1102, 1.0
    %v1104 = vrcp.pop %v1103
    %v1105 = vmul.f32 1.0, %v1104
    %v1106 = vadd.f32 %v956, %v1027
    %v1107 = vxor.u32 %v1106, 2147483648
    %v1108 = vmul.f32 %v1107, 1.442695
    %v1109 = vpow.pop %v1108
    %v1110 = vadd.f32 %v1109, 1.0
    %v1111 = vrcp.pop %v1110
    %v1112 = vmul.f32 1.0, %v1111
    %v1113 = vadd.f32 %v1096, %v137
    %v1114 = vmul.f32 %v1105, %v1113
    %v1115 = vadd.f32 %v957, %v1114
    %v1116 = vtanh.pop %v1115
    %v1117 = vsub.f32 %v949, %v1116
    %v1118 = vmul.f32 %v1112, %v1117
    %v1119 = vadd.f32 %v1116, %v1118
    %s1120 = scalar_lea.vmem [#allocation3], 24
    %1121 = vst [vmem:[%s1120] sm:$0xff] %v1119
    %s1122 = smul.u32 4, 3
    %s1123 = smul.addr %s1122, 8
    %s1124 = scalar_lea.vmem [#allocation2], %s1123
    %v1125 = vld [vmem:[%s1124] sm:$0xff]
    %v1126 = vld [vmem:[%s1124 + $0x8] sm:$0xff]
    %v1127 = vld [vmem:[%s1124 + $0x10] sm:$0xff]
    %1128 = vmatprep.subr.mxu0 %v85
    %1129 = vmatpush1.msra.mxu0 %v84
    %1130 = vmatprep.subr.mxu0 %v88
    %1131 = vmatpush1.msra.mxu0 %v87
    %1132 = vmatprep.subr.mxu0 %v91
    %1133 = vmatpush1.msra.mxu0 %v90
    %1134 = vmatprep.subr.mxu0 %v94
    %1135 = vmatpush1.msra.mxu0 %v93
    %1136 = vmatprep.subr.mxu0 %v97
    %1137 = vmatpush1.msra.mxu0 %v96
    %1138 = vmatprep.subr.mxu0 %v100
    %1139 = vmatpush1.msra.mxu0 %v99
    %1140 = vmatprep.subr.mxu0 %v103
    %1141 = vmatpush1.msra.mxu0 %v102
    %1142 = vmatprep.subr.mxu0 %v106
    %1143 = vmatpush1.msra.mxu0 %v105
    %1144 = vmatprep.subr.mxu0 %v109
    %1145 = vmatpush1.msra.mxu0 %v108
    %1146 = vmatprep.subr.mxu0 %v112
    %1147 = vmatpush1.msra.mxu0 %v111
    %1148 = vmatprep.subr.mxu0 %v115
    %1149 = vmatpush1.msra.mxu0 %v114
    %1150 = vmatprep.subr.mxu0 %v118
    %1151 = vmatpush1.msra.mxu0 %v117
    %1152 = vmatprep.subr.mxu0 %v121
    %1153 = vmatpush1.msra.mxu0 %v120
    %1154 = vmatprep.subr.mxu0 %v124
    %1155 = vmatpush1.msra.mxu0 %v123
    %1156 = vmatprep.subr.mxu0 %v127
    %1157 = vmatpush1.msra.mxu0 %v126
    %1158 = vmatprep.subr.mxu0 %v130
    %1159 = vmatpush1.msra.mxu0 %v129
    %1160 = vmatprep.subr.mxu0 0.0
    %1161 = vmatpush1.msra.mxu0 0.0
    %1162 = vmatprep.subr.mxu0 0.0
    %1163 = vmatpush1.msra.mxu0 0.0
    %1164 = vmatprep.subr.mxu0 0.0
    %1165 = vmatpush1.msra.mxu0 0.0
    %1166 = vmatprep.subr.mxu0 0.0
    %1167 = vmatpush1.msra.mxu0 0.0
    %1168 = vmatprep.subr.mxu0 0.0
    %1169 = vmatpush1.msra.mxu0 0.0
    %1170 = vmatprep.subr.mxu0 0.0
    %1171 = vmatpush1.msra.mxu0 0.0
    %1172 = vmatprep.subr.mxu0 0.0
    %1173 = vmatpush1.msra.mxu0 0.0
    %1174 = vmatprep.subr.mxu0 0.0
    %1175 = vmatpush1.msra.mxu0 0.0
    %1176 = vmatprep.subr.mxu0 0.0
    %1177 = vmatpush1.msra.mxu0 0.0
    %1178 = vmatprep.subr.mxu0 0.0
    %1179 = vmatpush1.msra.mxu0 0.0
    %1180 = vmatprep.subr.mxu0 0.0
    %1181 = vmatpush1.msra.mxu0 0.0
    %1182 = vmatprep.subr.mxu0 0.0
    %1183 = vmatpush1.msra.mxu0 0.0
    %1184 = vmatprep.subr.mxu0 0.0
    %1185 = vmatpush1.msra.mxu0 0.0
    %1186 = vmatprep.subr.mxu0 0.0
    %1187 = vmatpush1.msra.mxu0 0.0
    %1188 = vmatprep.subr.mxu0 0.0
    %1189 = vmatpush1.msra.mxu0 0.0
    %1190 = vmatprep.subr.mxu0 0.0
    %1191 = vmatpush1.msra.mxu0 0.0
    %1192 = vmatprep.mubr.f32.mxu0 0.0
    %1193 = vmatmul.mubr.f32.gmra.mrb[0].mxu0 %v1119
    %v1194 = vpop.f32.mrb[0].mxu0
    %v1195 = vadd.f32 0.0, %v1194
    %v1196 = vpop.f32.mrb[0].mxu0
    %v1197 = vadd.f32 0.0, %v1196
    %1198 = vdwg.mxu0
    %1199 = vmatprep.subr.mxu0 0.0
    %1200 = vmatpush1.msra.mxu0 %v86
    %1201 = vmatprep.subr.mxu0 0.0
    %1202 = vmatpush1.msra.mxu0 %v89
    %1203 = vmatprep.subr.mxu0 0.0
    %1204 = vmatpush1.msra.mxu0 %v92
    %1205 = vmatprep.subr.mxu0 0.0
    %1206 = vmatpush1.msra.mxu0 %v95
    %1207 = vmatprep.subr.mxu0 0.0
    %1208 = vmatpush1.msra.mxu0 %v98
    %1209 = vmatprep.subr.mxu0 0.0
    %1210 = vmatpush1.msra.mxu0 %v101
    %1211 = vmatprep.subr.mxu0 0.0
    %1212 = vmatpush1.msra.mxu0 %v104
    %1213 = vmatprep.subr.mxu0 0.0
    %1214 = vmatpush1.msra.mxu0 %v107
    %1215 = vmatprep.subr.mxu0 0.0
    %1216 = vmatpush1.msra.mxu0 %v110
    %1217 = vmatprep.subr.mxu0 0.0
    %1218 = vmatpush1.msra.mxu0 %v113
    %1219 = vmatprep.subr.mxu0 0.0
    %1220 = vmatpush1.msra.mxu0 %v116
    %1221 = vmatprep.subr.mxu0 0.0
    %1222 = vmatpush1.msra.mxu0 %v119
    %1223 = vmatprep.subr.mxu0 0.0
    %1224 = vmatpush1.msra.mxu0 %v122
    %1225 = vmatprep.subr.mxu0 0.0
    %1226 = vmatpush1.msra.mxu0 %v125
    %1227 = vmatprep.subr.mxu0 0.0
    %1228 = vmatpush1.msra.mxu0 %v128
    %1229 = vmatprep.subr.mxu0 0.0
    %1230 = vmatpush1.msra.mxu0 %v131
    %1231 = vmatprep.subr.mxu0 0.0
    %1232 = vmatpush1.msra.mxu0 0.0
    %1233 = vmatprep.subr.mxu0 0.0
    %1234 = vmatpush1.msra.mxu0 0.0
    %1235 = vmatprep.subr.mxu0 0.0
    %1236 = vmatpush1.msra.mxu0 0.0
    %1237 = vmatprep.subr.mxu0 0.0
    %1238 = vmatpush1.msra.mxu0 0.0
    %1239 = vmatprep.subr.mxu0 0.0
    %1240 = vmatpush1.msra.mxu0 0.0
    %1241 = vmatprep.subr.mxu0 0.0
    %1242 = vmatpush1.msra.mxu0 0.0
    %1243 = vmatprep.subr.mxu0 0.0
    %1244 = vmatpush1.msra.mxu0 0.0
    %1245 = vmatprep.subr.mxu0 0.0
    %1246 = vmatpush1.msra.mxu0 0.0
    %1247 = vmatprep.subr.mxu0 0.0
    %1248 = vmatpush1.msra.mxu0 0.0
    %1249 = vmatprep.subr.mxu0 0.0
    %1250 = vmatpush1.msra.mxu0 0.0
    %1251 = vmatprep.subr.mxu0 0.0
    %1252 = vmatpush1.msra.mxu0 0.0
    %1253 = vmatprep.subr.mxu0 0.0
    %1254 = vmatpush1.msra.mxu0 0.0
    %1255 = vmatprep.subr.mxu0 0.0
    %1256 = vmatpush1.msra.mxu0 0.0
    %1257 = vmatprep.subr.mxu0 0.0
    %1258 = vmatpush1.msra.mxu0 0.0
    %1259 = vmatprep.subr.mxu0 0.0
    %1260 = vmatpush1.msra.mxu0 0.0
    %1261 = vmatprep.subr.mxu0 0.0
    %1262 = vmatpush1.msra.mxu0 0.0
    %1263 = vmatprep.mubr.f32.mxu0 0.0
    %1264 = vmatmul.mubr.f32.gmra.mrb[0].mxu0 %v1119
    %v1265 = vpop.f32.mrb[0].mxu0
    %v1266 = vadd.f32 0.0, %v1265
    %v1267 = vpop.f32.mrb[0].mxu0
    %1268 = vdwg.mxu0
    %v1269 = vadd.f32 %v1125, %v1195
    %v1270 = vxor.u32 %v1269, 2147483648
    %v1271 = vmul.f32 %v1270, 1.442695
    %v1272 = vpow.pop %v1271
    %v1273 = vadd.f32 %v1272, 1.0
    %v1274 = vrcp.pop %v1273
    %v1275 = vmul.f32 1.0, %v1274
    %v1276 = vadd.f32 %v1126, %v1197
    %v1277 = vxor.u32 %v1276, 2147483648
    %v1278 = vmul.f32 %v1277, 1.442695
    %v1279 = vpow.pop %v1278
    %v1280 = vadd.f32 %v1279, 1.0
    %v1281 = vrcp.pop %v1280
    %v1282 = vmul.f32 1.0, %v1281
    %v1283 = vadd.f32 %v1266, %v137
    %v1284 = vmul.f32 %v1275, %v1283
    %v1285 = vadd.f32 %v1127, %v1284
    %v1286 = vtanh.pop %v1285
    %v1287 = vsub.f32 %v1119, %v1286
    %v1288 = vmul.f32 %v1282, %v1287
    %v1289 = vadd.f32 %v1286, %v1288
    %s1290 = scalar_lea.vmem [#allocation3], 32
    %1291 = vst [vmem:[%s1290] sm:$0xff] %v1289
    %s1292 = smul.u32 5, 3
    %s1293 = smul.addr %s1292, 8
    %s1294 = scalar_lea.vmem [#allocation2], %s1293
    %v1295 = vld [vmem:[%s1294] sm:$0xff]
    %v1296 = vld [vmem:[%s1294 + $0x8] sm:$0xff]
    %v1297 = vld [vmem:[%s1294 + $0x10] sm:$0xff]
    %1298 = vmatprep.subr.mxu0 %v85
    %1299 = vmatpush1.msra.mxu0 %v84
    %1300 = vmatprep.subr.mxu0 %v88
    %1301 = vmatpush1.msra.mxu0 %v87
    %1302 = vmatprep.subr.mxu0 %v91
    %1303 = vmatpush1.msra.mxu0 %v90
    %1304 = vmatprep.subr.mxu0 %v94
    %1305 = vmatpush1.msra.mxu0 %v93
    %1306 = vmatprep.subr.mxu0 %v97
    %1307 = vmatpush1.msra.mxu0 %v96
    %1308 = vmatprep.subr.mxu0 %v100
    %1309 = vmatpush1.msra.mxu0 %v99
    %1310 = vmatprep.subr.mxu0 %v103
    %1311 = vmatpush1.msra.mxu0 %v102
    %1312 = vmatprep.subr.mxu0 %v106
    %1313 = vmatpush1.msra.mxu0 %v105
    %1314 = vmatprep.subr.mxu0 %v109
    %1315 = vmatpush1.msra.mxu0 %v108
    %1316 = vmatprep.subr.mxu0 %v112
    %1317 = vmatpush1.msra.mxu0 %v111
    %1318 = vmatprep.subr.mxu0 %v115
    %1319 = vmatpush1.msra.mxu0 %v114
    %1320 = vmatprep.subr.mxu0 %v118
    %1321 = vmatpush1.msra.mxu0 %v117
    %1322 = vmatprep.subr.mxu0 %v121
    %1323 = vmatpush1.msra.mxu0 %v120
    %1324 = vmatprep.subr.mxu0 %v124
    %1325 = vmatpush1.msra.mxu0 %v123
    %1326 = vmatprep.subr.mxu0 %v127
    %1327 = vmatpush1.msra.mxu0 %v126
    %1328 = vmatprep.subr.mxu0 %v130
    %1329 = vmatpush1.msra.mxu0 %v129
    %1330 = vmatprep.subr.mxu0 0.0
    %1331 = vmatpush1.msra.mxu0 0.0
    %1332 = vmatprep.subr.mxu0 0.0
    %1333 = vmatpush1.msra.mxu0 0.0
    %1334 = vmatprep.subr.mxu0 0.0
    %1335 = vmatpush1.msra.mxu0 0.0
    %1336 = vmatprep.subr.mxu0 0.0
    %1337 = vmatpush1.msra.mxu0 0.0
    %1338 = vmatprep.subr.mxu0 0.0
    %1339 = vmatpush1.msra.mxu0 0.0
    %1340 = vmatprep.subr.mxu0 0.0
    %1341 = vmatpush1.msra.mxu0 0.0
    %1342 = vmatprep.subr.mxu0 0.0
    %1343 = vmatpush1.msra.mxu0 0.0
    %1344 = vmatprep.subr.mxu0 0.0
    %1345 = vmatpush1.msra.mxu0 0.0
    %1346 = vmatprep.subr.mxu0 0.0
    %1347 = vmatpush1.msra.mxu0 0.0
    %1348 = vmatprep.subr.mxu0 0.0
    %1349 = vmatpush1.msra.mxu0 0.0
    %1350 = vmatprep.subr.mxu0 0.0
    %1351 = vmatpush1.msra.mxu0 0.0
    %1352 = vmatprep.subr.mxu0 0.0
    %1353 = vmatpush1.msra.mxu0 0.0
    %1354 = vmatprep.subr.mxu0 0.0
    %1355 = vmatpush1.msra.mxu0 0.0
    %1356 = vmatprep.subr.mxu0 0.0
    %1357 = vmatpush1.msra.mxu0 0.0
    %1358 = vmatprep.subr.mxu0 0.0
    %1359 = vmatpush1.msra.mxu0 0.0
    %1360 = vmatprep.subr.mxu0 0.0
    %1361 = vmatpush1.msra.mxu0 0.0
    %1362 = vmatprep.mubr.f32.mxu0 0.0
    %1363 = vmatmul.mubr.f32.gmra.mrb[0].mxu0 %v1289
    %v1364 = vpop.f32.mrb[0].mxu0
    %v1365 = vadd.f32 0.0, %v1364
    %v1366 = vpop.f32.mrb[0].mxu0
    %v1367 = vadd.f32 0.0, %v1366
    %1368 = vdwg.mxu0
    %1369 = vmatprep.subr.mxu0 0.0
    %1370 = vmatpush1.msra.mxu0 %v86
    %1371 = vmatprep.subr.mxu0 0.0
    %1372 = vmatpush1.msra.mxu0 %v89
    %1373 = vmatprep.subr.mxu0 0.0
    %1374 = vmatpush1.msra.mxu0 %v92
    %1375 = vmatprep.subr.mxu0 0.0
    %1376 = vmatpush1.msra.mxu0 %v95
    %1377 = vmatprep.subr.mxu0 0.0
    %1378 = vmatpush1.msra.mxu0 %v98
    %1379 = vmatprep.subr.mxu0 0.0
    %1380 = vmatpush1.msra.mxu0 %v101
    %1381 = vmatprep.subr.mxu0 0.0
    %1382 = vmatpush1.msra.mxu0 %v104
    %1383 = vmatprep.subr.mxu0 0.0
    %1384 = vmatpush1.msra.mxu0 %v107
    %1385 = vmatprep.subr.mxu0 0.0
    %1386 = vmatpush1.msra.mxu0 %v110
    %1387 = vmatprep.subr.mxu0 0.0
    %1388 = vmatpush1.msra.mxu0 %v113
    %1389 = vmatprep.subr.mxu0 0.0
    %1390 = vmatpush1.msra.mxu0 %v116
    %1391 = vmatprep.subr.mxu0 0.0
    %1392 = vmatpush1.msra.mxu0 %v119
    %1393 = vmatprep.subr.mxu0 0.0
    %1394 = vmatpush1.msra.mxu0 %v122
    %1395 = vmatprep.subr.mxu0 0.0
    %1396 = vmatpush1.msra.mxu0 %v125
    %1397 = vmatprep.subr.mxu0 0.0
    %1398 = vmatpush1.msra.mxu0 %v128
    %1399 = vmatprep.subr.mxu0 0.0
    %1400 = vmatpush1.msra.mxu0 %v131
    %1401 = vmatprep.subr.mxu0 0.0
    %1402 = vmatpush1.msra.mxu0 0.0
    %1403 = vmatprep.subr.mxu0 0.0
    %1404 = vmatpush1.msra.mxu0 0.0
    %1405 = vmatprep.subr.mxu0 0.0
    %1406 = vmatpush1.msra.mxu0 0.0
    %1407 = vmatprep.subr.mxu0 0.0
    %1408 = vmatpush1.msra.mxu0 0.0
    %1409 = vmatprep.subr.mxu0 0.0
    %1410 = vmatpush1.msra.mxu0 0.0
    %1411 = vmatprep.subr.mxu0 0.0
    %1412 = vmatpush1.msra.mxu0 0.0
    %1413 = vmatprep.subr.mxu0 0.0
    %1414 = vmatpush1.msra.mxu0 0.0
    %1415 = vmatprep.subr.mxu0 0.0
    %1416 = vmatpush1.msra.mxu0 0.0
    %1417 = vmatprep.subr.mxu0 0.0
    %1418 = vmatpush1.msra.mxu0 0.0
    %1419 = vmatprep.subr.mxu0 0.0
    %1420 = vmatpush1.msra.mxu0 0.0
    %1421 = vmatprep.subr.mxu0 0.0
    %1422 = vmatpush1.msra.mxu0 0.0
    %1423 = vmatprep.subr.mxu0 0.0
    %1424 = vmatpush1.msra.mxu0 0.0
    %1425 = vmatprep.subr.mxu0 0.0
    %1426 = vmatpush1.msra.mxu0 0.0
    %1427 = vmatprep.subr.mxu0 0.0
    %1428 = vmatpush1.msra.mxu0 0.0
    %1429 = vmatprep.subr.mxu0 0.0
    %1430 = vmatpush1.msra.mxu0 0.0
    %1431 = vmatprep.subr.mxu0 0.0
    %1432 = vmatpush1.msra.mxu0 0.0
    %1433 = vmatprep.mubr.f32.mxu0 0.0
    %1434 = vmatmul.mubr.f32.gmra.mrb[0].mxu0 %v1289
    %v1435 = vpop.f32.mrb[0].mxu0
    %v1436 = vadd.f32 0.0, %v1435
    %v1437 = vpop.f32.mrb[0].mxu0
    %1438 = vdwg.mxu0
    %v1439 = vadd.f32 %v1295, %v1365
    %v1440 = vxor.u32 %v1439, 2147483648
    %v1441 = vmul.f32 %v1440, 1.442695
    %v1442 = vpow.pop %v1441
    %v1443 = vadd.f32 %v1442, 1.0
    %v1444 = vrcp.pop %v1443
    %v1445 = vmul.f32 1.0, %v1444
    %v1446 = vadd.f32 %v1296, %v1367
    %v1447 = vxor.u32 %v1446, 2147483648
    %v1448 = vmul.f32 %v1447, 1.442695
    %v1449 = vpow.pop %v1448
    %v1450 = vadd.f32 %v1449, 1.0
    %v1451 = vrcp.pop %v1450
    %v1452 = vmul.f32 1.0, %v1451
    %v1453 = vadd.f32 %v1436, %v137
    %v1454 = vmul.f32 %v1445, %v1453
    %v1455 = vadd.f32 %v1297, %v1454
    %v1456 = vtanh.pop %v1455
    %v1457 = vsub.f32 %v1289, %v1456
    %v1458 = vmul.f32 %v1452, %v1457
    %v1459 = vadd.f32 %v1456, %v1458
    %s1460 = scalar_lea.vmem [#allocation3], 40
    %1461 = vst [vmem:[%s1460] sm:$0xff] %v1459
    %s1462 = smul.u32 6, 3
    %s1463 = smul.addr %s1462, 8
    %s1464 = scalar_lea.vmem [#allocation2], %s1463
    %v1465 = vld [vmem:[%s1464] sm:$0xff]
    %v1466 = vld [vmem:[%s1464 + $0x8] sm:$0xff]
    %v1467 = vld [vmem:[%s1464 + $0x10] sm:$0xff]
    %1468 = vmatprep.subr.mxu0 %v85
    %1469 = vmatpush1.msra.mxu0 %v84
    %1470 = vmatprep.subr.mxu0 %v88
    %1471 = vmatpush1.msra.mxu0 %v87
    %1472 = vmatprep.subr.mxu0 %v91
    %1473 = vmatpush1.msra.mxu0 %v90
    %1474 = vmatprep.subr.mxu0 %v94
    %1475 = vmatpush1.msra.mxu0 %v93
    %1476 = vmatprep.subr.mxu0 %v97
    %1477 = vmatpush1.msra.mxu0 %v96
    %1478 = vmatprep.subr.mxu0 %v100
    %1479 = vmatpush1.msra.mxu0 %v99
    %1480 = vmatprep.subr.mxu0 %v103
    %1481 = vmatpush1.msra.mxu0 %v102
    %1482 = vmatprep.subr.mxu0 %v106
    %1483 = vmatpush1.msra.mxu0 %v105
    %1484 = vmatprep.subr.mxu0 %v109
    %1485 = vmatpush1.msra.mxu0 %v108
    %1486 = vmatprep.subr.mxu0 %v112
    %1487 = vmatpush1.msra.mxu0 %v111
    %1488 = vmatprep.subr.mxu0 %v115
    %1489 = vmatpush1.msra.mxu0 %v114
    %1490 = vmatprep.subr.mxu0 %v118
    %1491 = vmatpush1.msra.mxu0 %v117
    %1492 = vmatprep.subr.mxu0 %v121
    %1493 = vmatpush1.msra.mxu0 %v120
    %1494 = vmatprep.subr.mxu0 %v124
    %1495 = vmatpush1.msra.mxu0 %v123
    %1496 = vmatprep.subr.mxu0 %v127
    %1497 = vmatpush1.msra.mxu0 %v126
    %1498 = vmatprep.subr.mxu0 %v130
    %1499 = vmatpush1.msra.mxu0 %v129
    %1500 = vmatprep.subr.mxu0 0.0
    %1501 = vmatpush1.msra.mxu0 0.0
    %1502 = vmatprep.subr.mxu0 0.0
    %1503 = vmatpush1.msra.mxu0 0.0
    %1504 = vmatprep.subr.mxu0 0.0
    %1505 = vmatpush1.msra.mxu0 0.0
    %1506 = vmatprep.subr.mxu0 0.0
    %1507 = vmatpush1.msra.mxu0 0.0
    %1508 = vmatprep.subr.mxu0 0.0
    %1509 = vmatpush1.msra.mxu0 0.0
    %1510 = vmatprep.subr.mxu0 0.0
    %1511 = vmatpush1.msra.mxu0 0.0
    %1512 = vmatprep.subr.mxu0 0.0
    %1513 = vmatpush1.msra.mxu0 0.0
    %1514 = vmatprep.subr.mxu0 0.0
    %1515 = vmatpush1.msra.mxu0 0.0
    %1516 = vmatprep.subr.mxu0 0.0
    %1517 = vmatpush1.msra.mxu0 0.0
    %1518 = vmatprep.subr.mxu0 0.0
    %1519 = vmatpush1.msra.mxu0 0.0
    %1520 = vmatprep.subr.mxu0 0.0
    %1521 = vmatpush1.msra.mxu0 0.0
    %1522 = vmatprep.subr.mxu0 0.0
    %1523 = vmatpush1.msra.mxu0 0.0
    %1524 = vmatprep.subr.mxu0 0.0
    %1525 = vmatpush1.msra.mxu0 0.0
    %1526 = vmatprep.subr.mxu0 0.0
    %1527 = vmatpush1.msra.mxu0 0.0
    %1528 = vmatprep.subr.mxu0 0.0
    %1529 = vmatpush1.msra.mxu0 0.0
    %1530 = vmatprep.subr.mxu0 0.0
    %1531 = vmatpush1.msra.mxu0 0.0
    %1532 = vmatprep.mubr.f32.mxu0 0.0
    %1533 = vmatmul.mubr.f32.gmra.mrb[0].mxu0 %v1459
    %v1534 = vpop.f32.mrb[0].mxu0
    %v1535 = vadd.f32 0.0, %v1534
    %v1536 = vpop.f32.mrb[0].mxu0
    %v1537 = vadd.f32 0.0, %v1536
    %1538 = vdwg.mxu0
    %1539 = vmatprep.subr.mxu0 0.0
    %1540 = vmatpush1.msra.mxu0 %v86
    %1541 = vmatprep.subr.mxu0 0.0
    %1542 = vmatpush1.msra.mxu0 %v89
    %1543 = vmatprep.subr.mxu0 0.0
    %1544 = vmatpush1.msra.mxu0 %v92
    %1545 = vmatprep.subr.mxu0 0.0
    %1546 = vmatpush1.msra.mxu0 %v95
    %1547 = vmatprep.subr.mxu0 0.0
    %1548 = vmatpush1.msra.mxu0 %v98
    %1549 = vmatprep.subr.mxu0 0.0
    %1550 = vmatpush1.msra.mxu0 %v101
    %1551 = vmatprep.subr.mxu0 0.0
    %1552 = vmatpush1.msra.mxu0 %v104
    %1553 = vmatprep.subr.mxu0 0.0
    %1554 = vmatpush1.msra.mxu0 %v107
    %1555 = vmatprep.subr.mxu0 0.0
    %1556 = vmatpush1.msra.mxu0 %v110
    %1557 = vmatprep.subr.mxu0 0.0
    %1558 = vmatpush1.msra.mxu0 %v113
    %1559 = vmatprep.subr.mxu0 0.0
    %1560 = vmatpush1.msra.mxu0 %v116
    %1561 = vmatprep.subr.mxu0 0.0
    %1562 = vmatpush1.msra.mxu0 %v119
    %1563 = vmatprep.subr.mxu0 0.0
    %1564 = vmatpush1.msra.mxu0 %v122
    %1565 = vmatprep.subr.mxu0 0.0
    %1566 = vmatpush1.msra.mxu0 %v125
    %1567 = vmatprep.subr.mxu0 0.0
    %1568 = vmatpush1.msra.mxu0 %v128
    %1569 = vmatprep.subr.mxu0 0.0
    %1570 = vmatpush1.msra.mxu0 %v131
    %1571 = vmatprep.subr.mxu0 0.0
    %1572 = vmatpush1.msra.mxu0 0.0
    %1573 = vmatprep.subr.mxu0 0.0
    %1574 = vmatpush1.msra.mxu0 0.0
    %1575 = vmatprep.subr.mxu0 0.0
    %1576 = vmatpush1.msra.mxu0 0.0
    %1577 = vmatprep.subr.mxu0 0.0
    %1578 = vmatpush1.msra.mxu0 0.0
    %1579 = vmatprep.subr.mxu0 0.0
    %1580 = vmatpush1.msra.mxu0 0.0
    %1581 = vmatprep.subr.mxu0 0.0
    %1582 = vmatpush1.msra.mxu0 0.0
    %1583 = vmatprep.subr.mxu0 0.0
    %1584 = vmatpush1.msra.mxu0 0.0
    %1585 = vmatprep.subr.mxu0 0.0
    %1586 = vmatpush1.msra.mxu0 0.0
    %1587 = vmatprep.subr.mxu0 0.0
    %1588 = vmatpush1.msra.mxu0 0.0
    %1589 = vmatprep.subr.mxu0 0.0
    %1590 = vmatpush1.msra.mxu0 0.0
    %1591 = vmatprep.subr.mxu0 0.0
    %1592 = vmatpush1.msra.mxu0 0.0
    %1593 = vmatprep.subr.mxu0 0.0
    %1594 = vmatpush1.msra.mxu0 0.0
    %1595 = vmatprep.subr.mxu0 0.0
    %1596 = vmatpush1.msra.mxu0 0.0
    %1597 = vmatprep.subr.mxu0 0.0
    %1598 = vmatpush1.msra.mxu0 0.0
    %1599 = vmatprep.subr.mxu0 0.0
    %1600 = vmatpush1.msra.mxu0 0.0
    %1601 = vmatprep.subr.mxu0 0.0
    %1602 = vmatpush1.msra.mxu0 0.0
    %1603 = vmatprep.mubr.f32.mxu0 0.0
    %1604 = vmatmul.mubr.f32.gmra.mrb[0].mxu0 %v1459
    %v1605 = vpop.f32.mrb[0].mxu0
    %v1606 = vadd.f32 0.0, %v1605
    %v1607 = vpop.f32.mrb[0].mxu0
    %1608 = vdwg.mxu0
    %v1609 = vadd.f32 %v1465, %v1535
    %v1610 = vxor.u32 %v1609, 2147483648
    %v1611 = vmul.f32 %v1610, 1.442695
    %v1612 = vpow.pop %v1611
    %v1613 = vadd.f32 %v1612, 1.0
    %v1614 = vrcp.pop %v1613
    %v1615 = vmul.f32 1.0, %v1614
    %v1616 = vadd.f32 %v1466, %v1537
    %v1617 = vxor.u32 %v1616, 2147483648
    %v1618 = vmul.f32 %v1617, 1.442695
    %v1619 = vpow.pop %v1618
    %v1620 = vadd.f32 %v1619, 1.0
    %v1621 = vrcp.pop %v1620
    %v1622 = vmul.f32 1.0, %v1621
    %v1623 = vadd.f32 %v1606, %v137
    %v1624 = vmul.f32 %v1615, %v1623
    %v1625 = vadd.f32 %v1467, %v1624
    %v1626 = vtanh.pop %v1625
    %v1627 = vsub.f32 %v1459, %v1626
    %v1628 = vmul.f32 %v1622, %v1627
    %v1629 = vadd.f32 %v1626, %v1628
    %s1630 = scalar_lea.vmem [#allocation3], 48
    %1631 = vst [vmem:[%s1630] sm:$0xff] %v1629
    %s1632 = smul.u32 7, 3
    %s1633 = smul.addr %s1632, 8
    %s1634 = scalar_lea.vmem [#allocation2], %s1633
    %v1635 = vld [vmem:[%s1634] sm:$0xff]
    %v1636 = vld [vmem:[%s1634 + $0x8] sm:$0xff]
    %v1637 = vld [vmem:[%s1634 + $0x10] sm:$0xff]
    %1638 = vmatprep.subr.mxu0 %v85
    %1639 = vmatpush1.msra.mxu0 %v84
    %1640 = vmatprep.subr.mxu0 %v88
    %1641 = vmatpush1.msra.mxu0 %v87
    %1642 = vmatprep.subr.mxu0 %v91
    %1643 = vmatpush1.msra.mxu0 %v90
    %1644 = vmatprep.subr.mxu0 %v94
    %1645 = vmatpush1.msra.mxu0 %v93
    %1646 = vmatprep.subr.mxu0 %v97
    %1647 = vmatpush1.msra.mxu0 %v96
    %1648 = vmatprep.subr.mxu0 %v100
    %1649 = vmatpush1.msra.mxu0 %v99
    %1650 = vmatprep.subr.mxu0 %v103
    %1651 = vmatpush1.msra.mxu0 %v102
    %1652 = vmatprep.subr.mxu0 %v106
    %1653 = vmatpush1.msra.mxu0 %v105
    %1654 = vmatprep.subr.mxu0 %v109
    %1655 = vmatpush1.msra.mxu0 %v108
    %1656 = vmatprep.subr.mxu0 %v112
    %1657 = vmatpush1.msra.mxu0 %v111
    %1658 = vmatprep.subr.mxu0 %v115
    %1659 = vmatpush1.msra.mxu0 %v114
    %1660 = vmatprep.subr.mxu0 %v118
    %1661 = vmatpush1.msra.mxu0 %v117
    %1662 = vmatprep.subr.mxu0 %v121
    %1663 = vmatpush1.msra.mxu0 %v120
    %1664 = vmatprep.subr.mxu0 %v124
    %1665 = vmatpush1.msra.mxu0 %v123
    %1666 = vmatprep.subr.mxu0 %v127
    %1667 = vmatpush1.msra.mxu0 %v126
    %1668 = vmatprep.subr.mxu0 %v130
    %1669 = vmatpush1.msra.mxu0 %v129
    %1670 = vmatprep.subr.mxu0 0.0
    %1671 = vmatpush1.msra.mxu0 0.0
    %1672 = vmatprep.subr.mxu0 0.0
    %1673 = vmatpush1.msra.mxu0 0.0
    %1674 = vmatprep.subr.mxu0 0.0
    %1675 = vmatpush1.msra.mxu0 0.0
    %1676 = vmatprep.subr.mxu0 0.0
    %1677 = vmatpush1.msra.mxu0 0.0
    %1678 = vmatprep.subr.mxu0 0.0
    %1679 = vmatpush1.msra.mxu0 0.0
    %1680 = vmatprep.subr.mxu0 0.0
    %1681 = vmatpush1.msra.mxu0 0.0
    %1682 = vmatprep.subr.mxu0 0.0
    %1683 = vmatpush1.msra.mxu0 0.0
    %1684 = vmatprep.subr.mxu0 0.0
    %1685 = vmatpush1.msra.mxu0 0.0
    %1686 = vmatprep.subr.mxu0 0.0
    %1687 = vmatpush1.msra.mxu0 0.0
    %1688 = vmatprep.subr.mxu0 0.0
    %1689 = vmatpush1.msra.mxu0 0.0
    %1690 = vmatprep.subr.mxu0 0.0
    %1691 = vmatpush1.msra.mxu0 0.0
    %1692 = vmatprep.subr.mxu0 0.0
    %1693 = vmatpush1.msra.mxu0 0.0
    %1694 = vmatprep.subr.mxu0 0.0
    %1695 = vmatpush1.msra.mxu0 0.0
    %1696 = vmatprep.subr.mxu0 0.0
    %1697 = vmatpush1.msra.mxu0 0.0
    %1698 = vmatprep.subr.mxu0 0.0
    %1699 = vmatpush1.msra.mxu0 0.0
    %1700 = vmatprep.subr.mxu0 0.0
    %1701 = vmatpush1.msra.mxu0 0.0
    %1702 = vmatprep.mubr.f32.mxu0 0.0
    %1703 = vmatmul.mubr.f32.gmra.mrb[0].mxu0 %v1629
    %v1704 = vpop.f32.mrb[0].mxu0
    %v1705 = vadd.f32 0.0, %v1704
    %v1706 = vpop.f32.mrb[0].mxu0
    %v1707 = vadd.f32 0.0, %v1706
    %1708 = vdwg.mxu0
    %1709 = vmatprep.subr.mxu0 0.0
    %1710 = vmatpush1.msra.mxu0 %v86
    %1711 = vmatprep.subr.mxu0 0.0
    %1712 = vmatpush1.msra.mxu0 %v89
    %1713 = vmatprep.subr.mxu0 0.0
    %1714 = vmatpush1.msra.mxu0 %v92
    %1715 = vmatprep.subr.mxu0 0.0
    %1716 = vmatpush1.msra.mxu0 %v95
    %1717 = vmatprep.subr.mxu0 0.0
    %1718 = vmatpush1.msra.mxu0 %v98
    %1719 = vmatprep.subr.mxu0 0.0
    %1720 = vmatpush1.msra.mxu0 %v101
    %1721 = vmatprep.subr.mxu0 0.0
    %1722 = vmatpush1.msra.mxu0 %v104
    %1723 = vmatprep.subr.mxu0 0.0
    %1724 = vmatpush1.msra.mxu0 %v107
    %1725 = vmatprep.subr.mxu0 0.0
    %1726 = vmatpush1.msra.mxu0 %v110
    %1727 = vmatprep.subr.mxu0 0.0
    %1728 = vmatpush1.msra.mxu0 %v113
    %1729 = vmatprep.subr.mxu0 0.0
    %1730 = vmatpush1.msra.mxu0 %v116
    %1731 = vmatprep.subr.mxu0 0.0
    %1732 = vmatpush1.msra.mxu0 %v119
    %1733 = vmatprep.subr.mxu0 0.0
    %1734 = vmatpush1.msra.mxu0 %v122
    %1735 = vmatprep.subr.mxu0 0.0
    %1736 = vmatpush1.msra.mxu0 %v125
    %1737 = vmatprep.subr.mxu0 0.0
    %1738 = vmatpush1.msra.mxu0 %v128
    %1739 = vmatprep.subr.mxu0 0.0
    %1740 = vmatpush1.msra.mxu0 %v131
    %1741 = vmatprep.subr.mxu0 0.0
    %1742 = vmatpush1.msra.mxu0 0.0
    %1743 = vmatprep.subr.mxu0 0.0
    %1744 = vmatpush1.msra.mxu0 0.0
    %1745 = vmatprep.subr.mxu0 0.0
    %1746 = vmatpush1.msra.mxu0 0.0
    %1747 = vmatprep.subr.mxu0 0.0
    %1748 = vmatpush1.msra.mxu0 0.0
    %1749 = vmatprep.subr.mxu0 0.0
    %1750 = vmatpush1.msra.mxu0 0.0
    %1751 = vmatprep.subr.mxu0 0.0
    %1752 = vmatpush1.msra.mxu0 0.0
    %1753 = vmatprep.subr.mxu0 0.0
    %1754 = vmatpush1.msra.mxu0 0.0
    %1755 = vmatprep.subr.mxu0 0.0
    %1756 = vmatpush1.msra.mxu0 0.0
    %1757 = vmatprep.subr.mxu0 0.0
    %1758 = vmatpush1.msra.mxu0 0.0
    %1759 = vmatprep.subr.mxu0 0.0
    %1760 = vmatpush1.msra.mxu0 0.0
    %1761 = vmatprep.subr.mxu0 0.0
    %1762 = vmatpush1.msra.mxu0 0.0
    %1763 = vmatprep.subr.mxu0 0.0
    %1764 = vmatpush1.msra.mxu0 0.0
    %1765 = vmatprep.subr.mxu0 0.0
    %1766 = vmatpush1.msra.mxu0 0.0
    %1767 = vmatprep.subr.mxu0 0.0
    %1768 = vmatpush1.msra.mxu0 0.0
    %1769 = vmatprep.subr.mxu0 0.0
    %1770 = vmatpush1.msra.mxu0 0.0
    %1771 = vmatprep.subr.mxu0 0.0
    %1772 = vmatpush1.msra.mxu0 0.0
    %1773 = vmatprep.mubr.f32.mxu0 0.0
    %1774 = vmatmul.mubr.f32.gmra.mrb[0].mxu0 %v1629
    %v1775 = vpop.f32.mrb[0].mxu0
    %v1776 = vadd.f32 0.0, %v1775
    %v1777 = vpop.f32.mrb[0].mxu0
    %1778 = vdwg.mxu0
    %v1779 = vadd.f32 %v1635, %v1705
    %v1780 = vxor.u32 %v1779, 2147483648
    %v1781 = vmul.f32 %v1780, 1.442695
    %v1782 = vpow.pop %v1781
    %v1783 = vadd.f32 %v1782, 1.0
    %v1784 = vrcp.pop %v1783
    %v1785 = vmul.f32 1.0, %v1784
    %v1786 = vadd.f32 %v1636, %v1707
    %v1787 = vxor.u32 %v1786, 2147483648
    %v1788 = vmul.f32 %v1787, 1.442695
    %v1789 = vpow.pop %v1788
    %v1790 = vadd.f32 %v1789, 1.0
    %v1791 = vrcp.pop %v1790
    %v1792 = vmul.f32 1.0, %v1791
    %v1793 = vadd.f32 %v1776, %v137
    %v1794 = vmul.f32 %v1785, %v1793
    %v1795 = vadd.f32 %v1637, %v1794
    %v1796 = vtanh.pop %v1795
    %v1797 = vsub.f32 %v1629, %v1796
    %v1798 = vmul.f32 %v1792, %v1797
    %v1799 = vadd.f32 %v1796, %v1798
    %s1800 = scalar_lea.vmem [#allocation3], 56
    %1801 = vst [vmem:[%s1800] sm:$0xff] %v1799
    %1802 = vst [vmem:[%s12] sm:$0xff] %v1799
    %v1803 = vld [vmem:[#allocation9] sm:$0xff]
    %v1804 = vld [vmem:[#allocation9 + $0x8] sm:$0xff]
    %v1805 = vld [vmem:[#allocation9 + $0x10] sm:$0xff]
    %v1806 = vld [vmem:[#allocation9 + $0x18] sm:$0xff]
    %v1807 = vld [vmem:[#allocation9 + $0x20] sm:$0xff]
    %v1808 = vld [vmem:[#allocation9 + $0x28] sm:$0xff]
    %v1809 = vld [vmem:[#allocation9 + $0x30] sm:$0xff]
    %v1810 = vld [vmem:[#allocation9 + $0x38] sm:$0xff]
    %v1811 = vld [vmem:[#allocation9 + $0x40] sm:$0xff]
    %v1812 = vld [vmem:[#allocation9 + $0x48] sm:$0xff]
    %v1813 = vld [vmem:[#allocation9 + $0x50] sm:$0xff]
    %v1814 = vld [vmem:[#allocation9 + $0x58] sm:$0xff]
    %v1815 = vld [vmem:[#allocation9 + $0x60] sm:$0xff]
    %v1816 = vld [vmem:[#allocation9 + $0x68] sm:$0xff]
    %v1817 = vld [vmem:[#allocation9 + $0x70] sm:$0xff]
    %v1818 = vld [vmem:[#allocation9 + $0x78] sm:$0xff]
    %v1819 = vld [vmem:[#allocation9 + $0x80] sm:$0xff]
    %v1820 = vld [vmem:[#allocation9 + $0x88] sm:$0xff]
    %v1821 = vld [vmem:[#allocation9 + $0x90] sm:$0xff]
    %v1822 = vld [vmem:[#allocation9 + $0x98] sm:$0xff]
    %v1823 = vld [vmem:[#allocation9 + $0xa0] sm:$0xff]
    %v1824 = vld [vmem:[#allocation9 + $0xa8] sm:$0xff]
    %v1825 = vld [vmem:[#allocation9 + $0xb0] sm:$0xff]
    %v1826 = vld [vmem:[#allocation9 + $0xb8] sm:$0xff]
    %v1827 = vld [vmem:[#allocation9 + $0xc0] sm:$0xff]
    %v1828 = vld [vmem:[#allocation9 + $0xc8] sm:$0xff]
    %v1829 = vld [vmem:[#allocation9 + $0xd0] sm:$0xff]
    %v1830 = vld [vmem:[#allocation9 + $0xd8] sm:$0xff]
    %v1831 = vld [vmem:[#allocation9 + $0xe0] sm:$0xff]
    %v1832 = vld [vmem:[#allocation9 + $0xe8] sm:$0xff]
    %v1833 = vld [vmem:[#allocation9 + $0xf0] sm:$0xff]
    %v1834 = vld [vmem:[#allocation9 + $0xf8] sm:$0xff]
    %v1835 = vld [vmem:[#allocation9 + $0x100] sm:$0xff]
    %v1836 = vld [vmem:[#allocation9 + $0x108] sm:$0xff]
    %v1837 = vld [vmem:[#allocation9 + $0x110] sm:$0xff]
    %v1838 = vld [vmem:[#allocation9 + $0x118] sm:$0xff]
    %v1839 = vld [vmem:[#allocation9 + $0x120] sm:$0xff]
    %v1840 = vld [vmem:[#allocation9 + $0x128] sm:$0xff]
    %v1841 = vld [vmem:[#allocation9 + $0x130] sm:$0xff]
    %v1842 = vld [vmem:[#allocation9 + $0x138] sm:$0xff]
    %v1843 = vld [vmem:[#allocation9 + $0x140] sm:$0xff]
    %v1844 = vld [vmem:[#allocation9 + $0x148] sm:$0xff]
    %v1845 = vld [vmem:[#allocation9 + $0x150] sm:$0xff]
    %v1846 = vld [vmem:[#allocation9 + $0x158] sm:$0xff]
    %v1847 = vld [vmem:[#allocation9 + $0x160] sm:$0xff]
    %v1848 = vld [vmem:[#allocation9 + $0x168] sm:$0xff]
    %v1849 = vld [vmem:[#allocation9 + $0x170] sm:$0xff]
    %v1850 = vld [vmem:[#allocation9 + $0x178] sm:$0xff]
    %v1851 = vld [vmem:[%s8] sm:$0x1]
    %v1853 = vlaneseq
    %v1854 = vshrl.u32 %v1853, 7
    %v1855 = vsub.s32 0, %v1854
    %v1856 = vrot.slane %v1851, %v1855
    %v1858 = vld [vmem:[#allocation3] sm:$0xff]
    %v1859 = vld [vmem:[#allocation3 + $0x8] sm:$0xff]
    %v1860 = vld [vmem:[#allocation3 + $0x10] sm:$0xff]
    %v1861 = vld [vmem:[#allocation3 + $0x18] sm:$0xff]
    %v1862 = vld [vmem:[#allocation3 + $0x20] sm:$0xff]
    %v1863 = vld [vmem:[#allocation3 + $0x28] sm:$0xff]
    %v1864 = vld [vmem:[#allocation3 + $0x30] sm:$0xff]
    %v1865 = vld [vmem:[#allocation3 + $0x38] sm:$0xff]
    %v1866 = vld [vmem:[#allocation7] sm:$0xff]
    %v1867 = vld [vmem:[#allocation7 + $0x8] sm:$0xff]
    %v1868 = vld [vmem:[#allocation7 + $0x10] sm:$0xff]
    %v1869 = vld [vmem:[#allocation7 + $0x18] sm:$0xff]
    %v1870 = vld [vmem:[#allocation7 + $0x20] sm:$0xff]
    %v1871 = vld [vmem:[#allocation7 + $0x28] sm:$0xff]
    %v1872 = vld [vmem:[#allocation7 + $0x30] sm:$0xff]
    %v1873 = vld [vmem:[#allocation7 + $0x38] sm:$0xff]
    %v1874 = vld [vmem:[#allocation7 + $0x40] sm:$0xff]
    %v1875 = vld [vmem:[#allocation7 + $0x48] sm:$0xff]
    %v1876 = vld [vmem:[#allocation7 + $0x50] sm:$0xff]
    %v1877 = vld [vmem:[#allocation7 + $0x58] sm:$0xff]
    %v1878 = vld [vmem:[#allocation7 + $0x60] sm:$0xff]
    %v1879 = vld [vmem:[#allocation7 + $0x68] sm:$0xff]
    %v1880 = vld [vmem:[#allocation7 + $0x70] sm:$0xff]
    %v1881 = vld [vmem:[#allocation7 + $0x78] sm:$0xff]
    %v1882 = vld [vmem:[#allocation7 + $0x80] sm:$0xff]
    %v1883 = vld [vmem:[#allocation7 + $0x88] sm:$0xff]
    %v1884 = vld [vmem:[#allocation7 + $0x90] sm:$0xff]
    %v1885 = vld [vmem:[#allocation7 + $0x98] sm:$0xff]
    %v1886 = vld [vmem:[#allocation7 + $0xa0] sm:$0xff]
    %v1887 = vld [vmem:[#allocation7 + $0xa8] sm:$0xff]
    %v1888 = vld [vmem:[#allocation7 + $0xb0] sm:$0xff]
    %v1889 = vld [vmem:[#allocation7 + $0xb8] sm:$0xff]
    %v1890 = vld [vmem:[#allocation7 + $0xc0] sm:$0xff]
    %v1891 = vld [vmem:[#allocation7 + $0xc8] sm:$0xff]
    %v1892 = vld [vmem:[#allocation7 + $0xd0] sm:$0xff]
    %v1893 = vld [vmem:[#allocation7 + $0xd8] sm:$0xff]
    %v1894 = vld [vmem:[#allocation7 + $0xe0] sm:$0xff]
    %v1895 = vld [vmem:[#allocation7 + $0xe8] sm:$0xff]
    %v1896 = vld [vmem:[#allocation7 + $0xf0] sm:$0xff]
    %v1897 = vld [vmem:[#allocation7 + $0xf8] sm:$0xff]
    %v1898 = vld [vmem:[#allocation7 + $0x100] sm:$0xff]
    %v1899 = vld [vmem:[#allocation7 + $0x108] sm:$0xff]
    %v1900 = vld [vmem:[#allocation7 + $0x110] sm:$0xff]
    %v1901 = vld [vmem:[#allocation7 + $0x118] sm:$0xff]
    %v1902 = vld [vmem:[#allocation7 + $0x120] sm:$0xff]
    %v1903 = vld [vmem:[#allocation7 + $0x128] sm:$0xff]
    %v1904 = vld [vmem:[#allocation7 + $0x130] sm:$0xff]
    %v1905 = vld [vmem:[#allocation7 + $0x138] sm:$0xff]
    %v1906 = vld [vmem:[#allocation7 + $0x140] sm:$0xff]
    %v1907 = vld [vmem:[#allocation7 + $0x148] sm:$0xff]
    %v1908 = vld [vmem:[#allocation7 + $0x150] sm:$0xff]
    %v1909 = vld [vmem:[#allocation7 + $0x158] sm:$0xff]
    %v1910 = vld [vmem:[#allocation7 + $0x160] sm:$0xff]
    %v1911 = vld [vmem:[#allocation7 + $0x168] sm:$0xff]
    %v1912 = vld [vmem:[#allocation7 + $0x170] sm:$0xff]
    %v1913 = vld [vmem:[#allocation7 + $0x178] sm:$0xff]
    %v1914 = vld [vmem:[%s7] sm:$0x7]
    %v1916 = vlaneseq
    %v1917 = vshrl.u32 %v1916, 7
    %v1918 = vsub.s32 0, %v1917
    %v1919 = vrot.slane %v1914, %v1918
    %v1920 = vlaneseq
    %v1921 = vshrl.u32 %v1920, 7
    %v1922 = vsub.s32 1, %v1921
    %v1923 = vrot.slane %v1914, %v1922
    %v1924 = vlaneseq
    %v1925 = vshrl.u32 %v1924, 7
    %v1926 = vsub.s32 2, %v1925
    %v1927 = vrot.slane %v1914, %v1926
    %1931 = vmatprep.subr.mxu0 %v1867
    %1932 = vmatpush1.msra.mxu0 %v1866
    %1933 = vmatprep.subr.mxu0 %v1870
    %1934 = vmatpush1.msra.mxu0 %v1869
    %1935 = vmatprep.subr.mxu0 %v1873
    %1936 = vmatpush1.msra.mxu0 %v1872
    %1937 = vmatprep.subr.mxu0 %v1876
    %1938 = vmatpush1.msra.mxu0 %v1875
    %1939 = vmatprep.subr.mxu0 %v1879
    %1940 = vmatpush1.msra.mxu0 %v1878
    %1941 = vmatprep.subr.mxu0 %v1882
    %1942 = vmatpush1.msra.mxu0 %v1881
    %1943 = vmatprep.subr.mxu0 %v1885
    %1944 = vmatpush1.msra.mxu0 %v1884
    %1945 = vmatprep.subr.mxu0 %v1888
    %1946 = vmatpush1.msra.mxu0 %v1887
    %1947 = vmatprep.subr.mxu0 %v1891
    %1948 = vmatpush1.msra.mxu0 %v1890
    %1949 = vmatprep.subr.mxu0 %v1894
    %1950 = vmatpush1.msra.mxu0 %v1893
    %1951 = vmatprep.subr.mxu0 %v1897
    %1952 = vmatpush1.msra.mxu0 %v1896
    %1953 = vmatprep.subr.mxu0 %v1900
    %1954 = vmatpush1.msra.mxu0 %v1899
    %1955 = vmatprep.subr.mxu0 %v1903
    %1956 = vmatpush1.msra.mxu0 %v1902
    %1957 = vmatprep.subr.mxu0 %v1906
    %1958 = vmatpush1.msra.mxu0 %v1905
    %1959 = vmatprep.subr.mxu0 %v1909
    %1960 = vmatpush1.msra.mxu0 %v1908
    %1961 = vmatprep.subr.mxu0 %v1912
    %1962 = vmatpush1.msra.mxu0 %v1911
    %1963 = vmatprep.subr.mxu0 0.0
    %1964 = vmatpush1.msra.mxu0 0.0
    %1965 = vmatprep.subr.mxu0 0.0
    %1966 = vmatpush1.msra.mxu0 0.0
    %1967 = vmatprep.subr.mxu0 0.0
    %1968 = vmatpush1.msra.mxu0 0.0
    %1969 = vmatprep.subr.mxu0 0.0
    %1970 = vmatpush1.msra.mxu0 0.0
    %1971 = vmatprep.subr.mxu0 0.0
    %1972 = vmatpush1.msra.mxu0 0.0
    %1973 = vmatprep.subr.mxu0 0.0
    %1974 = vmatpush1.msra.mxu0 0.0
    %1975 = vmatprep.subr.mxu0 0.0
    %1976 = vmatpush1.msra.mxu0 0.0
    %1977 = vmatprep.subr.mxu0 0.0
    %1978 = vmatpush1.msra.mxu0 0.0
    %1979 = vmatprep.subr.mxu0 0.0
    %1980 = vmatpush1.msra.mxu0 0.0
    %1981 = vmatprep.subr.mxu0 0.0
    %1982 = vmatpush1.msra.mxu0 0.0
    %1983 = vmatprep.subr.mxu0 0.0
    %1984 = vmatpush1.msra.mxu0 0.0
    %1985 = vmatprep.subr.mxu0 0.0
    %1986 = vmatpush1.msra.mxu0 0.0
    %1987 = vmatprep.subr.mxu0 0.0
    %1988 = vmatpush1.msra.mxu0 0.0
    %1989 = vmatprep.subr.mxu0 0.0
    %1990 = vmatpush1.msra.mxu0 0.0
    %1991 = vmatprep.subr.mxu0 0.0
    %1992 = vmatpush1.msra.mxu0 0.0
    %1993 = vmatprep.subr.mxu0 0.0
    %1994 = vmatpush1.msra.mxu0 0.0
    %1995 = vmatprep.mubr.f32.mxu0 0.0
    %1996 = vmatmul.mubr.f32.gmra.mrb[0].mxu0 %v1858
    %v1997 = vpop.f32.mrb[0].mxu0
    %v1998 = vadd.f32 %v1919, %v1997
    %v1999 = vpop.f32.mrb[0].mxu0
    %v2000 = vadd.f32 %v1923, %v1999
    %2001 = vmatprep.mubr.f32.mxu0 0.0
    %2002 = vmatmul.mubr.f32.gmra.mrb[0].mxu0 %v1859
    %v2003 = vpop.f32.mrb[0].mxu0
    %v2004 = vadd.f32 %v1919, %v2003
    %v2005 = vpop.f32.mrb[0].mxu0
    %v2006 = vadd.f32 %v1923, %v2005
    %2007 = vmatprep.mubr.f32.mxu0 0.0
    %2008 = vmatmul.mubr.f32.gmra.mrb[0].mxu0 %v1860
    %v2009 = vpop.f32.mrb[0].mxu0
    %v2010 = vadd.f32 %v1919, %v2009
    %v2011 = vpop.f32.mrb[0].mxu0
    %v2012 = vadd.f32 %v1923, %v2011
    %2013 = vmatprep.mubr.f32.mxu0 0.0
    %2014 = vmatmul.mubr.f32.gmra.mrb[0].mxu0 %v1861
    %v2015 = vpop.f32.mrb[0].mxu0
    %v2016 = vadd.f32 %v1919, %v2015
    %v2017 = vpop.f32.mrb[0].mxu0
    %v2018 = vadd.f32 %v1923, %v2017
    %2019 = vmatprep.mubr.f32.mxu0 0.0
    %2020 = vmatmul.mubr.f32.gmra.mrb[0].mxu0 %v1862
    %v2021 = vpop.f32.mrb[0].mxu0
    %v2022 = vadd.f32 %v1919, %v2021
    %v2023 = vpop.f32.mrb[0].mxu0
    %v2024 = vadd.f32 %v1923, %v2023
    %2025 = vmatprep.mubr.f32.mxu0 0.0
    %2026 = vmatmul.mubr.f32.gmra.mrb[0].mxu0 %v1863
    %v2027 = vpop.f32.mrb[0].mxu0
    %v2028 = vadd.f32 %v1919, %v2027
    %v2029 = vpop.f32.mrb[0].mxu0
    %v2030 = vadd.f32 %v1923, %v2029
    %2031 = vmatprep.mubr.f32.mxu0 0.0
    %2032 = vmatmul.mubr.f32.gmra.mrb[0].mxu0 %v1864
    %v2033 = vpop.f32.mrb[0].mxu0
    %v2034 = vadd.f32 %v1919, %v2033
    %v2035 = vpop.f32.mrb[0].mxu0
    %v2036 = vadd.f32 %v1923, %v2035
    %2037 = vmatprep.mubr.f32.mxu0 0.0
    %2038 = vmatmul.mubr.f32.gmra.mrb[0].mxu0 %v1865
    %v2039 = vpop.f32.mrb[0].mxu0
    %v2040 = vadd.f32 %v1919, %v2039
    %v2041 = vpop.f32.mrb[0].mxu0
    %v2042 = vadd.f32 %v1923, %v2041
    %2043 = vdwg.mxu0
    %2044 = vmatprep.subr.mxu0 0.0
    %2045 = vmatpush1.msra.mxu0 %v1868
    %2046 = vmatprep.subr.mxu0 0.0
    %2047 = vmatpush1.msra.mxu0 %v1871
    %2048 = vmatprep.subr.mxu0 0.0
    %2049 = vmatpush1.msra.mxu0 %v1874
    %2050 = vmatprep.subr.mxu0 0.0
    %2051 = vmatpush1.msra.mxu0 %v1877
    %2052 = vmatprep.subr.mxu0 0.0
    %2053 = vmatpush1.msra.mxu0 %v1880
    %2054 = vmatprep.subr.mxu0 0.0
    %2055 = vmatpush1.msra.mxu0 %v1883
    %2056 = vmatprep.subr.mxu0 0.0
    %2057 = vmatpush1.msra.mxu0 %v1886
    %2058 = vmatprep.subr.mxu0 0.0
    %2059 = vmatpush1.msra.mxu0 %v1889
    %2060 = vmatprep.subr.mxu0 0.0
    %2061 = vmatpush1.msra.mxu0 %v1892
    %2062 = vmatprep.subr.mxu0 0.0
    %2063 = vmatpush1.msra.mxu0 %v1895
    %2064 = vmatprep.subr.mxu0 0.0
    %2065 = vmatpush1.msra.mxu0 %v1898
    %2066 = vmatprep.subr.mxu0 0.0
    %2067 = vmatpush1.msra.mxu0 %v1901
    %2068 = vmatprep.subr.mxu0 0.0
    %2069 = vmatpush1.msra.mxu0 %v1904
    %2070 = vmatprep.subr.mxu0 0.0
    %2071 = vmatpush1.msra.mxu0 %v1907
    %2072 = vmatprep.subr.mxu0 0.0
    %2073 = vmatpush1.msra.mxu0 %v1910
    %2074 = vmatprep.subr.mxu0 0.0
    %2075 = vmatpush1.msra.mxu0 %v1913
    %2076 = vmatprep.subr.mxu0 0.0
    %2077 = vmatpush1.msra.mxu0 0.0
    %2078 = vmatprep.subr.mxu0 0.0
    %2079 = vmatpush1.msra.mxu0 0.0
    %2080 = vmatprep.subr.mxu0 0.0
    %2081 = vmatpush1.msra.mxu0 0.0
    %2082 = vmatprep.subr.mxu0 0.0
    %2083 = vmatpush1.msra.mxu0 0.0
    %2084 = vmatprep.subr.mxu0 0.0
    %2085 = vmatpush1.msra.mxu0 0.0
    %2086 = vmatprep.subr.mxu0 0.0
    %2087 = vmatpush1.msra.mxu0 0.0
    %2088 = vmatprep.subr.mxu0 0.0
    %2089 = vmatpush1.msra.mxu0 0.0
    %2090 = vmatprep.subr.mxu0 0.0
    %2091 = vmatpush1.msra.mxu0 0.0
    %2092 = vmatprep.subr.mxu0 0.0
    %2093 = vmatpush1.msra.mxu0 0.0
    %2094 = vmatprep.subr.mxu0 0.0
    %2095 = vmatpush1.msra.mxu0 0.0
    %2096 = vmatprep.subr.mxu0 0.0
    %2097 = vmatpush1.msra.mxu0 0.0
    %2098 = vmatprep.subr.mxu0 0.0
    %2099 = vmatpush1.msra.mxu0 0.0
    %2100 = vmatprep.subr.mxu0 0.0
    %2101 = vmatpush1.msra.mxu0 0.0
    %2102 = vmatprep.subr.mxu0 0.0
    %2103 = vmatpush1.msra.mxu0 0.0
    %2104 = vmatprep.subr.mxu0 0.0
    %2105 = vmatpush1.msra.mxu0 0.0
    %2106 = vmatprep.subr.mxu0 0.0
    %2107 = vmatpush1.msra.mxu0 0.0
    %2108 = vmatprep.mubr.f32.mxu0 0.0
    %2109 = vmatmul.mubr.f32.gmra.mrb[0].mxu0 %v1858
    %v2110 = vpop.f32.mrb[0].mxu0
    %v2111 = vadd.f32 %v1927, %v2110
    %v2112 = vpop.f32.mrb[0].mxu0
    %2113 = vmatprep.mubr.f32.mxu0 0.0
    %2114 = vmatmul.mubr.f32.gmra.mrb[0].mxu0 %v1859
    %v2115 = vpop.f32.mrb[0].mxu0
    %v2116 = vadd.f32 %v1927, %v2115
    %v2117 = vpop.f32.mrb[0].mxu0
    %2118 = vmatprep.mubr.f32.mxu0 0.0
    %2119 = vmatmul.mubr.f32.gmra.mrb[0].mxu0 %v1860
    %v2120 = vpop.f32.mrb[0].mxu0
    %v2121 = vadd.f32 %v1927, %v2120
    %v2122 = vpop.f32.mrb[0].mxu0
    %2123 = vmatprep.mubr.f32.mxu0 0.0
    %2124 = vmatmul.mubr.f32.gmra.mrb[0].mxu0 %v1861
    %v2125 = vpop.f32.mrb[0].mxu0
    %v2126 = vadd.f32 %v1927, %v2125
    %v2127 = vpop.f32.mrb[0].mxu0
    %2128 = vmatprep.mubr.f32.mxu0 0.0
    %2129 = vmatmul.mubr.f32.gmra.mrb[0].mxu0 %v1862
    %v2130 = vpop.f32.mrb[0].mxu0
    %v2131 = vadd.f32 %v1927, %v2130
    %v2132 = vpop.f32.mrb[0].mxu0
    %2133 = vmatprep.mubr.f32.mxu0 0.0
    %2134 = vmatmul.mubr.f32.gmra.mrb[0].mxu0 %v1863
    %v2135 = vpop.f32.mrb[0].mxu0
    %v2136 = vadd.f32 %v1927, %v2135
    %v2137 = vpop.f32.mrb[0].mxu0
    %2138 = vmatprep.mubr.f32.mxu0 0.0
    %2139 = vmatmul.mubr.f32.gmra.mrb[0].mxu0 %v1864
    %v2140 = vpop.f32.mrb[0].mxu0
    %v2141 = vadd.f32 %v1927, %v2140
    %v2142 = vpop.f32.mrb[0].mxu0
    %2143 = vmatprep.mubr.f32.mxu0 0.0
    %2144 = vmatmul.mubr.f32.gmra.mrb[0].mxu0 %v1865
    %v2145 = vpop.f32.mrb[0].mxu0
    %v2146 = vadd.f32 %v1927, %v2145
    %v2147 = vpop.f32.mrb[0].mxu0
    %2148 = vdwg.mxu0
    %2149 = vst [vmem:[#allocation2] sm:$0xff] %v1998
    %2150 = vst [vmem:[#allocation2 + $0x8] sm:$0xff] %v2000
    %2151 = vst [vmem:[#allocation2 + $0x10] sm:$0xff] %v2111
    %2152 = vst [vmem:[#allocation2 + $0x18] sm:$0xff] %v2004
    %2153 = vst [vmem:[#allocation2 + $0x20] sm:$0xff] %v2006
    %2154 = vst [vmem:[#allocation2 + $0x28] sm:$0xff] %v2116
    %2155 = vst [vmem:[#allocation2 + $0x30] sm:$0xff] %v2010
    %2156 = vst [vmem:[#allocation2 + $0x38] sm:$0xff] %v2012
    %2157 = vst [vmem:[#allocation2 + $0x40] sm:$0xff] %v2121
    %2158 = vst [vmem:[#allocation2 + $0x48] sm:$0xff] %v2016
    %2159 = vst [vmem:[#allocation2 + $0x50] sm:$0xff] %v2018
    %2160 = vst [vmem:[#allocation2 + $0x58] sm:$0xff] %v2126
    %2161 = vst [vmem:[#allocation2 + $0x60] sm:$0xff] %v2022
    %2162 = vst [vmem:[#allocation2 + $0x68] sm:$0xff] %v2024
    %2163 = vst [vmem:[#allocation2 + $0x70] sm:$0xff] %v2131
    %2164 = vst [vmem:[#allocation2 + $0x78] sm:$0xff] %v2028
    %2165 = vst [vmem:[#allocation2 + $0x80] sm:$0xff] %v2030
    %2166 = vst [vmem:[#allocation2 + $0x88] sm:$0xff] %v2136
    %2167 = vst [vmem:[#allocation2 + $0x90] sm:$0xff] %v2034
    %2168 = vst [vmem:[#allocation2 + $0x98] sm:$0xff] %v2036
    %2169 = vst [vmem:[#allocation2 + $0xa0] sm:$0xff] %v2141
    %2170 = vst [vmem:[#allocation2 + $0xa8] sm:$0xff] %v2040
    %2171 = vst [vmem:[#allocation2 + $0xb0] sm:$0xff] %v2042
    %2172 = vst [vmem:[#allocation2 + $0xb8] sm:$0xff] %v2146
    %v2173 = vld [vmem:[%s445] sm:$0xff]
    %v2174 = vld [vmem:[%s445 + $0x8] sm:$0xff]
    %v2175 = vld [vmem:[%s445 + $0x10] sm:$0xff]
    %2176 = vmatprep.subr.mxu0 %v1804
    %2177 = vmatpush1.msra.mxu0 %v1803
    %2178 = vmatprep.subr.mxu0 %v1807
    %2179 = vmatpush1.msra.mxu0 %v1806
    %2180 = vmatprep.subr.mxu0 %v1810
    %2181 = vmatpush1.msra.mxu0 %v1809
    %2182 = vmatprep.subr.mxu0 %v1813
    %2183 = vmatpush1.msra.mxu0 %v1812
    %2184 = vmatprep.subr.mxu0 %v1816
    %2185 = vmatpush1.msra.mxu0 %v1815
    %2186 = vmatprep.subr.mxu0 %v1819
    %2187 = vmatpush1.msra.mxu0 %v1818
    %2188 = vmatprep.subr.mxu0 %v1822
    %2189 = vmatpush1.msra.mxu0 %v1821
    %2190 = vmatprep.subr.mxu0 %v1825
    %2191 = vmatpush1.msra.mxu0 %v1824
    %2192 = vmatprep.subr.mxu0 %v1828
    %2193 = vmatpush1.msra.mxu0 %v1827
    %2194 = vmatprep.subr.mxu0 %v1831
    %2195 = vmatpush1.msra.mxu0 %v1830
    %2196 = vmatprep.subr.mxu0 %v1834
    %2197 = vmatpush1.msra.mxu0 %v1833
    %2198 = vmatprep.subr.mxu0 %v1837
    %2199 = vmatpush1.msra.mxu0 %v1836
    %2200 = vmatprep.subr.mxu0 %v1840
    %2201 = vmatpush1.msra.mxu0 %v1839
    %2202 = vmatprep.subr.mxu0 %v1843
    %2203 = vmatpush1.msra.mxu0 %v1842
    %2204 = vmatprep.subr.mxu0 %v1846
    %2205 = vmatpush1.msra.mxu0 %v1845
    %2206 = vmatprep.subr.mxu0 %v1849
    %2207 = vmatpush1.msra.mxu0 %v1848
    %2208 = vmatprep.subr.mxu0 0.0
    %2209 = vmatpush1.msra.mxu0 0.0
    %2210 = vmatprep.subr.mxu0 0.0
    %2211 = vmatpush1.msra.mxu0 0.0
    %2212 = vmatprep.subr.mxu0 0.0
    %2213 = vmatpush1.msra.mxu0 0.0
    %2214 = vmatprep.subr.mxu0 0.0
    %2215 = vmatpush1.msra.mxu0 0.0
    %2216 = vmatprep.subr.mxu0 0.0
    %2217 = vmatpush1.msra.mxu0 0.0
    %2218 = vmatprep.subr.mxu0 0.0
    %2219 = vmatpush1.msra.mxu0 0.0
    %2220 = vmatprep.subr.mxu0 0.0
    %2221 = vmatpush1.msra.mxu0 0.0
    %2222 = vmatprep.subr.mxu0 0.0
    %2223 = vmatpush1.msra.mxu0 0.0
    %2224 = vmatprep.subr.mxu0 0.0
    %2225 = vmatpush1.msra.mxu0 0.0
    %2226 = vmatprep.subr.mxu0 0.0
    %2227 = vmatpush1.msra.mxu0 0.0
    %2228 = vmatprep.subr.mxu0 0.0
    %2229 = vmatpush1.msra.mxu0 0.0
    %2230 = vmatprep.subr.mxu0 0.0
    %2231 = vmatpush1.msra.mxu0 0.0
    %2232 = vmatprep.subr.mxu0 0.0
    %2233 = vmatpush1.msra.mxu0 0.0
    %2234 = vmatprep.subr.mxu0 0.0
    %2235 = vmatpush1.msra.mxu0 0.0
    %2236 = vmatprep.subr.mxu0 0.0
    %2237 = vmatpush1.msra.mxu0 0.0
    %2238 = vmatprep.subr.mxu0 0.0
    %2239 = vmatpush1.msra.mxu0 0.0
    %2240 = vmatprep.mubr.f32.mxu0 0.0
    %2241 = vmatmul.mubr.f32.gmra.mrb[0].mxu0 0.0
    %v2242 = vpop.f32.mrb[0].mxu0
    %v2243 = vadd.f32 0.0, %v2242
    %v2244 = vpop.f32.mrb[0].mxu0
    %v2245 = vadd.f32 0.0, %v2244
    %2246 = vdwg.mxu0
    %2247 = vmatprep.subr.mxu0 0.0
    %2248 = vmatpush1.msra.mxu0 %v1805
    %2249 = vmatprep.subr.mxu0 0.0
    %2250 = vmatpush1.msra.mxu0 %v1808
    %2251 = vmatprep.subr.mxu0 0.0
    %2252 = vmatpush1.msra.mxu0 %v1811
    %2253 = vmatprep.subr.mxu0 0.0
    %2254 = vmatpush1.msra.mxu0 %v1814
    %2255 = vmatprep.subr.mxu0 0.0
    %2256 = vmatpush1.msra.mxu0 %v1817
    %2257 = vmatprep.subr.mxu0 0.0
    %2258 = vmatpush1.msra.mxu0 %v1820
    %2259 = vmatprep.subr.mxu0 0.0
    %2260 = vmatpush1.msra.mxu0 %v1823
    %2261 = vmatprep.subr.mxu0 0.0
    %2262 = vmatpush1.msra.mxu0 %v1826
    %2263 = vmatprep.subr.mxu0 0.0
    %2264 = vmatpush1.msra.mxu0 %v1829
    %2265 = vmatprep.subr.mxu0 0.0
    %2266 = vmatpush1.msra.mxu0 %v1832
    %2267 = vmatprep.subr.mxu0 0.0
    %2268 = vmatpush1.msra.mxu0 %v1835
    %2269 = vmatprep.subr.mxu0 0.0
    %2270 = vmatpush1.msra.mxu0 %v1838
    %2271 = vmatprep.subr.mxu0 0.0
    %2272 = vmatpush1.msra.mxu0 %v1841
    %2273 = vmatprep.subr.mxu0 0.0
    %2274 = vmatpush1.msra.mxu0 %v1844
    %2275 = vmatprep.subr.mxu0 0.0
    %2276 = vmatpush1.msra.mxu0 %v1847
    %2277 = vmatprep.subr.mxu0 0.0
    %2278 = vmatpush1.msra.mxu0 %v1850
    %2279 = vmatprep.subr.mxu0 0.0
    %2280 = vmatpush1.msra.mxu0 0.0
    %2281 = vmatprep.subr.mxu0 0.0
    %2282 = vmatpush1.msra.mxu0 0.0
    %2283 = vmatprep.subr.mxu0 0.0
    %2284 = vmatpush1.msra.mxu0 0.0
    %2285 = vmatprep.subr.mxu0 0.0
    %2286 = vmatpush1.msra.mxu0 0.0
    %2287 = vmatprep.subr.mxu0 0.0
    %2288 = vmatpush1.msra.mxu0 0.0
    %2289 = vmatprep.subr.mxu0 0.0
    %2290 = vmatpush1.msra.mxu0 0.0
    %2291 = vmatprep.subr.mxu0 0.0
    %2292 = vmatpush1.msra.mxu0 0.0
    %2293 = vmatprep.subr.mxu0 0.0
    %2294 = vmatpush1.msra.mxu0 0.0
    %2295 = vmatprep.subr.mxu0 0.0
    %2296 = vmatpush1.msra.mxu0 0.0
    %2297 = vmatprep.subr.mxu0 0.0
    %2298 = vmatpush1.msra.mxu0 0.0
    %2299 = vmatprep.subr.mxu0 0.0
    %2300 = vmatpush1.msra.mxu0 0.0
    %2301 = vmatprep.subr.mxu0 0.0
    %2302 = vmatpush1.msra.mxu0 0.0
    %2303 = vmatprep.subr.mxu0 0.0
    %2304 = vmatpush1.msra.mxu0 0.0
    %2305 = vmatprep.subr.mxu0 0.0
    %2306 = vmatpush1.msra.mxu0 0.0
    %2307 = vmatprep.subr.mxu0 0.0
    %2308 = vmatpush1.msra.mxu0 0.0
    %2309 = vmatprep.subr.mxu0 0.0
    %2310 = vmatpush1.msra.mxu0 0.0
    %2311 = vmatprep.mubr.f32.mxu0 0.0
    %2312 = vmatmul.mubr.f32.gmra.mrb[0].mxu0 0.0
    %v2313 = vpop.f32.mrb[0].mxu0
    %v2314 = vadd.f32 0.0, %v2313
    %v2315 = vpop.f32.mrb[0].mxu0
    %2316 = vdwg.mxu0
    %v2317 = vadd.f32 %v2173, %v2243
    %v2318 = vxor.u32 %v2317, 2147483648
    %v2319 = vmul.f32 %v2318, 1.442695
    %v2320 = vpow.pop %v2319
    %v2321 = vadd.f32 %v2320, 1.0
    %v2322 = vrcp.pop %v2321
    %v2323 = vmul.f32 1.0, %v2322
    %v2324 = vadd.f32 %v2174, %v2245
    %v2325 = vxor.u32 %v2324, 2147483648
    %v2326 = vmul.f32 %v2325, 1.442695
    %v2327 = vpow.pop %v2326
    %v2328 = vadd.f32 %v2327, 1.0
    %v2329 = vrcp.pop %v2328
    %v2330 = vmul.f32 1.0, %v2329
    %v2331 = vadd.f32 %v2314, %v1856
    %v2332 = vmul.f32 %v2323, %v2331
    %v2333 = vadd.f32 %v2175, %v2332
    %v2334 = vtanh.pop %v2333
    %v2335 = vsub.f32 0.0, %v2334
    %v2336 = vmul.f32 %v2330, %v2335
    %v2337 = vadd.f32 %v2334, %v2336
    %2338 = vst [vmem:[%s11] sm:$0xff] %v2337
    %v2339 = vld [vmem:[%s614] sm:$0xff]
    %v2340 = vld [vmem:[%s614 + $0x8] sm:$0xff]
    %v2341 = vld [vmem:[%s614 + $0x10] sm:$0xff]
    %2342 = vmatprep.subr.mxu0 %v1804
    %2343 = vmatpush1.msra.mxu0 %v1803
    %2344 = vmatprep.subr.mxu0 %v1807
    %2345 = vmatpush1.msra.mxu0 %v1806
    %2346 = vmatprep.subr.mxu0 %v1810
    %2347 = vmatpush1.msra.mxu0 %v1809
    %2348 = vmatprep.subr.mxu0 %v1813
    %2349 = vmatpush1.msra.mxu0 %v1812
    %2350 = vmatprep.subr.mxu0 %v1816
    %2351 = vmatpush1.msra.mxu0 %v1815
    %2352 = vmatprep.subr.mxu0 %v1819
    %2353 = vmatpush1.msra.mxu0 %v1818
    %2354 = vmatprep.subr.mxu0 %v1822
    %2355 = vmatpush1.msra.mxu0 %v1821
    %2356 = vmatprep.subr.mxu0 %v1825
    %2357 = vmatpush1.msra.mxu0 %v1824
    %2358 = vmatprep.subr.mxu0 %v1828
    %2359 = vmatpush1.msra.mxu0 %v1827
    %2360 = vmatprep.subr.mxu0 %v1831
    %2361 = vmatpush1.msra.mxu0 %v1830
    %2362 = vmatprep.subr.mxu0 %v1834
    %2363 = vmatpush1.msra.mxu0 %v1833
    %2364 = vmatprep.subr.mxu0 %v1837
    %2365 = vmatpush1.msra.mxu0 %v1836
    %2366 = vmatprep.subr.mxu0 %v1840
    %2367 = vmatpush1.msra.mxu0 %v1839
    %2368 = vmatprep.subr.mxu0 %v1843
    %2369 = vmatpush1.msra.mxu0 %v1842
    %2370 = vmatprep.subr.mxu0 %v1846
    %2371 = vmatpush1.msra.mxu0 %v1845
    %2372 = vmatprep.subr.mxu0 %v1849
    %2373 = vmatpush1.msra.mxu0 %v1848
    %2374 = vmatprep.subr.mxu0 0.0
    %2375 = vmatpush1.msra.mxu0 0.0
    %2376 = vmatprep.subr.mxu0 0.0
    %2377 = vmatpush1.msra.mxu0 0.0
    %2378 = vmatprep.subr.mxu0 0.0
    %2379 = vmatpush1.msra.mxu0 0.0
    %2380 = vmatprep.subr.mxu0 0.0
    %2381 = vmatpush1.msra.mxu0 0.0
    %2382 = vmatprep.subr.mxu0 0.0
    %2383 = vmatpush1.msra.mxu0 0.0
    %2384 = vmatprep.subr.mxu0 0.0
    %2385 = vmatpush1.msra.mxu0 0.0
    %2386 = vmatprep.subr.mxu0 0.0
    %2387 = vmatpush1.msra.mxu0 0.0
    %2388 = vmatprep.subr.mxu0 0.0
    %2389 = vmatpush1.msra.mxu0 0.0
    %2390 = vmatprep.subr.mxu0 0.0
    %2391 = vmatpush1.msra.mxu0 0.0
    %2392 = vmatprep.subr.mxu0 0.0
    %2393 = vmatpush1.msra.mxu0 0.0
    %2394 = vmatprep.subr.mxu0 0.0
    %2395 = vmatpush1.msra.mxu0 0.0
    %2396 = vmatprep.subr.mxu0 0.0
    %2397 = vmatpush1.msra.mxu0 0.0
    %2398 = vmatprep.subr.mxu0 0.0
    %2399 = vmatpush1.msra.mxu0 0.0
    %2400 = vmatprep.subr.mxu0 0.0
    %2401 = vmatpush1.msra.mxu0 0.0
    %2402 = vmatprep.subr.mxu0 0.0
    %2403 = vmatpush1.msra.mxu0 0.0
    %2404 = vmatprep.subr.mxu0 0.0
    %2405 = vmatpush1.msra.mxu0 0.0
    %2406 = vmatprep.mubr.f32.mxu0 0.0
    %2407 = vmatmul.mubr.f32.gmra.mrb[0].mxu0 %v2337
    %v2408 = vpop.f32.mrb[0].mxu0
    %v2409 = vadd.f32 0.0, %v2408
    %v2410 = vpop.f32.mrb[0].mxu0
    %v2411 = vadd.f32 0.0, %v2410
    %2412 = vdwg.mxu0
    %2413 = vmatprep.subr.mxu0 0.0
    %2414 = vmatpush1.msra.mxu0 %v1805
    %2415 = vmatprep.subr.mxu0 0.0
    %2416 = vmatpush1.msra.mxu0 %v1808
    %2417 = vmatprep.subr.mxu0 0.0
    %2418 = vmatpush1.msra.mxu0 %v1811
    %2419 = vmatprep.subr.mxu0 0.0
    %2420 = vmatpush1.msra.mxu0 %v1814
    %2421 = vmatprep.subr.mxu0 0.0
    %2422 = vmatpush1.msra.mxu0 %v1817
    %2423 = vmatprep.subr.mxu0 0.0
    %2424 = vmatpush1.msra.mxu0 %v1820
    %2425 = vmatprep.subr.mxu0 0.0
    %2426 = vmatpush1.msra.mxu0 %v1823
    %2427 = vmatprep.subr.mxu0 0.0
    %2428 = vmatpush1.msra.mxu0 %v1826
    %2429 = vmatprep.subr.mxu0 0.0
    %2430 = vmatpush1.msra.mxu0 %v1829
    %2431 = vmatprep.subr.mxu0 0.0
    %2432 = vmatpush1.msra.mxu0 %v1832
    %2433 = vmatprep.subr.mxu0 0.0
    %2434 = vmatpush1.msra.mxu0 %v1835
    %2435 = vmatprep.subr.mxu0 0.0
    %2436 = vmatpush1.msra.mxu0 %v1838
    %2437 = vmatprep.subr.mxu0 0.0
    %2438 = vmatpush1.msra.mxu0 %v1841
    %2439 = vmatprep.subr.mxu0 0.0
    %2440 = vmatpush1.msra.mxu0 %v1844
    %2441 = vmatprep.subr.mxu0 0.0
    %2442 = vmatpush1.msra.mxu0 %v1847
    %2443 = vmatprep.subr.mxu0 0.0
    %2444 = vmatpush1.msra.mxu0 %v1850
    %2445 = vmatprep.subr.mxu0 0.0
    %2446 = vmatpush1.msra.mxu0 0.0
    %2447 = vmatprep.subr.mxu0 0.0
    %2448 = vmatpush1.msra.mxu0 0.0
    %2449 = vmatprep.subr.mxu0 0.0
    %2450 = vmatpush1.msra.mxu0 0.0
    %2451 = vmatprep.subr.mxu0 0.0
    %2452 = vmatpush1.msra.mxu0 0.0
    %2453 = vmatprep.subr.mxu0 0.0
    %2454 = vmatpush1.msra.mxu0 0.0
    %2455 = vmatprep.subr.mxu0 0.0
    %2456 = vmatpush1.msra.mxu0 0.0
    %2457 = vmatprep.subr.mxu0 0.0
    %2458 = vmatpush1.msra.mxu0 0.0
    %2459 = vmatprep.subr.mxu0 0.0
    %2460 = vmatpush1.msra.mxu0 0.0
    %2461 = vmatprep.subr.mxu0 0.0
    %2462 = vmatpush1.msra.mxu0 0.0
    %2463 = vmatprep.subr.mxu0 0.0
    %2464 = vmatpush1.msra.mxu0 0.0
    %2465 = vmatprep.subr.mxu0 0.0
    %2466 = vmatpush1.msra.mxu0 0.0
    %2467 = vmatprep.subr.mxu0 0.0
    %2468 = vmatpush1.msra.mxu0 0.0
    %2469 = vmatprep.subr.mxu0 0.0
    %2470 = vmatpush1.msra.mxu0 0.0
    %2471 = vmatprep.subr.mxu0 0.0
    %2472 = vmatpush1.msra.mxu0 0.0
    %2473 = vmatprep.subr.mxu0 0.0
    %2474 = vmatpush1.msra.mxu0 0.0
    %2475 = vmatprep.subr.mxu0 0.0
    %2476 = vmatpush1.msra.mxu0 0.0
    %2477 = vmatprep.mubr.f32.mxu0 0.0
    %2478 = vmatmul.mubr.f32.gmra.mrb[0].mxu0 %v2337
    %v2479 = vpop.f32.mrb[0].mxu0
    %v2480 = vadd.f32 0.0, %v2479
    %v2481 = vpop.f32.mrb[0].mxu0
    %2482 = vdwg.mxu0
    %v2483 = vadd.f32 %v2339, %v2409
    %v2484 = vxor.u32 %v2483, 2147483648
    %v2485 = vmul.f32 %v2484, 1.442695
    %v2486 = vpow.pop %v2485
    %v2487 = vadd.f32 %v2486, 1.0
    %v2488 = vrcp.pop %v2487
    %v2489 = vmul.f32 1.0, %v2488
    %v2490 = vadd.f32 %v2340, %v2411
    %v2491 = vxor.u32 %v2490, 2147483648
    %v2492 = vmul.f32 %v2491, 1.442695
    %v2493 = vpow.pop %v2492
    %v2494 = vadd.f32 %v2493, 1.0
    %v2495 = vrcp.pop %v2494
    %v2496 = vmul.f32 1.0, %v2495
    %v2497 = vadd.f32 %v2480, %v1856
    %v2498 = vmul.f32 %v2489, %v2497
    %v2499 = vadd.f32 %v2341, %v2498
    %v2500 = vtanh.pop %v2499
    %v2501 = vsub.f32 %v2337, %v2500
    %v2502 = vmul.f32 %v2496, %v2501
    %v2503 = vadd.f32 %v2500, %v2502
    %s2504 = scalar_lea.vmem %s11, 8
    %2505 = vst [vmem:[%s2504] sm:$0xff] %v2503
    %v2506 = vld [vmem:[%s784] sm:$0xff]
    %v2507 = vld [vmem:[%s784 + $0x8] sm:$0xff]
    %v2508 = vld [vmem:[%s784 + $0x10] sm:$0xff]
    %2509 = vmatprep.subr.mxu0 %v1804
    %2510 = vmatpush1.msra.mxu0 %v1803
    %2511 = vmatprep.subr.mxu0 %v1807
    %2512 = vmatpush1.msra.mxu0 %v1806
    %2513 = vmatprep.subr.mxu0 %v1810
    %2514 = vmatpush1.msra.mxu0 %v1809
    %2515 = vmatprep.subr.mxu0 %v1813
    %2516 = vmatpush1.msra.mxu0 %v1812
    %2517 = vmatprep.subr.mxu0 %v1816
    %2518 = vmatpush1.msra.mxu0 %v1815
    %2519 = vmatprep.subr.mxu0 %v1819
    %2520 = vmatpush1.msra.mxu0 %v1818
    %2521 = vmatprep.subr.mxu0 %v1822
    %2522 = vmatpush1.msra.mxu0 %v1821
    %2523 = vmatprep.subr.mxu0 %v1825
    %2524 = vmatpush1.msra.mxu0 %v1824
    %2525 = vmatprep.subr.mxu0 %v1828
    %2526 = vmatpush1.msra.mxu0 %v1827
    %2527 = vmatprep.subr.mxu0 %v1831
    %2528 = vmatpush1.msra.mxu0 %v1830
    %2529 = vmatprep.subr.mxu0 %v1834
    %2530 = vmatpush1.msra.mxu0 %v1833
    %2531 = vmatprep.subr.mxu0 %v1837
    %2532 = vmatpush1.msra.mxu0 %v1836
    %2533 = vmatprep.subr.mxu0 %v1840
    %2534 = vmatpush1.msra.mxu0 %v1839
    %2535 = vmatprep.subr.mxu0 %v1843
    %2536 = vmatpush1.msra.mxu0 %v1842
    %2537 = vmatprep.subr.mxu0 %v1846
    %2538 = vmatpush1.msra.mxu0 %v1845
    %2539 = vmatprep.subr.mxu0 %v1849
    %2540 = vmatpush1.msra.mxu0 %v1848
    %2541 = vmatprep.subr.mxu0 0.0
    %2542 = vmatpush1.msra.mxu0 0.0
    %2543 = vmatprep.subr.mxu0 0.0
    %2544 = vmatpush1.msra.mxu0 0.0
    %2545 = vmatprep.subr.mxu0 0.0
    %2546 = vmatpush1.msra.mxu0 0.0
    %2547 = vmatprep.subr.mxu0 0.0
    %2548 = vmatpush1.msra.mxu0 0.0
    %2549 = vmatprep.subr.mxu0 0.0
    %2550 = vmatpush1.msra.mxu0 0.0
    %2551 = vmatprep.subr.mxu0 0.0
    %2552 = vmatpush1.msra.mxu0 0.0
    %2553 = vmatprep.subr.mxu0 0.0
    %2554 = vmatpush1.msra.mxu0 0.0
    %2555 = vmatprep.subr.mxu0 0.0
    %2556 = vmatpush1.msra.mxu0 0.0
    %2557 = vmatprep.subr.mxu0 0.0
    %2558 = vmatpush1.msra.mxu0 0.0
    %2559 = vmatprep.subr.mxu0 0.0
    %2560 = vmatpush1.msra.mxu0 0.0
    %2561 = vmatprep.subr.mxu0 0.0
    %2562 = vmatpush1.msra.mxu0 0.0
    %2563 = vmatprep.subr.mxu0 0.0
    %2564 = vmatpush1.msra.mxu0 0.0
    %2565 = vmatprep.subr.mxu0 0.0
    %2566 = vmatpush1.msra.mxu0 0.0
    %2567 = vmatprep.subr.mxu0 0.0
    %2568 = vmatpush1.msra.mxu0 0.0
    %2569 = vmatprep.subr.mxu0 0.0
    %2570 = vmatpush1.msra.mxu0 0.0
    %2571 = vmatprep.subr.mxu0 0.0
    %2572 = vmatpush1.msra.mxu0 0.0
    %2573 = vmatprep.mubr.f32.mxu0 0.0
    %2574 = vmatmul.mubr.f32.gmra.mrb[0].mxu0 %v2503
    %v2575 = vpop.f32.mrb[0].mxu0
    %v2576 = vadd.f32 0.0, %v2575
    %v2577 = vpop.f32.mrb[0].mxu0
    %v2578 = vadd.f32 0.0, %v2577
    %2579 = vdwg.mxu0
    %2580 = vmatprep.subr.mxu0 0.0
    %2581 = vmatpush1.msra.mxu0 %v1805
    %2582 = vmatprep.subr.mxu0 0.0
    %2583 = vmatpush1.msra.mxu0 %v1808
    %2584 = vmatprep.subr.mxu0 0.0
    %2585 = vmatpush1.msra.mxu0 %v1811
    %2586 = vmatprep.subr.mxu0 0.0
    %2587 = vmatpush1.msra.mxu0 %v1814
    %2588 = vmatprep.subr.mxu0 0.0
    %2589 = vmatpush1.msra.mxu0 %v1817
    %2590 = vmatprep.subr.mxu0 0.0
    %2591 = vmatpush1.msra.mxu0 %v1820
    %2592 = vmatprep.subr.mxu0 0.0
    %2593 = vmatpush1.msra.mxu0 %v1823
    %2594 = vmatprep.subr.mxu0 0.0
    %2595 = vmatpush1.msra.mxu0 %v1826
    %2596 = vmatprep.subr.mxu0 0.0
    %2597 = vmatpush1.msra.mxu0 %v1829
    %2598 = vmatprep.subr.mxu0 0.0
    %2599 = vmatpush1.msra.mxu0 %v1832
    %2600 = vmatprep.subr.mxu0 0.0
    %2601 = vmatpush1.msra.mxu0 %v1835
    %2602 = vmatprep.subr.mxu0 0.0
    %2603 = vmatpush1.msra.mxu0 %v1838
    %2604 = vmatprep.subr.mxu0 0.0
    %2605 = vmatpush1.msra.mxu0 %v1841
    %2606 = vmatprep.subr.mxu0 0.0
    %2607 = vmatpush1.msra.mxu0 %v1844
    %2608 = vmatprep.subr.mxu0 0.0
    %2609 = vmatpush1.msra.mxu0 %v1847
    %2610 = vmatprep.subr.mxu0 0.0
    %2611 = vmatpush1.msra.mxu0 %v1850
    %2612 = vmatprep.subr.mxu0 0.0
    %2613 = vmatpush1.msra.mxu0 0.0
    %2614 = vmatprep.subr.mxu0 0.0
    %2615 = vmatpush1.msra.mxu0 0.0
    %2616 = vmatprep.subr.mxu0 0.0
    %2617 = vmatpush1.msra.mxu0 0.0
    %2618 = vmatprep.subr.mxu0 0.0
    %2619 = vmatpush1.msra.mxu0 0.0
    %2620 = vmatprep.subr.mxu0 0.0
    %2621 = vmatpush1.msra.mxu0 0.0
    %2622 = vmatprep.subr.mxu0 0.0
    %2623 = vmatpush1.msra.mxu0 0.0
    %2624 = vmatprep.subr.mxu0 0.0
    %2625 = vmatpush1.msra.mxu0 0.0
    %2626 = vmatprep.subr.mxu0 0.0
    %2627 = vmatpush1.msra.mxu0 0.0
    %2628 = vmatprep.subr.mxu0 0.0
    %2629 = vmatpush1.msra.mxu0 0.0
    %2630 = vmatprep.subr.mxu0 0.0
    %2631 = vmatpush1.msra.mxu0 0.0
    %2632 = vmatprep.subr.mxu0 0.0
    %2633 = vmatpush1.msra.mxu0 0.0
    %2634 = vmatprep.subr.mxu0 0.0
    %2635 = vmatpush1.msra.mxu0 0.0
    %2636 = vmatprep.subr.mxu0 0.0
    %2637 = vmatpush1.msra.mxu0 0.0
    %2638 = vmatprep.subr.mxu0 0.0
    %2639 = vmatpush1.msra.mxu0 0.0
    %2640 = vmatprep.subr.mxu0 0.0
    %2641 = vmatpush1.msra.mxu0 0.0
    %2642 = vmatprep.subr.mxu0 0.0
    %2643 = vmatpush1.msra.mxu0 0.0
    %2644 = vmatprep.mubr.f32.mxu0 0.0
    %2645 = vmatmul.mubr.f32.gmra.mrb[0].mxu0 %v2503
    %v2646 = vpop.f32.mrb[0].mxu0
    %v2647 = vadd.f32 0.0, %v2646
    %v2648 = vpop.f32.mrb[0].mxu0
    %2649 = vdwg.mxu0
    %v2650 = vadd.f32 %v2506, %v2576
    %v2651 = vxor.u32 %v2650, 2147483648
    %v2652 = vmul.f32 %v2651, 1.442695
    %v2653 = vpow.pop %v2652
    %v2654 = vadd.f32 %v2653, 1.0
    %v2655 = vrcp.pop %v2654
    %v2656 = vmul.f32 1.0, %v2655
    %v2657 = vadd.f32 %v2507, %v2578
    %v2658 = vxor.u32 %v2657, 2147483648
    %v2659 = vmul.f32 %v2658, 1.442695
    %v2660 = vpow.pop %v2659
    %v2661 = vadd.f32 %v2660, 1.0
    %v2662 = vrcp.pop %v2661
    %v2663 = vmul.f32 1.0, %v2662
    %v2664 = vadd.f32 %v2647, %v1856
    %v2665 = vmul.f32 %v2656, %v2664
    %v2666 = vadd.f32 %v2508, %v2665
    %v2667 = vtanh.pop %v2666
    %v2668 = vsub.f32 %v2503, %v2667
    %v2669 = vmul.f32 %v2663, %v2668
    %v2670 = vadd.f32 %v2667, %v2669
    %s2671 = scalar_lea.vmem %s11, 16
    %2672 = vst [vmem:[%s2671] sm:$0xff] %v2670
    %v2673 = vld [vmem:[%s954] sm:$0xff]
    %v2674 = vld [vmem:[%s954 + $0x8] sm:$0xff]
    %v2675 = vld [vmem:[%s954 + $0x10] sm:$0xff]
    %2676 = vmatprep.subr.mxu0 %v1804
    %2677 = vmatpush1.msra.mxu0 %v1803
    %2678 = vmatprep.subr.mxu0 %v1807
    %2679 = vmatpush1.msra.mxu0 %v1806
    %2680 = vmatprep.subr.mxu0 %v1810
    %2681 = vmatpush1.msra.mxu0 %v1809
    %2682 = vmatprep.subr.mxu0 %v1813
    %2683 = vmatpush1.msra.mxu0 %v1812
    %2684 = vmatprep.subr.mxu0 %v1816
    %2685 = vmatpush1.msra.mxu0 %v1815
    %2686 = vmatprep.subr.mxu0 %v1819
    %2687 = vmatpush1.msra.mxu0 %v1818
    %2688 = vmatprep.subr.mxu0 %v1822
    %2689 = vmatpush1.msra.mxu0 %v1821
    %2690 = vmatprep.subr.mxu0 %v1825
    %2691 = vmatpush1.msra.mxu0 %v1824
    %2692 = vmatprep.subr.mxu0 %v1828
    %2693 = vmatpush1.msra.mxu0 %v1827
    %2694 = vmatprep.subr.mxu0 %v1831
    %2695 = vmatpush1.msra.mxu0 %v1830
    %2696 = vmatprep.subr.mxu0 %v1834
    %2697 = vmatpush1.msra.mxu0 %v1833
    %2698 = vmatprep.subr.mxu0 %v1837
    %2699 = vmatpush1.msra.mxu0 %v1836
    %2700 = vmatprep.subr.mxu0 %v1840
    %2701 = vmatpush1.msra.mxu0 %v1839
    %2702 = vmatprep.subr.mxu0 %v1843
    %2703 = vmatpush1.msra.mxu0 %v1842
    %2704 = vmatprep.subr.mxu0 %v1846
    %2705 = vmatpush1.msra.mxu0 %v1845
    %2706 = vmatprep.subr.mxu0 %v1849
    %2707 = vmatpush1.msra.mxu0 %v1848
    %2708 = vmatprep.subr.mxu0 0.0
    %2709 = vmatpush1.msra.mxu0 0.0
    %2710 = vmatprep.subr.mxu0 0.0
    %2711 = vmatpush1.msra.mxu0 0.0
    %2712 = vmatprep.subr.mxu0 0.0
    %2713 = vmatpush1.msra.mxu0 0.0
    %2714 = vmatprep.subr.mxu0 0.0
    %2715 = vmatpush1.msra.mxu0 0.0
    %2716 = vmatprep.subr.mxu0 0.0
    %2717 = vmatpush1.msra.mxu0 0.0
    %2718 = vmatprep.subr.mxu0 0.0
    %2719 = vmatpush1.msra.mxu0 0.0
    %2720 = vmatprep.subr.mxu0 0.0
    %2721 = vmatpush1.msra.mxu0 0.0
    %2722 = vmatprep.subr.mxu0 0.0
    %2723 = vmatpush1.msra.mxu0 0.0
    %2724 = vmatprep.subr.mxu0 0.0
    %2725 = vmatpush1.msra.mxu0 0.0
    %2726 = vmatprep.subr.mxu0 0.0
    %2727 = vmatpush1.msra.mxu0 0.0
    %2728 = vmatprep.subr.mxu0 0.0
    %2729 = vmatpush1.msra.mxu0 0.0
    %2730 = vmatprep.subr.mxu0 0.0
    %2731 = vmatpush1.msra.mxu0 0.0
    %2732 = vmatprep.subr.mxu0 0.0
    %2733 = vmatpush1.msra.mxu0 0.0
    %2734 = vmatprep.subr.mxu0 0.0
    %2735 = vmatpush1.msra.mxu0 0.0
    %2736 = vmatprep.subr.mxu0 0.0
    %2737 = vmatpush1.msra.mxu0 0.0
    %2738 = vmatprep.subr.mxu0 0.0
    %2739 = vmatpush1.msra.mxu0 0.0
    %2740 = vmatprep.mubr.f32.mxu0 0.0
    %2741 = vmatmul.mubr.f32.gmra.mrb[0].mxu0 %v2670
    %v2742 = vpop.f32.mrb[0].mxu0
    %v2743 = vadd.f32 0.0, %v2742
    %v2744 = vpop.f32.mrb[0].mxu0
    %v2745 = vadd.f32 0.0, %v2744
    %2746 = vdwg.mxu0
    %2747 = vmatprep.subr.mxu0 0.0
    %2748 = vmatpush1.msra.mxu0 %v1805
    %2749 = vmatprep.subr.mxu0 0.0
    %2750 = vmatpush1.msra.mxu0 %v1808
    %2751 = vmatprep.subr.mxu0 0.0
    %2752 = vmatpush1.msra.mxu0 %v1811
    %2753 = vmatprep.subr.mxu0 0.0
    %2754 = vmatpush1.msra.mxu0 %v1814
    %2755 = vmatprep.subr.mxu0 0.0
    %2756 = vmatpush1.msra.mxu0 %v1817
    %2757 = vmatprep.subr.mxu0 0.0
    %2758 = vmatpush1.msra.mxu0 %v1820
    %2759 = vmatprep.subr.mxu0 0.0
    %2760 = vmatpush1.msra.mxu0 %v1823
    %2761 = vmatprep.subr.mxu0 0.0
    %2762 = vmatpush1.msra.mxu0 %v1826
    %2763 = vmatprep.subr.mxu0 0.0
    %2764 = vmatpush1.msra.mxu0 %v1829
    %2765 = vmatprep.subr.mxu0 0.0
    %2766 = vmatpush1.msra.mxu0 %v1832
    %2767 = vmatprep.subr.mxu0 0.0
    %2768 = vmatpush1.msra.mxu0 %v1835
    %2769 = vmatprep.subr.mxu0 0.0
    %2770 = vmatpush1.msra.mxu0 %v1838
    %2771 = vmatprep.subr.mxu0 0.0
    %2772 = vmatpush1.msra.mxu0 %v1841
    %2773 = vmatprep.subr.mxu0 0.0
    %2774 = vmatpush1.msra.mxu0 %v1844
    %2775 = vmatprep.subr.mxu0 0.0
    %2776 = vmatpush1.msra.mxu0 %v1847
    %2777 = vmatprep.subr.mxu0 0.0
    %2778 = vmatpush1.msra.mxu0 %v1850
    %2779 = vmatprep.subr.mxu0 0.0
    %2780 = vmatpush1.msra.mxu0 0.0
    %2781 = vmatprep.subr.mxu0 0.0
    %2782 = vmatpush1.msra.mxu0 0.0
    %2783 = vmatprep.subr.mxu0 0.0
    %2784 = vmatpush1.msra.mxu0 0.0
    %2785 = vmatprep.subr.mxu0 0.0
    %2786 = vmatpush1.msra.mxu0 0.0
    %2787 = vmatprep.subr.mxu0 0.0
    %2788 = vmatpush1.msra.mxu0 0.0
    %2789 = vmatprep.subr.mxu0 0.0
    %2790 = vmatpush1.msra.mxu0 0.0
    %2791 = vmatprep.subr.mxu0 0.0
    %2792 = vmatpush1.msra.mxu0 0.0
    %2793 = vmatprep.subr.mxu0 0.0
    %2794 = vmatpush1.msra.mxu0 0.0
    %2795 = vmatprep.subr.mxu0 0.0
    %2796 = vmatpush1.msra.mxu0 0.0
    %2797 = vmatprep.subr.mxu0 0.0
    %2798 = vmatpush1.msra.mxu0 0.0
    %2799 = vmatprep.subr.mxu0 0.0
    %2800 = vmatpush1.msra.mxu0 0.0
    %2801 = vmatprep.subr.mxu0 0.0
    %2802 = vmatpush1.msra.mxu0 0.0
    %2803 = vmatprep.subr.mxu0 0.0
    %2804 = vmatpush1.msra.mxu0 0.0
    %2805 = vmatprep.subr.mxu0 0.0
    %2806 = vmatpush1.msra.mxu0 0.0
    %2807 = vmatprep.subr.mxu0 0.0
    %2808 = vmatpush1.msra.mxu0 0.0
    %2809 = vmatprep.subr.mxu0 0.0
    %2810 = vmatpush1.msra.mxu0 0.0
    %2811 = vmatprep.mubr.f32.mxu0 0.0
    %2812 = vmatmul.mubr.f32.gmra.mrb[0].mxu0 %v2670
    %v2813 = vpop.f32.mrb[0].mxu0
    %v2814 = vadd.f32 0.0, %v2813
    %v2815 = vpop.f32.mrb[0].mxu0
    %2816 = vdwg.mxu0
    %v2817 = vadd.f32 %v2673, %v2743
    %v2818 = vxor.u32 %v2817, 2147483648
    %v2819 = vmul.f32 %v2818, 1.442695
    %v2820 = vpow.pop %v2819
    %v2821 = vadd.f32 %v2820, 1.0
    %v2822 = vrcp.pop %v2821
    %v2823 = vmul.f32 1.0, %v2822
    %v2824 = vadd.f32 %v2674, %v2745
    %v2825 = vxor.u32 %v2824, 2147483648
    %v2826 = vmul.f32 %v2825, 1.442695
    %v2827 = vpow.pop %v2826
    %v2828 = vadd.f32 %v2827, 1.0
    %v2829 = vrcp.pop %v2828
    %v2830 = vmul.f32 1.0, %v2829
    %v2831 = vadd.f32 %v2814, %v1856
    %v2832 = vmul.f32 %v2823, %v2831
    %v2833 = vadd.f32 %v2675, %v2832
    %v2834 = vtanh.pop %v2833
    %v2835 = vsub.f32 %v2670, %v2834
    %v2836 = vmul.f32 %v2830, %v2835
    %v2837 = vadd.f32 %v2834, %v2836
    %s2838 = scalar_lea.vmem %s11, 24
    %2839 = vst [vmem:[%s2838] sm:$0xff] %v2837
    %v2840 = vld [vmem:[%s1124] sm:$0xff]
    %v2841 = vld [vmem:[%s1124 + $0x8] sm:$0xff]
    %v2842 = vld [vmem:[%s1124 + $0x10] sm:$0xff]
    %2843 = vmatprep.subr.mxu0 %v1804
    %2844 = vmatpush1.msra.mxu0 %v1803
    %2845 = vmatprep.subr.mxu0 %v1807
    %2846 = vmatpush1.msra.mxu0 %v1806
    %2847 = vmatprep.subr.mxu0 %v1810
    %2848 = vmatpush1.msra.mxu0 %v1809
    %2849 = vmatprep.subr.mxu0 %v1813
    %2850 = vmatpush1.msra.mxu0 %v1812
    %2851 = vmatprep.subr.mxu0 %v1816
    %2852 = vmatpush1.msra.mxu0 %v1815
    %2853 = vmatprep.subr.mxu0 %v1819
    %2854 = vmatpush1.msra.mxu0 %v1818
    %2855 = vmatprep.subr.mxu0 %v1822
    %2856 = vmatpush1.msra.mxu0 %v1821
    %2857 = vmatprep.subr.mxu0 %v1825
    %2858 = vmatpush1.msra.mxu0 %v1824
    %2859 = vmatprep.subr.mxu0 %v1828
    %2860 = vmatpush1.msra.mxu0 %v1827
    %2861 = vmatprep.subr.mxu0 %v1831
    %2862 = vmatpush1.msra.mxu0 %v1830
    %2863 = vmatprep.subr.mxu0 %v1834
    %2864 = vmatpush1.msra.mxu0 %v1833
    %2865 = vmatprep.subr.mxu0 %v1837
    %2866 = vmatpush1.msra.mxu0 %v1836
    %2867 = vmatprep.subr.mxu0 %v1840
    %2868 = vmatpush1.msra.mxu0 %v1839
    %2869 = vmatprep.subr.mxu0 %v1843
    %2870 = vmatpush1.msra.mxu0 %v1842
    %2871 = vmatprep.subr.mxu0 %v1846
    %2872 = vmatpush1.msra.mxu0 %v1845
    %2873 = vmatprep.subr.mxu0 %v1849
    %2874 = vmatpush1.msra.mxu0 %v1848
    %2875 = vmatprep.subr.mxu0 0.0
    %2876 = vmatpush1.msra.mxu0 0.0
    %2877 = vmatprep.subr.mxu0 0.0
    %2878 = vmatpush1.msra.mxu0 0.0
    %2879 = vmatprep.subr.mxu0 0.0
    %2880 = vmatpush1.msra.mxu0 0.0
    %2881 = vmatprep.subr.mxu0 0.0
    %2882 = vmatpush1.msra.mxu0 0.0
    %2883 = vmatprep.subr.mxu0 0.0
    %2884 = vmatpush1.msra.mxu0 0.0
    %2885 = vmatprep.subr.mxu0 0.0
    %2886 = vmatpush1.msra.mxu0 0.0
    %2887 = vmatprep.subr.mxu0 0.0
    %2888 = vmatpush1.msra.mxu0 0.0
    %2889 = vmatprep.subr.mxu0 0.0
    %2890 = vmatpush1.msra.mxu0 0.0
    %2891 = vmatprep.subr.mxu0 0.0
    %2892 = vmatpush1.msra.mxu0 0.0
    %2893 = vmatprep.subr.mxu0 0.0
    %2894 = vmatpush1.msra.mxu0 0.0
    %2895 = vmatprep.subr.mxu0 0.0
    %2896 = vmatpush1.msra.mxu0 0.0
    %2897 = vmatprep.subr.mxu0 0.0
    %2898 = vmatpush1.msra.mxu0 0.0
    %2899 = vmatprep.subr.mxu0 0.0
    %2900 = vmatpush1.msra.mxu0 0.0
    %2901 = vmatprep.subr.mxu0 0.0
    %2902 = vmatpush1.msra.mxu0 0.0
    %2903 = vmatprep.subr.mxu0 0.0
    %2904 = vmatpush1.msra.mxu0 0.0
    %2905 = vmatprep.subr.mxu0 0.0
    %2906 = vmatpush1.msra.mxu0 0.0
    %2907 = vmatprep.mubr.f32.mxu0 0.0
    %2908 = vmatmul.mubr.f32.gmra.mrb[0].mxu0 %v2837
    %v2909 = vpop.f32.mrb[0].mxu0
    %v2910 = vadd.f32 0.0, %v2909
    %v2911 = vpop.f32.mrb[0].mxu0
    %v2912 = vadd.f32 0.0, %v2911
    %2913 = vdwg.mxu0
    %2914 = vmatprep.subr.mxu0 0.0
    %2915 = vmatpush1.msra.mxu0 %v1805
    %2916 = vmatprep.subr.mxu0 0.0
    %2917 = vmatpush1.msra.mxu0 %v1808
    %2918 = vmatprep.subr.mxu0 0.0
    %2919 = vmatpush1.msra.mxu0 %v1811
    %2920 = vmatprep.subr.mxu0 0.0
    %2921 = vmatpush1.msra.mxu0 %v1814
    %2922 = vmatprep.subr.mxu0 0.0
    %2923 = vmatpush1.msra.mxu0 %v1817
    %2924 = vmatprep.subr.mxu0 0.0
    %2925 = vmatpush1.msra.mxu0 %v1820
    %2926 = vmatprep.subr.mxu0 0.0
    %2927 = vmatpush1.msra.mxu0 %v1823
    %2928 = vmatprep.subr.mxu0 0.0
    %2929 = vmatpush1.msra.mxu0 %v1826
    %2930 = vmatprep.subr.mxu0 0.0
    %2931 = vmatpush1.msra.mxu0 %v1829
    %2932 = vmatprep.subr.mxu0 0.0
    %2933 = vmatpush1.msra.mxu0 %v1832
    %2934 = vmatprep.subr.mxu0 0.0
    %2935 = vmatpush1.msra.mxu0 %v1835
    %2936 = vmatprep.subr.mxu0 0.0
    %2937 = vmatpush1.msra.mxu0 %v1838
    %2938 = vmatprep.subr.mxu0 0.0
    %2939 = vmatpush1.msra.mxu0 %v1841
    %2940 = vmatprep.subr.mxu0 0.0
    %2941 = vmatpush1.msra.mxu0 %v1844
    %2942 = vmatprep.subr.mxu0 0.0
    %2943 = vmatpush1.msra.mxu0 %v1847
    %2944 = vmatprep.subr.mxu0 0.0
    %2945 = vmatpush1.msra.mxu0 %v1850
    %2946 = vmatprep.subr.mxu0 0.0
    %2947 = vmatpush1.msra.mxu0 0.0
    %2948 = vmatprep.subr.mxu0 0.0
    %2949 = vmatpush1.msra.mxu0 0.0
    %2950 = vmatprep.subr.mxu0 0.0
    %2951 = vmatpush1.msra.mxu0 0.0
    %2952 = vmatprep.subr.mxu0 0.0
    %2953 = vmatpush1.msra.mxu0 0.0
    %2954 = vmatprep.subr.mxu0 0.0
    %2955 = vmatpush1.msra.mxu0 0.0
    %2956 = vmatprep.subr.mxu0 0.0
    %2957 = vmatpush1.msra.mxu0 0.0
    %2958 = vmatprep.subr.mxu0 0.0
    %2959 = vmatpush1.msra.mxu0 0.0
    %2960 = vmatprep.subr.mxu0 0.0
    %2961 = vmatpush1.msra.mxu0 0.0
    %2962 = vmatprep.subr.mxu0 0.0
    %2963 = vmatpush1.msra.mxu0 0.0
    %2964 = vmatprep.subr.mxu0 0.0
    %2965 = vmatpush1.msra.mxu0 0.0
    %2966 = vmatprep.subr.mxu0 0.0
    %2967 = vmatpush1.msra.mxu0 0.0
    %2968 = vmatprep.subr.mxu0 0.0
    %2969 = vmatpush1.msra.mxu0 0.0
    %2970 = vmatprep.subr.mxu0 0.0
    %2971 = vmatpush1.msra.mxu0 0.0
    %2972 = vmatprep.subr.mxu0 0.0
    %2973 = vmatpush1.msra.mxu0 0.0
    %2974 = vmatprep.subr.mxu0 0.0
    %2975 = vmatpush1.msra.mxu0 0.0
    %2976 = vmatprep.subr.mxu0 0.0
    %2977 = vmatpush1.msra.mxu0 0.0
    %2978 = vmatprep.mubr.f32.mxu0 0.0
    %2979 = vmatmul.mubr.f32.gmra.mrb[0].mxu0 %v2837
    %v2980 = vpop.f32.mrb[0].mxu0
    %v2981 = vadd.f32 0.0, %v2980
    %v2982 = vpop.f32.mrb[0].mxu0
    %2983 = vdwg.mxu0
    %v2984 = vadd.f32 %v2840, %v2910
    %v2985 = vxor.u32 %v2984, 2147483648
    %v2986 = vmul.f32 %v2985, 1.442695
    %v2987 = vpow.pop %v2986
    %v2988 = vadd.f32 %v2987, 1.0
    %v2989 = vrcp.pop %v2988
    %v2990 = vmul.f32 1.0, %v2989
    %v2991 = vadd.f32 %v2841, %v2912
    %v2992 = vxor.u32 %v2991, 2147483648
    %v2993 = vmul.f32 %v2992, 1.442695
    %v2994 = vpow.pop %v2993
    %v2995 = vadd.f32 %v2994, 1.0
    %v2996 = vrcp.pop %v2995
    %v2997 = vmul.f32 1.0, %v2996
    %v2998 = vadd.f32 %v2981, %v1856
    %v2999 = vmul.f32 %v2990, %v2998
    %v3000 = vadd.f32 %v2842, %v2999
    %v3001 = vtanh.pop %v3000
    %v3002 = vsub.f32 %v2837, %v3001
    %v3003 = vmul.f32 %v2997, %v3002
    %v3004 = vadd.f32 %v3001, %v3003
    %s3005 = scalar_lea.vmem %s11, 32
    %3006 = vst [vmem:[%s3005] sm:$0xff] %v3004
    %v3007 = vld [vmem:[%s1294] sm:$0xff]
    %v3008 = vld [vmem:[%s1294 + $0x8] sm:$0xff]
    %v3009 = vld [vmem:[%s1294 + $0x10] sm:$0xff]
    %3010 = vmatprep.subr.mxu0 %v1804
    %3011 = vmatpush1.msra.mxu0 %v1803
    %3012 = vmatprep.subr.mxu0 %v1807
    %3013 = vmatpush1.msra.mxu0 %v1806
    %3014 = vmatprep.subr.mxu0 %v1810
    %3015 = vmatpush1.msra.mxu0 %v1809
    %3016 = vmatprep.subr.mxu0 %v1813
    %3017 = vmatpush1.msra.mxu0 %v1812
    %3018 = vmatprep.subr.mxu0 %v1816
    %3019 = vmatpush1.msra.mxu0 %v1815
    %3020 = vmatprep.subr.mxu0 %v1819
    %3021 = vmatpush1.msra.mxu0 %v1818
    %3022 = vmatprep.subr.mxu0 %v1822
    %3023 = vmatpush1.msra.mxu0 %v1821
    %3024 = vmatprep.subr.mxu0 %v1825
    %3025 = vmatpush1.msra.mxu0 %v1824
    %3026 = vmatprep.subr.mxu0 %v1828
    %3027 = vmatpush1.msra.mxu0 %v1827
    %3028 = vmatprep.subr.mxu0 %v1831
    %3029 = vmatpush1.msra.mxu0 %v1830
    %3030 = vmatprep.subr.mxu0 %v1834
    %3031 = vmatpush1.msra.mxu0 %v1833
    %3032 = vmatprep.subr.mxu0 %v1837
    %3033 = vmatpush1.msra.mxu0 %v1836
    %3034 = vmatprep.subr.mxu0 %v1840
    %3035 = vmatpush1.msra.mxu0 %v1839
    %3036 = vmatprep.subr.mxu0 %v1843
    %3037 = vmatpush1.msra.mxu0 %v1842
    %3038 = vmatprep.subr.mxu0 %v1846
    %3039 = vmatpush1.msra.mxu0 %v1845
    %3040 = vmatprep.subr.mxu0 %v1849
    %3041 = vmatpush1.msra.mxu0 %v1848
    %3042 = vmatprep.subr.mxu0 0.0
    %3043 = vmatpush1.msra.mxu0 0.0
    %3044 = vmatprep.subr.mxu0 0.0
    %3045 = vmatpush1.msra.mxu0 0.0
    %3046 = vmatprep.subr.mxu0 0.0
    %3047 = vmatpush1.msra.mxu0 0.0
    %3048 = vmatprep.subr.mxu0 0.0
    %3049 = vmatpush1.msra.mxu0 0.0
    %3050 = vmatprep.subr.mxu0 0.0
    %3051 = vmatpush1.msra.mxu0 0.0
    %3052 = vmatprep.subr.mxu0 0.0
    %3053 = vmatpush1.msra.mxu0 0.0
    %3054 = vmatprep.subr.mxu0 0.0
    %3055 = vmatpush1.msra.mxu0 0.0
    %3056 = vmatprep.subr.mxu0 0.0
    %3057 = vmatpush1.msra.mxu0 0.0
    %3058 = vmatprep.subr.mxu0 0.0
    %3059 = vmatpush1.msra.mxu0 0.0
    %3060 = vmatprep.subr.mxu0 0.0
    %3061 = vmatpush1.msra.mxu0 0.0
    %3062 = vmatprep.subr.mxu0 0.0
    %3063 = vmatpush1.msra.mxu0 0.0
    %3064 = vmatprep.subr.mxu0 0.0
    %3065 = vmatpush1.msra.mxu0 0.0
    %3066 = vmatprep.subr.mxu0 0.0
    %3067 = vmatpush1.msra.mxu0 0.0
    %3068 = vmatprep.subr.mxu0 0.0
    %3069 = vmatpush1.msra.mxu0 0.0
    %3070 = vmatprep.subr.mxu0 0.0
    %3071 = vmatpush1.msra.mxu0 0.0
    %3072 = vmatprep.subr.mxu0 0.0
    %3073 = vmatpush1.msra.mxu0 0.0
    %3074 = vmatprep.mubr.f32.mxu0 0.0
    %3075 = vmatmul.mubr.f32.gmra.mrb[0].mxu0 %v3004
    %v3076 = vpop.f32.mrb[0].mxu0
    %v3077 = vadd.f32 0.0, %v3076
    %v3078 = vpop.f32.mrb[0].mxu0
    %v3079 = vadd.f32 0.0, %v3078
    %3080 = vdwg.mxu0
    %3081 = vmatprep.subr.mxu0 0.0
    %3082 = vmatpush1.msra.mxu0 %v1805
    %3083 = vmatprep.subr.mxu0 0.0
    %3084 = vmatpush1.msra.mxu0 %v1808
    %3085 = vmatprep.subr.mxu0 0.0
    %3086 = vmatpush1.msra.mxu0 %v1811
    %3087 = vmatprep.subr.mxu0 0.0
    %3088 = vmatpush1.msra.mxu0 %v1814
    %3089 = vmatprep.subr.mxu0 0.0
    %3090 = vmatpush1.msra.mxu0 %v1817
    %3091 = vmatprep.subr.mxu0 0.0
    %3092 = vmatpush1.msra.mxu0 %v1820
    %3093 = vmatprep.subr.mxu0 0.0
    %3094 = vmatpush1.msra.mxu0 %v1823
    %3095 = vmatprep.subr.mxu0 0.0
    %3096 = vmatpush1.msra.mxu0 %v1826
    %3097 = vmatprep.subr.mxu0 0.0
    %3098 = vmatpush1.msra.mxu0 %v1829
    %3099 = vmatprep.subr.mxu0 0.0
    %3100 = vmatpush1.msra.mxu0 %v1832
    %3101 = vmatprep.subr.mxu0 0.0
    %3102 = vmatpush1.msra.mxu0 %v1835
    %3103 = vmatprep.subr.mxu0 0.0
    %3104 = vmatpush1.msra.mxu0 %v1838
    %3105 = vmatprep.subr.mxu0 0.0
    %3106 = vmatpush1.msra.mxu0 %v1841
    %3107 = vmatprep.subr.mxu0 0.0
    %3108 = vmatpush1.msra.mxu0 %v1844
    %3109 = vmatprep.subr.mxu0 0.0
    %3110 = vmatpush1.msra.mxu0 %v1847
    %3111 = vmatprep.subr.mxu0 0.0
    %3112 = vmatpush1.msra.mxu0 %v1850
    %3113 = vmatprep.subr.mxu0 0.0
    %3114 = vmatpush1.msra.mxu0 0.0
    %3115 = vmatprep.subr.mxu0 0.0
    %3116 = vmatpush1.msra.mxu0 0.0
    %3117 = vmatprep.subr.mxu0 0.0
    %3118 = vmatpush1.msra.mxu0 0.0
    %3119 = vmatprep.subr.mxu0 0.0
    %3120 = vmatpush1.msra.mxu0 0.0
    %3121 = vmatprep.subr.mxu0 0.0
    %3122 = vmatpush1.msra.mxu0 0.0
    %3123 = vmatprep.subr.mxu0 0.0
    %3124 = vmatpush1.msra.mxu0 0.0
    %3125 = vmatprep.subr.mxu0 0.0
    %3126 = vmatpush1.msra.mxu0 0.0
    %3127 = vmatprep.subr.mxu0 0.0
    %3128 = vmatpush1.msra.mxu0 0.0
    %3129 = vmatprep.subr.mxu0 0.0
    %3130 = vmatpush1.msra.mxu0 0.0
    %3131 = vmatprep.subr.mxu0 0.0
    %3132 = vmatpush1.msra.mxu0 0.0
    %3133 = vmatprep.subr.mxu0 0.0
    %3134 = vmatpush1.msra.mxu0 0.0
    %3135 = vmatprep.subr.mxu0 0.0
    %3136 = vmatpush1.msra.mxu0 0.0
    %3137 = vmatprep.subr.mxu0 0.0
    %3138 = vmatpush1.msra.mxu0 0.0
    %3139 = vmatprep.subr.mxu0 0.0
    %3140 = vmatpush1.msra.mxu0 0.0
    %3141 = vmatprep.subr.mxu0 0.0
    %3142 = vmatpush1.msra.mxu0 0.0
    %3143 = vmatprep.subr.mxu0 0.0
    %3144 = vmatpush1.msra.mxu0 0.0
    %3145 = vmatprep.mubr.f32.mxu0 0.0
    %3146 = vmatmul.mubr.f32.gmra.mrb[0].mxu0 %v3004
    %v3147 = vpop.f32.mrb[0].mxu0
    %v3148 = vadd.f32 0.0, %v3147
    %v3149 = vpop.f32.mrb[0].mxu0
    %3150 = vdwg.mxu0
    %v3151 = vadd.f32 %v3007, %v3077
    %v3152 = vxor.u32 %v3151, 2147483648
    %v3153 = vmul.f32 %v3152, 1.442695
    %v3154 = vpow.pop %v3153
    %v3155 = vadd.f32 %v3154, 1.0
    %v3156 = vrcp.pop %v3155
    %v3157 = vmul.f32 1.0, %v3156
    %v3158 = vadd.f32 %v3008, %v3079
    %v3159 = vxor.u32 %v3158, 2147483648
    %v3160 = vmul.f32 %v3159, 1.442695
    %v3161 = vpow.pop %v3160
    %v3162 = vadd.f32 %v3161, 1.0
    %v3163 = vrcp.pop %v3162
    %v3164 = vmul.f32 1.0, %v3163
    %v3165 = vadd.f32 %v3148, %v1856
    %v3166 = vmul.f32 %v3157, %v3165
    %v3167 = vadd.f32 %v3009, %v3166
    %v3168 = vtanh.pop %v3167
    %v3169 = vsub.f32 %v3004, %v3168
    %v3170 = vmul.f32 %v3164, %v3169
    %v3171 = vadd.f32 %v3168, %v3170
    %s3172 = scalar_lea.vmem %s11, 40
    %3173 = vst [vmem:[%s3172] sm:$0xff] %v3171
    %v3174 = vld [vmem:[%s1464] sm:$0xff]
    %v3175 = vld [vmem:[%s1464 + $0x8] sm:$0xff]
    %v3176 = vld [vmem:[%s1464 + $0x10] sm:$0xff]
    %3177 = vmatprep.subr.mxu0 %v1804
    %3178 = vmatpush1.msra.mxu0 %v1803
    %3179 = vmatprep.subr.mxu0 %v1807
    %3180 = vmatpush1.msra.mxu0 %v1806
    %3181 = vmatprep.subr.mxu0 %v1810
    %3182 = vmatpush1.msra.mxu0 %v1809
    %3183 = vmatprep.subr.mxu0 %v1813
    %3184 = vmatpush1.msra.mxu0 %v1812
    %3185 = vmatprep.subr.mxu0 %v1816
    %3186 = vmatpush1.msra.mxu0 %v1815
    %3187 = vmatprep.subr.mxu0 %v1819
    %3188 = vmatpush1.msra.mxu0 %v1818
    %3189 = vmatprep.subr.mxu0 %v1822
    %3190 = vmatpush1.msra.mxu0 %v1821
    %3191 = vmatprep.subr.mxu0 %v1825
    %3192 = vmatpush1.msra.mxu0 %v1824
    %3193 = vmatprep.subr.mxu0 %v1828
    %3194 = vmatpush1.msra.mxu0 %v1827
    %3195 = vmatprep.subr.mxu0 %v1831
    %3196 = vmatpush1.msra.mxu0 %v1830
    %3197 = vmatprep.subr.mxu0 %v1834
    %3198 = vmatpush1.msra.mxu0 %v1833
    %3199 = vmatprep.subr.mxu0 %v1837
    %3200 = vmatpush1.msra.mxu0 %v1836
    %3201 = vmatprep.subr.mxu0 %v1840
    %3202 = vmatpush1.msra.mxu0 %v1839
    %3203 = vmatprep.subr.mxu0 %v1843
    %3204 = vmatpush1.msra.mxu0 %v1842
    %3205 = vmatprep.subr.mxu0 %v1846
    %3206 = vmatpush1.msra.mxu0 %v1845
    %3207 = vmatprep.subr.mxu0 %v1849
    %3208 = vmatpush1.msra.mxu0 %v1848
    %3209 = vmatprep.subr.mxu0 0.0
    %3210 = vmatpush1.msra.mxu0 0.0
    %3211 = vmatprep.subr.mxu0 0.0
    %3212 = vmatpush1.msra.mxu0 0.0
    %3213 = vmatprep.subr.mxu0 0.0
    %3214 = vmatpush1.msra.mxu0 0.0
    %3215 = vmatprep.subr.mxu0 0.0
    %3216 = vmatpush1.msra.mxu0 0.0
    %3217 = vmatprep.subr.mxu0 0.0
    %3218 = vmatpush1.msra.mxu0 0.0
    %3219 = vmatprep.subr.mxu0 0.0
    %3220 = vmatpush1.msra.mxu0 0.0
    %3221 = vmatprep.subr.mxu0 0.0
    %3222 = vmatpush1.msra.mxu0 0.0
    %3223 = vmatprep.subr.mxu0 0.0
    %3224 = vmatpush1.msra.mxu0 0.0
    %3225 = vmatprep.subr.mxu0 0.0
    %3226 = vmatpush1.msra.mxu0 0.0
    %3227 = vmatprep.subr.mxu0 0.0
    %3228 = vmatpush1.msra.mxu0 0.0
    %3229 = vmatprep.subr.mxu0 0.0
    %3230 = vmatpush1.msra.mxu0 0.0
    %3231 = vmatprep.subr.mxu0 0.0
    %3232 = vmatpush1.msra.mxu0 0.0
    %3233 = vmatprep.subr.mxu0 0.0
    %3234 = vmatpush1.msra.mxu0 0.0
    %3235 = vmatprep.subr.mxu0 0.0
    %3236 = vmatpush1.msra.mxu0 0.0
    %3237 = vmatprep.subr.mxu0 0.0
    %3238 = vmatpush1.msra.mxu0 0.0
    %3239 = vmatprep.subr.mxu0 0.0
    %3240 = vmatpush1.msra.mxu0 0.0
    %3241 = vmatprep.mubr.f32.mxu0 0.0
    %3242 = vmatmul.mubr.f32.gmra.mrb[0].mxu0 %v3171
    %v3243 = vpop.f32.mrb[0].mxu0
    %v3244 = vadd.f32 0.0, %v3243
    %v3245 = vpop.f32.mrb[0].mxu0
    %v3246 = vadd.f32 0.0, %v3245
    %3247 = vdwg.mxu0
    %3248 = vmatprep.subr.mxu0 0.0
    %3249 = vmatpush1.msra.mxu0 %v1805
    %3250 = vmatprep.subr.mxu0 0.0
    %3251 = vmatpush1.msra.mxu0 %v1808
    %3252 = vmatprep.subr.mxu0 0.0
    %3253 = vmatpush1.msra.mxu0 %v1811
    %3254 = vmatprep.subr.mxu0 0.0
    %3255 = vmatpush1.msra.mxu0 %v1814
    %3256 = vmatprep.subr.mxu0 0.0
    %3257 = vmatpush1.msra.mxu0 %v1817
    %3258 = vmatprep.subr.mxu0 0.0
    %3259 = vmatpush1.msra.mxu0 %v1820
    %3260 = vmatprep.subr.mxu0 0.0
    %3261 = vmatpush1.msra.mxu0 %v1823
    %3262 = vmatprep.subr.mxu0 0.0
    %3263 = vmatpush1.msra.mxu0 %v1826
    %3264 = vmatprep.subr.mxu0 0.0
    %3265 = vmatpush1.msra.mxu0 %v1829
    %3266 = vmatprep.subr.mxu0 0.0
    %3267 = vmatpush1.msra.mxu0 %v1832
    %3268 = vmatprep.subr.mxu0 0.0
    %3269 = vmatpush1.msra.mxu0 %v1835
    %3270 = vmatprep.subr.mxu0 0.0
    %3271 = vmatpush1.msra.mxu0 %v1838
    %3272 = vmatprep.subr.mxu0 0.0
    %3273 = vmatpush1.msra.mxu0 %v1841
    %3274 = vmatprep.subr.mxu0 0.0
    %3275 = vmatpush1.msra.mxu0 %v1844
    %3276 = vmatprep.subr.mxu0 0.0
    %3277 = vmatpush1.msra.mxu0 %v1847
    %3278 = vmatprep.subr.mxu0 0.0
    %3279 = vmatpush1.msra.mxu0 %v1850
    %3280 = vmatprep.subr.mxu0 0.0
    %3281 = vmatpush1.msra.mxu0 0.0
    %3282 = vmatprep.subr.mxu0 0.0
    %3283 = vmatpush1.msra.mxu0 0.0
    %3284 = vmatprep.subr.mxu0 0.0
    %3285 = vmatpush1.msra.mxu0 0.0
    %3286 = vmatprep.subr.mxu0 0.0
    %3287 = vmatpush1.msra.mxu0 0.0
    %3288 = vmatprep.subr.mxu0 0.0
    %3289 = vmatpush1.msra.mxu0 0.0
    %3290 = vmatprep.subr.mxu0 0.0
    %3291 = vmatpush1.msra.mxu0 0.0
    %3292 = vmatprep.subr.mxu0 0.0
    %3293 = vmatpush1.msra.mxu0 0.0
    %3294 = vmatprep.subr.mxu0 0.0
    %3295 = vmatpush1.msra.mxu0 0.0
    %3296 = vmatprep.subr.mxu0 0.0
    %3297 = vmatpush1.msra.mxu0 0.0
    %3298 = vmatprep.subr.mxu0 0.0
    %3299 = vmatpush1.msra.mxu0 0.0
    %3300 = vmatprep.subr.mxu0 0.0
    %3301 = vmatpush1.msra.mxu0 0.0
    %3302 = vmatprep.subr.mxu0 0.0
    %3303 = vmatpush1.msra.mxu0 0.0
    %3304 = vmatprep.subr.mxu0 0.0
    %3305 = vmatpush1.msra.mxu0 0.0
    %3306 = vmatprep.subr.mxu0 0.0
    %3307 = vmatpush1.msra.mxu0 0.0
    %3308 = vmatprep.subr.mxu0 0.0
    %3309 = vmatpush1.msra.mxu0 0.0
    %3310 = vmatprep.subr.mxu0 0.0
    %3311 = vmatpush1.msra.mxu0 0.0
    %3312 = vmatprep.mubr.f32.mxu0 0.0
    %3313 = vmatmul.mubr.f32.gmra.mrb[0].mxu0 %v3171
    %v3314 = vpop.f32.mrb[0].mxu0
    %v3315 = vadd.f32 0.0, %v3314
    %v3316 = vpop.f32.mrb[0].mxu0
    %3317 = vdwg.mxu0
    %v3318 = vadd.f32 %v3174, %v3244
    %v3319 = vxor.u32 %v3318, 2147483648
    %v3320 = vmul.f32 %v3319, 1.442695
    %v3321 = vpow.pop %v3320
    %v3322 = vadd.f32 %v3321, 1.0
    %v3323 = vrcp.pop %v3322
    %v3324 = vmul.f32 1.0, %v3323
    %v3325 = vadd.f32 %v3175, %v3246
    %v3326 = vxor.u32 %v3325, 2147483648
    %v3327 = vmul.f32 %v3326, 1.442695
    %v3328 = vpow.pop %v3327
    %v3329 = vadd.f32 %v3328, 1.0
    %v3330 = vrcp.pop %v3329
    %v3331 = vmul.f32 1.0, %v3330
    %v3332 = vadd.f32 %v3315, %v1856
    %v3333 = vmul.f32 %v3324, %v3332
    %v3334 = vadd.f32 %v3176, %v3333
    %v3335 = vtanh.pop %v3334
    %v3336 = vsub.f32 %v3171, %v3335
    %v3337 = vmul.f32 %v3331, %v3336
    %v3338 = vadd.f32 %v3335, %v3337
    %s3339 = scalar_lea.vmem %s11, 48
    %3340 = vst [vmem:[%s3339] sm:$0xff] %v3338
    %v3341 = vld [vmem:[%s1634] sm:$0xff]
    %v3342 = vld [vmem:[%s1634 + $0x8] sm:$0xff]
    %v3343 = vld [vmem:[%s1634 + $0x10] sm:$0xff]
    %3344 = vmatprep.subr.mxu0 %v1804
    %3345 = vmatpush1.msra.mxu0 %v1803
    %3346 = vmatprep.subr.mxu0 %v1807
    %3347 = vmatpush1.msra.mxu0 %v1806
    %3348 = vmatprep.subr.mxu0 %v1810
    %3349 = vmatpush1.msra.mxu0 %v1809
    %3350 = vmatprep.subr.mxu0 %v1813
    %3351 = vmatpush1.msra.mxu0 %v1812
    %3352 = vmatprep.subr.mxu0 %v1816
    %3353 = vmatpush1.msra.mxu0 %v1815
    %3354 = vmatprep.subr.mxu0 %v1819
    %3355 = vmatpush1.msra.mxu0 %v1818
    %3356 = vmatprep.subr.mxu0 %v1822
    %3357 = vmatpush1.msra.mxu0 %v1821
    %3358 = vmatprep.subr.mxu0 %v1825
    %3359 = vmatpush1.msra.mxu0 %v1824
    %3360 = vmatprep.subr.mxu0 %v1828
    %3361 = vmatpush1.msra.mxu0 %v1827
    %3362 = vmatprep.subr.mxu0 %v1831
    %3363 = vmatpush1.msra.mxu0 %v1830
    %3364 = vmatprep.subr.mxu0 %v1834
    %3365 = vmatpush1.msra.mxu0 %v1833
    %3366 = vmatprep.subr.mxu0 %v1837
    %3367 = vmatpush1.msra.mxu0 %v1836
    %3368 = vmatprep.subr.mxu0 %v1840
    %3369 = vmatpush1.msra.mxu0 %v1839
    %3370 = vmatprep.subr.mxu0 %v1843
    %3371 = vmatpush1.msra.mxu0 %v1842
    %3372 = vmatprep.subr.mxu0 %v1846
    %3373 = vmatpush1.msra.mxu0 %v1845
    %3374 = vmatprep.subr.mxu0 %v1849
    %3375 = vmatpush1.msra.mxu0 %v1848
    %3376 = vmatprep.subr.mxu0 0.0
    %3377 = vmatpush1.msra.mxu0 0.0
    %3378 = vmatprep.subr.mxu0 0.0
    %3379 = vmatpush1.msra.mxu0 0.0
    %3380 = vmatprep.subr.mxu0 0.0
    %3381 = vmatpush1.msra.mxu0 0.0
    %3382 = vmatprep.subr.mxu0 0.0
    %3383 = vmatpush1.msra.mxu0 0.0
    %3384 = vmatprep.subr.mxu0 0.0
    %3385 = vmatpush1.msra.mxu0 0.0
    %3386 = vmatprep.subr.mxu0 0.0
    %3387 = vmatpush1.msra.mxu0 0.0
    %3388 = vmatprep.subr.mxu0 0.0
    %3389 = vmatpush1.msra.mxu0 0.0
    %3390 = vmatprep.subr.mxu0 0.0
    %3391 = vmatpush1.msra.mxu0 0.0
    %3392 = vmatprep.subr.mxu0 0.0
    %3393 = vmatpush1.msra.mxu0 0.0
    %3394 = vmatprep.subr.mxu0 0.0
    %3395 = vmatpush1.msra.mxu0 0.0
    %3396 = vmatprep.subr.mxu0 0.0
    %3397 = vmatpush1.msra.mxu0 0.0
    %3398 = vmatprep.subr.mxu0 0.0
    %3399 = vmatpush1.msra.mxu0 0.0
    %3400 = vmatprep.subr.mxu0 0.0
    %3401 = vmatpush1.msra.mxu0 0.0
    %3402 = vmatprep.subr.mxu0 0.0
    %3403 = vmatpush1.msra.mxu0 0.0
    %3404 = vmatprep.subr.mxu0 0.0
    %3405 = vmatpush1.msra.mxu0 0.0
    %3406 = vmatprep.subr.mxu0 0.0
    %3407 = vmatpush1.msra.mxu0 0.0
    %3408 = vmatprep.mubr.f32.mxu0 0.0
    %3409 = vmatmul.mubr.f32.gmra.mrb[0].mxu0 %v3338
    %v3410 = vpop.f32.mrb[0].mxu0
    %v3411 = vadd.f32 0.0, %v3410
    %v3412 = vpop.f32.mrb[0].mxu0
    %v3413 = vadd.f32 0.0, %v3412
    %3414 = vdwg.mxu0
    %3415 = vmatprep.subr.mxu0 0.0
    %3416 = vmatpush1.msra.mxu0 %v1805
    %3417 = vmatprep.subr.mxu0 0.0
    %3418 = vmatpush1.msra.mxu0 %v1808
    %3419 = vmatprep.subr.mxu0 0.0
    %3420 = vmatpush1.msra.mxu0 %v1811
    %3421 = vmatprep.subr.mxu0 0.0
    %3422 = vmatpush1.msra.mxu0 %v1814
    %3423 = vmatprep.subr.mxu0 0.0
    %3424 = vmatpush1.msra.mxu0 %v1817
    %3425 = vmatprep.subr.mxu0 0.0
    %3426 = vmatpush1.msra.mxu0 %v1820
    %3427 = vmatprep.subr.mxu0 0.0
    %3428 = vmatpush1.msra.mxu0 %v1823
    %3429 = vmatprep.subr.mxu0 0.0
    %3430 = vmatpush1.msra.mxu0 %v1826
    %3431 = vmatprep.subr.mxu0 0.0
    %3432 = vmatpush1.msra.mxu0 %v1829
    %3433 = vmatprep.subr.mxu0 0.0
    %3434 = vmatpush1.msra.mxu0 %v1832
    %3435 = vmatprep.subr.mxu0 0.0
    %3436 = vmatpush1.msra.mxu0 %v1835
    %3437 = vmatprep.subr.mxu0 0.0
    %3438 = vmatpush1.msra.mxu0 %v1838
    %3439 = vmatprep.subr.mxu0 0.0
    %3440 = vmatpush1.msra.mxu0 %v1841
    %3441 = vmatprep.subr.mxu0 0.0
    %3442 = vmatpush1.msra.mxu0 %v1844
    %3443 = vmatprep.subr.mxu0 0.0
    %3444 = vmatpush1.msra.mxu0 %v1847
    %3445 = vmatprep.subr.mxu0 0.0
    %3446 = vmatpush1.msra.mxu0 %v1850
    %3447 = vmatprep.subr.mxu0 0.0
    %3448 = vmatpush1.msra.mxu0 0.0
    %3449 = vmatprep.subr.mxu0 0.0
    %3450 = vmatpush1.msra.mxu0 0.0
    %3451 = vmatprep.subr.mxu0 0.0
    %3452 = vmatpush1.msra.mxu0 0.0
    %3453 = vmatprep.subr.mxu0 0.0
    %3454 = vmatpush1.msra.mxu0 0.0
    %3455 = vmatprep.subr.mxu0 0.0
    %3456 = vmatpush1.msra.mxu0 0.0
    %3457 = vmatprep.subr.mxu0 0.0
    %3458 = vmatpush1.msra.mxu0 0.0
    %3459 = vmatprep.subr.mxu0 0.0
    %3460 = vmatpush1.msra.mxu0 0.0
    %3461 = vmatprep.subr.mxu0 0.0
    %3462 = vmatpush1.msra.mxu0 0.0
    %3463 = vmatprep.subr.mxu0 0.0
    %3464 = vmatpush1.msra.mxu0 0.0
    %3465 = vmatprep.subr.mxu0 0.0
    %3466 = vmatpush1.msra.mxu0 0.0
    %3467 = vmatprep.subr.mxu0 0.0
    %3468 = vmatpush1.msra.mxu0 0.0
    %3469 = vmatprep.subr.mxu0 0.0
    %3470 = vmatpush1.msra.mxu0 0.0
    %3471 = vmatprep.subr.mxu0 0.0
    %3472 = vmatpush1.msra.mxu0 0.0
    %3473 = vmatprep.subr.mxu0 0.0
    %3474 = vmatpush1.msra.mxu0 0.0
    %3475 = vmatprep.subr.mxu0 0.0
    %3476 = vmatpush1.msra.mxu0 0.0
    %3477 = vmatprep.subr.mxu0 0.0
    %3478 = vmatpush1.msra.mxu0 0.0
    %3479 = vmatprep.mubr.f32.mxu0 0.0
    %3480 = vmatmul.mubr.f32.gmra.mrb[0].mxu0 %v3338
    %v3481 = vpop.f32.mrb[0].mxu0
    %v3482 = vadd.f32 0.0, %v3481
    %v3483 = vpop.f32.mrb[0].mxu0
    %3484 = vdwg.mxu0
    %v3485 = vadd.f32 %v3341, %v3411
    %v3486 = vxor.u32 %v3485, 2147483648
    %v3487 = vmul.f32 %v3486, 1.442695
    %v3488 = vpow.pop %v3487
    %v3489 = vadd.f32 %v3488, 1.0
    %v3490 = vrcp.pop %v3489
    %v3491 = vmul.f32 1.0, %v3490
    %v3492 = vadd.f32 %v3342, %v3413
    %v3493 = vxor.u32 %v3492, 2147483648
    %v3494 = vmul.f32 %v3493, 1.442695
    %v3495 = vpow.pop %v3494
    %v3496 = vadd.f32 %v3495, 1.0
    %v3497 = vrcp.pop %v3496
    %v3498 = vmul.f32 1.0, %v3497
    %v3499 = vadd.f32 %v3482, %v1856
    %v3500 = vmul.f32 %v3491, %v3499
    %v3501 = vadd.f32 %v3343, %v3500
    %v3502 = vtanh.pop %v3501
    %v3503 = vsub.f32 %v3338, %v3502
    %v3504 = vmul.f32 %v3498, %v3503
    %v3505 = vadd.f32 %v3502, %v3504
    %s3506 = scalar_lea.vmem %s11, 56
    %3507 = vst [vmem:[%s3506] sm:$0xff] %v3505
    %v3508 = vld [vmem:[%s9] sm:$0x1]
    %v3510 = vlaneseq
    %v3511 = vshrl.u32 %v3510, 7
    %v3512 = vsub.s32 0, %v3511
    %v3513 = vrot.slane %v3508, %v3512
    %v3515 = vmul.f32 %v3505, %v3513
    %3516 = vadd.xlane.f32.xlu0 %v3515
    %v3517 = vpop.xlane.xlu0 %3516
    %v3518 = vld [vmem:[#allocation4] sm:$0x1]
    %v3520 = vlaneseq
    %v3521 = vshrl.u32 %v3520, 7
    %v3522 = vsub.s32 0, %v3521
    %v3523 = vrot.slane %v3518, %v3522
    %v3525 = vadd.f32 %v3517, %v3523
    %vm3526 = vcmask 7168
    %3527 = vst.msk [vmem:[%s13] sm:$0xff] %vm3526, %v3525
    // Predicated region
    $region58: #{gru_model_forward.1} parent=1 // pred_check
      _
    $region59: #{gru_model_forward.1} parent=1 // pred_check_branch
      %3529 = sbr.rel (0) target = $region61
    $region60: #{gru_model_forward.1} parent=1 // pred_region
      _
    $region61: #{gru_model_forward.1} parent=1 // pred_fallthru
      _
    // Predicated region
    $region62: #{gru_model_forward.1} parent=1 // pred_check
      _
    $region63: #{gru_model_forward.1} parent=1 // pred_check_branch
      %3531 = sbr.rel (0) target = $region65
    $region64: #{gru_model_forward.1} parent=1 // pred_region
      _
    $region65: #{gru_model_forward.1} parent=1 // pred_fallthru
      _
    // Predicated region
    $region66: #{gru_model_forward.1} parent=1 // pred_check
      _
    $region67: #{gru_model_forward.1} parent=1 // pred_check_branch
      %3533 = sbr.rel (0) target = $region69
    $region68: #{gru_model_forward.1} parent=1 // pred_region
      _
    $region69: #{gru_model_forward.1} parent=1 // pred_fallthru
      _
    // Predicated region
    $region70: #{gru_model_forward.1} parent=1 // pred_check
      _
    $region71: #{gru_model_forward.1} parent=1 // pred_check_branch
      %3535 = sbr.rel (0) target = $region73
    $region72: #{gru_model_forward.1} parent=1 // pred_region
      _
    $region73: #{gru_model_forward.1} parent=1 // pred_fallthru
      _
    // Predicated region
    $region74: #{gru_model_forward.1} parent=1 // pred_check
      _
    $region75: #{gru_model_forward.1} parent=1 // pred_check_branch
      %3537 = sbr.rel (0) target = $region77
    $region76: #{gru_model_forward.1} parent=1 // pred_region
      _
    $region77: #{gru_model_forward.1} parent=1 // pred_fallthru
      _
    // Predicated region
    $region78: #{gru_model_forward.1} parent=1 // pred_check
      _
    $region79: #{gru_model_forward.1} parent=1 // pred_check_branch
      %3539 = sbr.rel (0) target = $region81
    $region80: #{gru_model_forward.1} parent=1 // pred_region
      _
    $region81: #{gru_model_forward.1} parent=1 // pred_fallthru
      _
    %3540 = vsyncpa [#allocation6], 1
    %3541 = vsyncpa [#allocation8], 1

</llo_original>
